<compile_context>
chip_gen: v7x
topology: tpu7x:2x2x1
jax: 0.10.0
libtpu: 0.0.40
codegen_flags: <defaults>
</compile_context>

<pallas_src>
import functools
import math

import jax
import jax.numpy as jnp
from jax.experimental import pallas as pl
from jax.experimental.pallas import tpu as pltpu


LANE = 128


def _round_up(x, m):
    return (x + m - 1) // m * m


def _default_cout_tile():
    """256 on v6e/v7x (2x256 MXU), 128 on v5e and older."""
    try:
        kind = jax.devices()[0].device_kind.lower()
    except Exception:
        return 128
    if any(t in kind for t in ("v2", "v3", "v4", "v5")):
        return 128
    return 256


def _vmem_est_conv(hT, pad, W8, Wp_x, Cin_p, tc, KH, KW, m_item, s_item):
    """Honest per-step VMEM footprint of kernel 1 (bytes)."""
    rows = hT + 2 * pad
    band = rows * _round_up(Wp_x, 8) * Cin_p * m_item        # halo band scratch
    shifted = KW * rows * W8 * Cin_p * m_item                # kw-shifted copies
    acc = hT * W8 * tc * 4                                   # f32 accumulator
    wblk = 2 * KH * KW * Cin_p * tc * m_item                 # dbl-buffered weights
    yblk = 2 * hT * W8 * tc * s_item                         # dbl-buffered output
    return band + shifted + acc + wblk + yblk + (2 << 20)


def _pick_band_rows(H, pad, W8, Wp_x, Cin_p, tc, KH, KW, m_item, s_item, budget):
    """Largest divisor of H whose per-step footprint fits the VMEM budget."""
    best = 1
    for hT in range(1, H + 1):
        if H % hT:
            continue
        if _vmem_est_conv(hT, pad, W8, Wp_x, Cin_p, tc, KH, KW,
                          m_item, s_item) <= budget:
            best = hT
    return best


# --------------------------------------------------------------------------- #
# Kernel 1: direct conv over a row band (per-tap MXU matmuls, f32 accumulate)
#           + streamed centered BN partial statistics (sum, M2).
# --------------------------------------------------------------------------- #
def _conv_stats_kernel(x_hbm, w_ref, y_ref, stats_ref, xband_ref, dma_sem, *,
                       hT, W, W8, pad, KH, KW, cnt_inv,
                       ax_batch, ax_band, ax_cout, dma_on_cout0_only):
    # x_hbm:     (N, Hp, Wp_x, Cin_p)   full padded input, left in HBM (pl.ANY)
    # w_ref:     (KH, KW, Cin_p, tc)    weight tile for one Cout tile
    # y_ref:     (1, hT, W8, tc)        conv output band
    # stats_ref: (1, 1, 2, tc)          row 0 = sum, row 1 = M2 (centered)
    # xband_ref: (hT + 2*pad, Wp_x, Cin_p) VMEM halo band scratch
    b = pl.program_id(ax_batch)
    hb = pl.program_id(ax_band)
    rows = hT + 2 * pad
    cin = xband_ref.shape[-1]
    tc = w_ref.shape[-1]

    def _load_band():
        cp = pltpu.make_async_copy(
            x_hbm.at[b, pl.ds(hb * hT, rows)], xband_ref, dma_sem.at[0])
        cp.start()
        cp.wait()

    if dma_on_cout0_only:
        # x-resident order: the band is reused across all Cout-tile steps.
        @pl.when(pl.program_id(ax_cout) == 0)
        def _():
            _load_band()
    else:
        _load_band()

    acc = jnp.zeros((hT * W8, tc), dtype=jnp.float32)
    # Only KW sublane-shifted views; the (rows, W8) -> rows*W8 merge is done once
    # per kw (W8 is a multiple of 8, so the merge is tile-aligned); kh taps are
    # cheap row slices of the merged value at multiples of W8.
    for kw in range(KW):
        xk = xband_ref[:, kw:kw + W8, :].reshape(rows * W8, cin)
        for kh in range(KH):
            xs = xk[kh * W8: kh * W8 + hT * W8, :]
            acc = acc + jnp.dot(xs, w_ref[kh, kw],
                                preferred_element_type=jnp.float32)

    acc3 = acc.reshape(hT, W8, tc)
    if W8 != W:
        # Zero the padded output columns so they contribute nothing to the
        # stored result or the statistics.
        col = jax.lax.broadcasted_iota(jnp.int32, (1, W8, 1), 1)
        acc3 = jnp.where(col < W, acc3, 0.0)

    y_ref[0] = acc3.astype(y_ref.dtype)

    # Centered partial statistics for this (batch, band, Cout-tile) block.
    ssum = jnp.sum(acc3, axis=(0, 1))                  # (tc,)
    mu = ssum * cnt_inv                                # block mean (real count)
    diff = acc3 - mu
    if W8 != W:
        col = jax.lax.broadcasted_iota(jnp.int32, (1, W8, 1), 1)
        diff = jnp.where(col < W, diff, 0.0)
    m2 = jnp.sum(diff * diff, axis=(0, 1))             # (tc,)
    stats_ref[0, 0, 0:1, :] = ssum.reshape(1, tc)
    stats_ref[0, 0, 1:2, :] = m2.reshape(1, tc)


# --------------------------------------------------------------------------- #
# Kernel 2: lane-dense, row-chunked BN apply (y * scale + shift), in place.
# --------------------------------------------------------------------------- #
def _bn_apply_kernel(y_ref, scale_ref, shift_ref, o_ref):
    y = y_ref[...].astype(jnp.float32)
    o_ref[...] = (y * scale_ref[...] + shift_ref[...]).astype(o_ref.dtype)


def conv_bn_2d(x_nchw, w_oihw, gamma, beta, *, padding=1, stride=1, eps=1e-5,
               matmul_dtype=jnp.bfloat16, store_dtype=None,
               band_rows=None, grid_order="auto", cout_tile=None):
    """Conv2d(KxK, pad, stride=1, bias=False) + BatchNorm2d (training-mode batch
    stats, eps).  PyTorch NCHW / OIHW conventions."""
    assert stride == 1, "kernel implements the module defaults (stride=1)"
    N, Cin, H, W = x_nchw.shape
    Cout, Cin_w, KH, KW = w_oihw.shape
    assert Cin_w == Cin
    assert KH == KW == 2 * padding + 1, "band tiling assumes a 'same' conv"

    if store_dtype is None:
        store_dtype = matmul_dtype
    f32 = jnp.float32
    m_item = jnp.dtype(matmul_dtype).itemsize
    s_item = jnp.dtype(store_dtype).itemsize

    if cout_tile is None:
        tc = min(_default_cout_tile(), _round_up(Cout, LANE))
    else:
        assert cout_tile % LANE == 0
        tc = cout_tile
    Cin_p = _round_up(Cin, LANE)
    Cout_p = _round_up(Cout, tc)
    W8 = _round_up(W, 8)                        # 8-aligned sublane width
    Hp = H + 2 * padding
    Wp_x = W8 + 2 * padding

    if band_rows is None:
        hT = _pick_band_rows(H, padding, W8, Wp_x, Cin_p, tc, KH, KW,
                             m_item, s_item, budget=40 << 20)
    else:
        assert H % band_rows == 0
        hT = band_rows
    nb = H // hT
    n_ct = Cout_p // tc

    # ---- glue: NCHW -> NHWC, cast to the matmul dtype, one combined pad that
    # adds the spatial halo, the W->W8 alignment and the Cin lane padding.
    # (Production use should keep activations NHWC to drop this pass entirely.)
    x_nhwc = jnp.transpose(x_nchw, (0, 2, 3, 1)).astype(matmul_dtype)
    x_pad = jnp.pad(x_nhwc, ((0, 0), (padding, padding),
                             (padding, padding + W8 - W), (0, Cin_p - Cin)))
    w_hwio = jnp.transpose(w_oihw, (2, 3, 1, 0)).astype(matmul_dtype)
    w_pad = jnp.pad(w_hwio, ((0, 0), (0, 0), (0, Cin_p - Cin), (0, Cout_p - Cout)))
    gamma_p = jnp.pad(gamma.astype(f32), (0, Cout_p - Cout))
    beta_p = jnp.pad(beta.astype(f32), (0, Cout_p - Cout))

    # ---- adaptive grid order: keep the high-reuse operand resident ----------
    w_total = KH * KW * Cin_p * Cout_p * m_item
    x_total = N * Hp * Wp_x * Cin_p * m_item
    if grid_order == "auto":
        weights_resident = (w_total + n_ct * x_total) <= (x_total + N * nb * w_total)
    elif grid_order == "weights":
        weights_resident = True
    else:
        weights_resident = False

    if weights_resident:
        grid = (n_ct, N, nb)                      # weight tile read once
        ax_cout, ax_batch, ax_band = 0, 1, 2
        dma_guard = False                         # band changes every step
    else:
        grid = (N, nb, n_ct)                      # x band read once
        ax_batch, ax_band, ax_cout = 0, 1, 2
        dma_guard = True                          # DMA only at cout tile 0

    def w_map(*g):
        return (0, 0, 0, g[ax_cout])

    def y_map(*g):
        return (g[ax_batch], g[ax_band], 0, g[ax_cout])

    def s_map(*g):
        return (g[ax_batch], g[ax_band], 0, g[ax_cout])

    est1 = _vmem_est_conv(hT, padding, W8, Wp_x, Cin_p, tc, KH, KW, m_item, s_item)
    vmem1 = int(min(max(est1 + (4 << 20), 16 << 20), 48 << 20))
    cparams1 = pltpu.CompilerParams(
        dimension_semantics=("parallel", "parallel", "arbitrary"),
        vmem_limit_bytes=vmem1)

    kernel1 = functools.partial(
        _conv_stats_kernel, hT=hT, W=W, W8=W8, pad=padding, KH=KH, KW=KW,
        cnt_inv=1.0 / float(hT * W),
        ax_batch=ax_batch, ax_band=ax_band, ax_cout=ax_cout,
        dma_on_cout0_only=dma_guard)

    y, stats = pl.pallas_call(
        kernel1,
        out_shape=(
            jax.ShapeDtypeStruct((N, H, W8, Cout_p), store_dtype),
            jax.ShapeDtypeStruct((N, nb, 2, Cout_p), f32),
        ),
        grid_spec=pltpu.PrefetchScalarGridSpec(
            num_scalar_prefetch=0,
            grid=grid,
            in_specs=[
                pl.BlockSpec(memory_space=pl.ANY),               # x stays in HBM
                pl.BlockSpec((KH, KW, Cin_p, tc), w_map),
            ],
            out_specs=[
                pl.BlockSpec((1, hT, W8, tc), y_map),
                pl.BlockSpec((1, 1, 2, tc), s_map),
            ],
            scratch_shapes=[
                pltpu.VMEM((hT + 2 * padding, Wp_x, Cin_p), matmul_dtype),
                pltpu.SemaphoreType.DMA((1,)),
            ],
        ),
        compiler_params=cparams1,
    )(x_pad, w_pad)

    # ---- O(Cout) Welford-style combine of the per-band stats (JAX glue) ------
    cnt_b = float(hT * W)                 # real elements per block
    count = float(N * H * W)
    sums = stats[:, :, 0, :]              # (N, nb, Cout_p)
    m2s = stats[:, :, 1, :]
    mean = jnp.sum(sums, axis=(0, 1)) / count
    mean_b = sums / cnt_b
    m2 = jnp.sum(m2s, axis=(0, 1)) + jnp.sum(
        cnt_b * (mean_b - mean[None, None, :]) ** 2, axis=(0, 1))
    var = m2 / count                       # biased variance (PyTorch training norm)
    inv_std = jax.lax.rsqrt(var + eps)
    scale = (gamma_p * inv_std).reshape(1, Cout_p)
    shift = (beta_p - mean * gamma_p * inv_std).reshape(1, Cout_p)

    # ---- kernel 2: flattened, row-chunked BN apply, written in place over y --
    total_rows = N * H * W8
    rows_t = math.gcd(total_rows, 2048)    # multiple of 8 (W8 is), <= 2048 rows
    y_flat = y.reshape(total_rows, Cout_p)
    grid2 = (total_rows // rows_t, n_ct)
    est2 = 4 * rows_t * tc * s_item + 8 * tc * 4 + (2 << 20)
    cparams2 = pltpu.CompilerParams(
        dimension_semantics=("parallel", "parallel"),
        vmem_limit_bytes=int(min(max(est2, 16 << 20), 48 << 20)))

    out_flat = pl.pallas_call(
        _bn_apply_kernel,
        out_shape=jax.ShapeDtypeStruct((total_rows, Cout_p), store_dtype),
        grid_spec=pltpu.PrefetchScalarGridSpec(
            num_scalar_prefetch=0,
            grid=grid2,
            in_specs=[
                pl.BlockSpec((rows_t, tc), lambda r, j: (r, j)),
                pl.BlockSpec((1, tc), lambda r, j: (0, j)),
                pl.BlockSpec((1, tc), lambda r, j: (0, j)),
            ],
            out_specs=pl.BlockSpec((rows_t, tc), lambda r, j: (r, j)),
        ),
        input_output_aliases={0: 0},
        compiler_params=cparams2,
    )(y_flat, scale, shift)

    # TODO(synk): nn.BatchNorm2d also updates running_mean/running_var buffers in
    # training mode; that stateful side effect has no output-tensor equivalent here.

    out_nhwc = out_flat.reshape(N, H, W8, Cout_p)[:, :, :W, :Cout]
    return jnp.transpose(out_nhwc, (0, 3, 1, 2)).astype(x_nchw.dtype)


def _reference(x_nchw, w_oihw, gamma, beta, eps=1e-5, padding=1):
    y = jax.lax.conv_general_dilated(
        x_nchw.astype(jnp.float32), w_oihw.astype(jnp.float32),
        window_strides=(1, 1), padding=[(padding, padding), (padding, padding)],
        dimension_numbers=("NCHW", "OIHW", "NCHW"))
    mean = jnp.mean(y, axis=(0, 2, 3), keepdims=True)
    var = jnp.mean((y - mean) ** 2, axis=(0, 2, 3), keepdims=True)
    g = gamma.reshape(1, -1, 1, 1)
    b = beta.reshape(1, -1, 1, 1)
    return (y - mean) * jax.lax.rsqrt(var + eps) * g + b


if __name__ == "__main__":
    key = jax.random.PRNGKey(0)
    k1, k2, k3, k4, k5, k6, kg, kb = jax.random.split(key, 8)

    # ---------------- Case A: module-default small shapes -------------------
    N, Cin, H, W, Cout, K = 2, 4, 16, 16, 8, 3
    x = jax.random.normal(k1, (N, Cin, H, W), dtype=jnp.float32)
    w = jax.random.normal(k2, (Cout, Cin, K, K), dtype=jnp.float32) / (Cin * K * K) ** 0.5
    gamma = jnp.ones((Cout,), jnp.float32)
    beta = jnp.zeros((Cout,), jnp.float32)
    ref = _reference(x, w, gamma, beta)

    # (A1) exact f32 path, auto grid order
    run = jax.jit(functools.partial(conv_bn_2d, matmul_dtype=jnp.float32))
    out = jax.block_until_ready(run(x, w, gamma, beta))
    assert out.shape == (N, Cout, H, W)
    assert jnp.allclose(out, ref, atol=1e-4, rtol=1e-4), "A1 mismatch"

    # (A2) f32 path exercising row-band tiling + x-resident order + DMA guard
    run = jax.jit(functools.partial(conv_bn_2d, matmul_dtype=jnp.float32,
                                    band_rows=4, grid_order="x"))
    out = jax.block_until_ready(run(x, w, gamma, beta))
    assert jnp.allclose(out, ref, atol=1e-4, rtol=1e-4), "A2 mismatch"

    # (A3) default fast path: bf16 MXU operands + bf16 intermediate storage
    run = jax.jit(conv_bn_2d)
    out = jax.block_until_ready(run(x, w, gamma, beta))
    assert jnp.allclose(out, ref, atol=6e-2, rtol=6e-2), "A3 (bf16) mismatch"

    # ---------- Case B: W not a multiple of 8, odd channels, affine ----------
    Nb, Cinb, Hb, Wb, Coutb = 1, 3, 12, 12, 5
    xb = jax.random.normal(k3, (Nb, Cinb, Hb, Wb), dtype=jnp.float32)
    wb = jax.random.normal(k4, (Coutb, Cinb, K, K), dtype=jnp.float32) / (Cinb * K * K) ** 0.5
    gb = 1.0 + 0.1 * jax.random.normal(kg, (Coutb,), dtype=jnp.float32)
    bb = 0.1 * jax.random.normal(kb, (Coutb,), dtype=jnp.float32)
    refb = _reference(xb, wb, gb, bb)
    run = jax.jit(functools.partial(conv_bn_2d, matmul_dtype=jnp.float32,
                                    band_rows=6, grid_order="weights"))
    outb = jax.block_until_ready(run(xb, wb, gb, bb))
    assert outb.shape == (Nb, Coutb, Hb, Wb)
    assert jnp.allclose(outb, refb, atol=1e-4, rtol=1e-4), "B mismatch"

    # ------- Case C: multiple Cout tiles + x-resident guarded band DMA -------
    Nc, Cinc, Hc, Wc, Coutc = 1, 4, 8, 8, 256
    xc = jax.random.normal(k5, (Nc, Cinc, Hc, Wc), dtype=jnp.float32)
    wc = jax.random.normal(k6, (Coutc, Cinc, K, K), dtype=jnp.float32) / (Cinc * K * K) ** 0.5
    gc = jnp.ones((Coutc,), jnp.float32)
    bc = jnp.zeros((Coutc,), jnp.float32)
    refc = _reference(xc, wc, gc, bc)
    run = jax.jit(functools.partial(conv_bn_2d, matmul_dtype=jnp.float32,
                                    band_rows=4, grid_order="x", cout_tile=128))
    outc = jax.block_until_ready(run(xc, wc, gc, bc))
    assert jnp.allclose(outc, refc, atol=1e-4, rtol=1e-4), "C mismatch"

    print("KERNEL_OK")
</pallas_src>

<mosaic_0001>
module attributes {stable_mosaic.version = 11 : i64} {
  func.func @_conv_stats_kernel(%arg0: i32, %arg1: i32, %arg2: i32, %arg3: memref<2x18x18x128xf32, #tpu.memory_space<any>>, %arg4: memref<3x3x128x128xf32, #tpu.memory_space<vmem>>, %arg5: memref<1x16x16x128xf32, #tpu.memory_space<vmem>>, %arg6: memref<1x1x2x128xf32, #tpu.memory_space<vmem>>, %arg7: memref<18x18x128xf32, #tpu.memory_space<vmem>>, %arg8: memref<1x!tpu.dma_semaphore, #tpu.memory_space<semaphore_mem>>) attributes {dimension_semantics = [#tpu.dimension_semantics<parallel>, #tpu.dimension_semantics<parallel>, #tpu.dimension_semantics<arbitrary>], iteration_bounds = array<i64: 1, 2, 1>, scalar_prefetch = 0 : i64, scratch_operands = 2 : i64, tpu.core_type = #tpu.core_type<tc>, window_params = [{}, {transform_indices = @transform_1, window_bounds = array<i64: 3, 3, 128, 128>}, {transform_indices = @transform_2, window_bounds = array<i64: 1, 16, 16, 128>}, {transform_indices = @transform_3, window_bounds = array<i64: 1, 1, 2, 128>}]} {
    %c16_i32 = arith.constant 16 : i32
    %0 = arith.muli %arg2, %c16_i32 : i32
    %c0_i32 = arith.constant 0 : i32
    %c0_i32_0 = arith.constant 0 : i32
    %c0_i32_1 = arith.constant 0 : i32
    %1 = tpu.memref_slice %arg3[%arg1, %0, %c0_i32_0, %c0_i32_1] : memref<2x18x18x128xf32, #tpu.memory_space<any>> -> memref<1x18x18x128xf32, #tpu.memory_space<any>>
    %2 = tpu.memref_squeeze %1 : memref<1x18x18x128xf32, #tpu.memory_space<any>> -> memref<18x18x128xf32, #tpu.memory_space<any>>
    %3 = tpu.memref_slice %arg8[%c0_i32] : memref<1x!tpu.dma_semaphore, #tpu.memory_space<semaphore_mem>> -> memref<1x!tpu.dma_semaphore, #tpu.memory_space<semaphore_mem>>
    %4 = tpu.memref_squeeze %3 : memref<1x!tpu.dma_semaphore, #tpu.memory_space<semaphore_mem>> -> memref<!tpu.dma_semaphore, #tpu.memory_space<semaphore_mem>>
    tpu.enqueue_dma source(%2 : memref<18x18x128xf32, #tpu.memory_space<any>>) target(%arg7 : memref<18x18x128xf32, #tpu.memory_space<vmem>>) target_semaphore(%4 : memref<!tpu.dma_semaphore, #tpu.memory_space<semaphore_mem>>)
    %c0_i32_2 = arith.constant 0 : i32
    %c0_i32_3 = arith.constant 0 : i32
    %c0_i32_4 = arith.constant 0 : i32
    %5 = tpu.memref_slice %arg3[%arg1, %0, %c0_i32_3, %c0_i32_4] : memref<2x18x18x128xf32, #tpu.memory_space<any>> -> memref<1x18x18x128xf32, #tpu.memory_space<any>>
    %6 = tpu.memref_squeeze %5 : memref<1x18x18x128xf32, #tpu.memory_space<any>> -> memref<18x18x128xf32, #tpu.memory_space<any>>
    %7 = tpu.memref_slice %arg8[%c0_i32_2] : memref<1x!tpu.dma_semaphore, #tpu.memory_space<semaphore_mem>> -> memref<1x!tpu.dma_semaphore, #tpu.memory_space<semaphore_mem>>
    %8 = tpu.memref_squeeze %7 : memref<1x!tpu.dma_semaphore, #tpu.memory_space<semaphore_mem>> -> memref<!tpu.dma_semaphore, #tpu.memory_space<semaphore_mem>>
    tpu.wait_dma2 semaphore(%8 : memref<!tpu.dma_semaphore, #tpu.memory_space<semaphore_mem>>) src(%6 : memref<18x18x128xf32, #tpu.memory_space<any>>) dst(%arg7 : memref<18x18x128xf32, #tpu.memory_space<vmem>>)
    %cst = arith.constant 0.000000e+00 : f32
    %9 = vector.broadcast %cst : f32 to vector<256x128xf32>
    %c0 = arith.constant 0 : index
    %c0_5 = arith.constant 0 : index
    %c0_6 = arith.constant 0 : index
    %10 = vector.load %arg7[%c0, %c0_5, %c0_6] : memref<18x18x128xf32, #tpu.memory_space<vmem>>, vector<18x16x128xf32>
    %11 = vector.shape_cast %10 : vector<18x16x128xf32> to vector<288x128xf32>
    %12 = vector.extract_strided_slice %11 {offsets = [0, 0], sizes = [256, 128], strides = [1, 1]} : vector<288x128xf32> to vector<256x128xf32>
    %c0_7 = arith.constant 0 : index
    %c0_8 = arith.constant 0 : index
    %c0_9 = arith.constant 0 : index
    %c0_10 = arith.constant 0 : index
    %13 = vector.load %arg4[%c0_7, %c0_8, %c0_9, %c0_10] : memref<3x3x128x128xf32, #tpu.memory_space<vmem>>, vector<1x1x128x128xf32>
    %14 = vector.shape_cast %13 : vector<1x1x128x128xf32> to vector<128x128xf32>
    %cst_11 = arith.constant dense<0.000000e+00> : vector<256x128xf32>
    %15 = tpu.matmul %12, %14, %cst_11 {dimension_numbers = #tpu.dot_dimension_numbers<[1], [0], [0], [1], [0, 0, 1, 1], [], []>} : vector<256x128xf32>, vector<128x128xf32>, vector<256x128xf32> -> vector<256x128xf32>
    %16 = arith.addf %9, %15 : vector<256x128xf32>
    %17 = vector.extract_strided_slice %11 {offsets = [16, 0], sizes = [256, 128], strides = [1, 1]} : vector<288x128xf32> to vector<256x128xf32>
    %c1 = arith.constant 1 : index
    %c0_12 = arith.constant 0 : index
    %c0_13 = arith.constant 0 : index
    %c0_14 = arith.constant 0 : index
    %18 = vector.load %arg4[%c1, %c0_12, %c0_13, %c0_14] : memref<3x3x128x128xf32, #tpu.memory_space<vmem>>, vector<1x1x128x128xf32>
    %19 = vector.shape_cast %18 : vector<1x1x128x128xf32> to vector<128x128xf32>
    %cst_15 = arith.constant dense<0.000000e+00> : vector<256x128xf32>
    %20 = tpu.matmul %17, %19, %cst_15 {dimension_numbers = #tpu.dot_dimension_numbers<[1], [0], [0], [1], [0, 0, 1, 1], [], []>} : vector<256x128xf32>, vector<128x128xf32>, vector<256x128xf32> -> vector<256x128xf32>
    %21 = arith.addf %16, %20 : vector<256x128xf32>
    %22 = vector.extract_strided_slice %11 {offsets = [32, 0], sizes = [256, 128], strides = [1, 1]} : vector<288x128xf32> to vector<256x128xf32>
    %c2 = arith.constant 2 : index
    %c0_16 = arith.constant 0 : index
    %c0_17 = arith.constant 0 : index
    %c0_18 = arith.constant 0 : index
    %23 = vector.load %arg4[%c2, %c0_16, %c0_17, %c0_18] : memref<3x3x128x128xf32, #tpu.memory_space<vmem>>, vector<1x1x128x128xf32>
    %24 = vector.shape_cast %23 : vector<1x1x128x128xf32> to vector<128x128xf32>
    %cst_19 = arith.constant dense<0.000000e+00> : vector<256x128xf32>
    %25 = tpu.matmul %22, %24, %cst_19 {dimension_numbers = #tpu.dot_dimension_numbers<[1], [0], [0], [1], [0, 0, 1, 1], [], []>} : vector<256x128xf32>, vector<128x128xf32>, vector<256x128xf32> -> vector<256x128xf32>
    %26 = arith.addf %21, %25 : vector<256x128xf32>
    %c0_20 = arith.constant 0 : index
    %c1_21 = arith.constant 1 : index
    %c0_22 = arith.constant 0 : index
    %27 = vector.load %arg7[%c0_20, %c1_21, %c0_22] : memref<18x18x128xf32, #tpu.memory_space<vmem>>, vector<18x16x128xf32>
    %28 = vector.shape_cast %27 : vector<18x16x128xf32> to vector<288x128xf32>
    %29 = vector.extract_strided_slice %28 {offsets = [0, 0], sizes = [256, 128], strides = [1, 1]} : vector<288x128xf32> to vector<256x128xf32>
    %c0_23 = arith.constant 0 : index
    %c1_24 = arith.constant 1 : index
    %c0_25 = arith.constant 0 : index
    %c0_26 = arith.constant 0 : index
    %30 = vector.load %arg4[%c0_23, %c1_24, %c0_25, %c0_26] : memref<3x3x128x128xf32, #tpu.memory_space<vmem>>, vector<1x1x128x128xf32>
    %31 = vector.shape_cast %30 : vector<1x1x128x128xf32> to vector<128x128xf32>
    %cst_27 = arith.constant dense<0.000000e+00> : vector<256x128xf32>
    %32 = tpu.matmul %29, %31, %cst_27 {dimension_numbers = #tpu.dot_dimension_numbers<[1], [0], [0], [1], [0, 0, 1, 1], [], []>} : vector<256x128xf32>, vector<128x128xf32>, vector<256x128xf32> -> vector<256x128xf32>
    %33 = arith.addf %26, %32 : vector<256x128xf32>
    %34 = vector.extract_strided_slice %28 {offsets = [16, 0], sizes = [256, 128], strides = [1, 1]} : vector<288x128xf32> to vector<256x128xf32>
    %c1_28 = arith.constant 1 : index
    %c1_29 = arith.constant 1 : index
    %c0_30 = arith.constant 0 : index
    %c0_31 = arith.constant 0 : index
    %35 = vector.load %arg4[%c1_28, %c1_29, %c0_30, %c0_31] : memref<3x3x128x128xf32, #tpu.memory_space<vmem>>, vector<1x1x128x128xf32>
    %36 = vector.shape_cast %35 : vector<1x1x128x128xf32> to vector<128x128xf32>
    %cst_32 = arith.constant dense<0.000000e+00> : vector<256x128xf32>
    %37 = tpu.matmul %34, %36, %cst_32 {dimension_numbers = #tpu.dot_dimension_numbers<[1], [0], [0], [1], [0, 0, 1, 1], [], []>} : vector<256x128xf32>, vector<128x128xf32>, vector<256x128xf32> -> vector<256x128xf32>
    %38 = arith.addf %33, %37 : vector<256x128xf32>
    %39 = vector.extract_strided_slice %28 {offsets = [32, 0], sizes = [256, 128], strides = [1, 1]} : vector<288x128xf32> to vector<256x128xf32>
    %c2_33 = arith.constant 2 : index
    %c1_34 = arith.constant 1 : index
    %c0_35 = arith.constant 0 : index
    %c0_36 = arith.constant 0 : index
    %40 = vector.load %arg4[%c2_33, %c1_34, %c0_35, %c0_36] : memref<3x3x128x128xf32, #tpu.memory_space<vmem>>, vector<1x1x128x128xf32>
    %41 = vector.shape_cast %40 : vector<1x1x128x128xf32> to vector<128x128xf32>
    %cst_37 = arith.constant dense<0.000000e+00> : vector<256x128xf32>
    %42 = tpu.matmul %39, %41, %cst_37 {dimension_numbers = #tpu.dot_dimension_numbers<[1], [0], [0], [1], [0, 0, 1, 1], [], []>} : vector<256x128xf32>, vector<128x128xf32>, vector<256x128xf32> -> vector<256x128xf32>
    %43 = arith.addf %38, %42 : vector<256x128xf32>
    %c0_38 = arith.constant 0 : index
    %c2_39 = arith.constant 2 : index
    %c0_40 = arith.constant 0 : index
    %44 = vector.load %arg7[%c0_38, %c2_39, %c0_40] : memref<18x18x128xf32, #tpu.memory_space<vmem>>, vector<18x16x128xf32>
    %45 = vector.shape_cast %44 : vector<18x16x128xf32> to vector<288x128xf32>
    %46 = vector.extract_strided_slice %45 {offsets = [0, 0], sizes = [256, 128], strides = [1, 1]} : vector<288x128xf32> to vector<256x128xf32>
    %c0_41 = arith.constant 0 : index
    %c2_42 = arith.constant 2 : index
    %c0_43 = arith.constant 0 : index
    %c0_44 = arith.constant 0 : index
    %47 = vector.load %arg4[%c0_41, %c2_42, %c0_43, %c0_44] : memref<3x3x128x128xf32, #tpu.memory_space<vmem>>, vector<1x1x128x128xf32>
    %48 = vector.shape_cast %47 : vector<1x1x128x128xf32> to vector<128x128xf32>
    %cst_45 = arith.constant dense<0.000000e+00> : vector<256x128xf32>
    %49 = tpu.matmul %46, %48, %cst_45 {dimension_numbers = #tpu.dot_dimension_numbers<[1], [0], [0], [1], [0, 0, 1, 1], [], []>} : vector<256x128xf32>, vector<128x128xf32>, vector<256x128xf32> -> vector<256x128xf32>
    %50 = arith.addf %43, %49 : vector<256x128xf32>
    %51 = vector.extract_strided_slice %45 {offsets = [16, 0], sizes = [256, 128], strides = [1, 1]} : vector<288x128xf32> to vector<256x128xf32>
    %c1_46 = arith.constant 1 : index
    %c2_47 = arith.constant 2 : index
    %c0_48 = arith.constant 0 : index
    %c0_49 = arith.constant 0 : index
    %52 = vector.load %arg4[%c1_46, %c2_47, %c0_48, %c0_49] : memref<3x3x128x128xf32, #tpu.memory_space<vmem>>, vector<1x1x128x128xf32>
    %53 = vector.shape_cast %52 : vector<1x1x128x128xf32> to vector<128x128xf32>
    %cst_50 = arith.constant dense<0.000000e+00> : vector<256x128xf32>
    %54 = tpu.matmul %51, %53, %cst_50 {dimension_numbers = #tpu.dot_dimension_numbers<[1], [0], [0], [1], [0, 0, 1, 1], [], []>} : vector<256x128xf32>, vector<128x128xf32>, vector<256x128xf32> -> vector<256x128xf32>
    %55 = arith.addf %50, %54 : vector<256x128xf32>
    %56 = vector.extract_strided_slice %45 {offsets = [32, 0], sizes = [256, 128], strides = [1, 1]} : vector<288x128xf32> to vector<256x128xf32>
    %c2_51 = arith.constant 2 : index
    %c2_52 = arith.constant 2 : index
    %c0_53 = arith.constant 0 : index
    %c0_54 = arith.constant 0 : index
    %57 = vector.load %arg4[%c2_51, %c2_52, %c0_53, %c0_54] : memref<3x3x128x128xf32, #tpu.memory_space<vmem>>, vector<1x1x128x128xf32>
    %58 = vector.shape_cast %57 : vector<1x1x128x128xf32> to vector<128x128xf32>
    %cst_55 = arith.constant dense<0.000000e+00> : vector<256x128xf32>
    %59 = tpu.matmul %56, %58, %cst_55 {dimension_numbers = #tpu.dot_dimension_numbers<[1], [0], [0], [1], [0, 0, 1, 1], [], []>} : vector<256x128xf32>, vector<128x128xf32>, vector<256x128xf32> -> vector<256x128xf32>
    %60 = arith.addf %55, %59 : vector<256x128xf32>
    %61 = vector.shape_cast %60 : vector<256x128xf32> to vector<16x16x128xf32>
    %c0_56 = arith.constant 0 : index
    %c0_57 = arith.constant 0 : index
    %c0_58 = arith.constant 0 : index
    %c0_59 = arith.constant 0 : index
    %62 = vector.load %arg5[%c0_56, %c0_57, %c0_58, %c0_59] : memref<1x16x16x128xf32, #tpu.memory_space<vmem>>, vector<1x16x16x128xf32>
    %63 = vector.shape_cast %62 : vector<1x16x16x128xf32> to vector<16x16x128xf32>
    %64 = vector.shape_cast %61 : vector<16x16x128xf32> to vector<1x16x16x128xf32>
    tpu.vector_store %arg5[%c0_56, %c0_57, %c0_58, %c0_59], %64 {strides = array<i32>} : memref<1x16x16x128xf32, #tpu.memory_space<vmem>>, vector<1x16x16x128xf32>,
    %cst_60 = arith.constant dense<0.000000e+00> : vector<128xf32>
    %65 = vector.multi_reduction <add>, %61, %cst_60 [0, 1] : vector<16x16x128xf32> to vector<128xf32>
    %cst_61 = arith.constant 3.906250e-03 : f32
    %66 = vector.broadcast %cst_61 : f32 to vector<128xf32>
    %67 = arith.mulf %65, %66 : vector<128xf32>
    %68 = vector.shape_cast %67 : vector<128xf32> to vector<1x1x128xf32>
    %69 = vector.broadcast %68 : vector<1x1x128xf32> to vector<16x16x128xf32>
    %70 = arith.subf %61, %69 : vector<16x16x128xf32>
    %71 = arith.mulf %70, %70 : vector<16x16x128xf32>
    %cst_62 = arith.constant dense<0.000000e+00> : vector<128xf32>
    %72 = vector.multi_reduction <add>, %71, %cst_62 [0, 1] : vector<16x16x128xf32> to vector<128xf32>
    %73 = vector.shape_cast %65 : vector<128xf32> to vector<1x128xf32>
    %c0_63 = arith.constant 0 : index
    %c0_64 = arith.constant 0 : index
    %c0_65 = arith.constant 0 : index
    %c0_66 = arith.constant 0 : index
    %74 = vector.load %arg6[%c0_63, %c0_64, %c0_65, %c0_66] : memref<1x1x2x128xf32, #tpu.memory_space<vmem>>, vector<1x1x1x128xf32>
    %75 = vector.shape_cast %74 : vector<1x1x1x128xf32> to vector<1x128xf32>
    %76 = vector.shape_cast %73 : vector<1x128xf32> to vector<1x1x1x128xf32>
    tpu.vector_store %arg6[%c0_63, %c0_64, %c0_65, %c0_66], %76 {strides = array<i32>} : memref<1x1x2x128xf32, #tpu.memory_space<vmem>>, vector<1x1x1x128xf32>,
    %77 = vector.shape_cast %72 : vector<128xf32> to vector<1x128xf32>
    %c0_67 = arith.constant 0 : index
    %c0_68 = arith.constant 0 : index
    %c1_69 = arith.constant 1 : index
    %c0_70 = arith.constant 0 : index
    %78 = vector.load %arg6[%c0_67, %c0_68, %c1_69, %c0_70] : memref<1x1x2x128xf32, #tpu.memory_space<vmem>>, vector<1x1x1x128xf32>
    %79 = vector.shape_cast %78 : vector<1x1x1x128xf32> to vector<1x128xf32>
    %80 = vector.shape_cast %77 : vector<1x128xf32> to vector<1x1x1x128xf32>
    tpu.vector_store %arg6[%c0_67, %c0_68, %c1_69, %c0_70], %80 {strides = array<i32>} : memref<1x1x2x128xf32, #tpu.memory_space<vmem>>, vector<1x1x1x128xf32>,
    return
  }
  func.func @transform_1(%arg0: i32, %arg1: i32, %arg2: i32) -> (i32, i32, i32, i32) {
    %c0_i32 = arith.constant 0 : i32
    %c0_i32_0 = arith.constant 0 : i32
    %c0_i32_1 = arith.constant 0 : i32
    %c0_i32_2 = arith.constant 0 : i32
    return %c0_i32, %c0_i32_0, %c0_i32_1, %arg0 : i32, i32, i32, i32
  }
  func.func @transform_2(%arg0: i32, %arg1: i32, %arg2: i32) -> (i32, i32, i32, i32) {
    %c0_i32 = arith.constant 0 : i32
    %c0_i32_0 = arith.constant 0 : i32
    return %arg1, %arg2, %c0_i32, %arg0 : i32, i32, i32, i32
  }
  func.func @transform_3(%arg0: i32, %arg1: i32, %arg2: i32) -> (i32, i32, i32, i32) {
    %c0_i32 = arith.constant 0 : i32
    %c0_i32_0 = arith.constant 0 : i32
    return %arg1, %arg2, %c0_i32, %arg0 : i32, i32, i32, i32
  }
}

module attributes {stable_mosaic.version = 11 : i64} {
  func.func @_bn_apply_kernel(%arg0: i32, %arg1: i32, %arg2: memref<512x128xf32, #tpu.memory_space<vmem>>, %arg3: memref<1x128xf32, #tpu.memory_space<vmem>>, %arg4: memref<1x128xf32, #tpu.memory_space<vmem>>, %arg5: memref<512x128xf32, #tpu.memory_space<vmem>>) attributes {dimension_semantics = [#tpu.dimension_semantics<parallel>, #tpu.dimension_semantics<parallel>], iteration_bounds = array<i64: 1, 1>, scalar_prefetch = 0 : i64, scratch_operands = 0 : i64, tpu.core_type = #tpu.core_type<tc>, window_params = [{transform_indices = @transform_0, window_bounds = array<i64: 512, 128>}, {transform_indices = @transform_1, window_bounds = array<i64: 1, 128>}, {transform_indices = @transform_2, window_bounds = array<i64: 1, 128>}, {transform_indices = @transform_3, window_bounds = array<i64: 512, 128>}]} {
    %c0 = arith.constant 0 : index
    %c0_0 = arith.constant 0 : index
    %0 = vector.load %arg2[%c0, %c0_0] : memref<512x128xf32, #tpu.memory_space<vmem>>, vector<512x128xf32>
    %c0_1 = arith.constant 0 : index
    %c0_2 = arith.constant 0 : index
    %1 = vector.load %arg3[%c0_1, %c0_2] : memref<1x128xf32, #tpu.memory_space<vmem>>, vector<1x128xf32>
    %2 = vector.broadcast %1 : vector<1x128xf32> to vector<512x128xf32>
    %3 = arith.mulf %0, %2 : vector<512x128xf32>
    %c0_3 = arith.constant 0 : index
    %c0_4 = arith.constant 0 : index
    %4 = vector.load %arg4[%c0_3, %c0_4] : memref<1x128xf32, #tpu.memory_space<vmem>>, vector<1x128xf32>
    %5 = vector.broadcast %4 : vector<1x128xf32> to vector<512x128xf32>
    %6 = arith.addf %3, %5 : vector<512x128xf32>
    %c0_5 = arith.constant 0 : index
    %c0_6 = arith.constant 0 : index
    %7 = vector.load %arg5[%c0_5, %c0_6] : memref<512x128xf32, #tpu.memory_space<vmem>>, vector<512x128xf32>
    tpu.vector_store %arg5[%c0_5, %c0_6], %6 {strides = array<i32>} : memref<512x128xf32, #tpu.memory_space<vmem>>, vector<512x128xf32>,
    return
  }
  func.func @transform_0(%arg0: i32, %arg1: i32) -> (i32, i32) {
    %c0_i32 = arith.constant 0 : i32
    return %arg0, %arg1 : i32, i32
  }
  func.func @transform_1(%arg0: i32, %arg1: i32) -> (i32, i32) {
    %c0_i32 = arith.constant 0 : i32
    %c0_i32_0 = arith.constant 0 : i32
    return %c0_i32, %arg1 : i32, i32
  }
  func.func @transform_2(%arg0: i32, %arg1: i32) -> (i32, i32) {
    %c0_i32 = arith.constant 0 : i32
    %c0_i32_0 = arith.constant 0 : i32
    return %c0_i32, %arg1 : i32, i32
  }
  func.func @transform_3(%arg0: i32, %arg1: i32) -> (i32, i32) {
    %c0_i32 = arith.constant 0 : i32
    return %arg0, %arg1 : i32, i32
  }
}

</mosaic_0001>

<llo_original>
// kernel: conv_bn_2d.3
$region0: #{conv_bn_2d.3}
  #allocation0 [shape = 'u32[]', space=smem, size = 0x4, offset = 0x4, fixed_abs, tag = 'smem constant byte address 0x4 - core index']
  #allocation1 [shape = 'u32[144,128]{1,0:T(1,128)}', space=vmem, size = 0x12000, scoped, tag = 'internal scratch']
  %s0 = inlined_call_operand.vmem [shape: f32[512,128], index: 0, kind: input, shape index: {}, may-alias: {0,3}]
  %s1 = inlined_call_operand.vmem [shape: f32[1,128], index: 1, kind: input, shape index: {}]
  %s2 = inlined_call_operand.vmem [shape: f32[1,128], index: 2, kind: input, shape index: {}]
  %s3 = inlined_call_operand.vmem [shape: f32[512,128], index: 3, kind: output, shape index: {}, may-alias: {0,3}]
  %s4 = sld [smem:[#allocation0]]
  $region22: #{conv_bn_2d.3} parent=0
    _
  %s6 = ssub.s32 1, %s4
  %s7 = scalar_select 0, %s6, %s4
  // Predicated region
  $region2: #{conv_bn_2d.3} parent=0 // pred_check
    _
  $region3: #{conv_bn_2d.3} parent=0 // pred_check_branch
    %9 = sbr.rel (0) target = $region5
  $region4: #{conv_bn_2d.3} parent=0 // pred_region
    _
  $region5: #{conv_bn_2d.3} parent=0 // pred_fallthru
    _
  // Predicated region
  $region6: #{conv_bn_2d.3} parent=0 // pred_check
    _
  $region7: #{conv_bn_2d.3} parent=0 // pred_check_branch
    %11 = sbr.rel (0) target = $region9
  $region8: #{conv_bn_2d.3} parent=0 // pred_region
    _
  $region9: #{conv_bn_2d.3} parent=0 // pred_fallthru
    _
  // Predicated region
  $region10: #{conv_bn_2d.3} parent=0 // pred_check
    _
  $region11: #{conv_bn_2d.3} parent=0 // pred_check_branch
    %13 = sbr.rel (0) target = $region13
  $region12: #{conv_bn_2d.3} parent=0 // pred_region
    _
  $region13: #{conv_bn_2d.3} parent=0 // pred_fallthru
    _
  %v14 = vld [vmem:[%s0] sm:$0xff]
  %v15 = vld [vmem:[%s0 + $0x8] sm:$0xff]
  %v16 = vld [vmem:[%s0 + $0x10] sm:$0xff]
  %v17 = vld [vmem:[%s0 + $0x18] sm:$0xff]
  %v18 = vld [vmem:[%s0 + $0x20] sm:$0xff]
  %v19 = vld [vmem:[%s0 + $0x28] sm:$0xff]
  %v20 = vld [vmem:[%s0 + $0x30] sm:$0xff]
  %v21 = vld [vmem:[%s0 + $0x38] sm:$0xff]
  %v22 = vld [vmem:[%s0 + $0x40] sm:$0xff]
  %v23 = vld [vmem:[%s0 + $0x48] sm:$0xff]
  %v24 = vld [vmem:[%s0 + $0x50] sm:$0xff]
  %v25 = vld [vmem:[%s0 + $0x58] sm:$0xff]
  %v26 = vld [vmem:[%s0 + $0x60] sm:$0xff]
  %v27 = vld [vmem:[%s0 + $0x68] sm:$0xff]
  %v28 = vld [vmem:[%s0 + $0x70] sm:$0xff]
  %v29 = vld [vmem:[%s0 + $0x78] sm:$0xff]
  %v30 = vld [vmem:[%s0 + $0x80] sm:$0xff]
  %v31 = vld [vmem:[%s0 + $0x88] sm:$0xff]
  %v32 = vld [vmem:[%s0 + $0x90] sm:$0xff]
  %v33 = vld [vmem:[%s0 + $0x98] sm:$0xff]
  %v34 = vld [vmem:[%s0 + $0xa0] sm:$0xff]
  %v35 = vld [vmem:[%s0 + $0xa8] sm:$0xff]
  %v36 = vld [vmem:[%s0 + $0xb0] sm:$0xff]
  %v37 = vld [vmem:[%s0 + $0xb8] sm:$0xff]
  %v38 = vld [vmem:[%s0 + $0xc0] sm:$0xff]
  %v39 = vld [vmem:[%s0 + $0xc8] sm:$0xff]
  %v40 = vld [vmem:[%s0 + $0xd0] sm:$0xff]
  %v41 = vld [vmem:[%s0 + $0xd8] sm:$0xff]
  %v42 = vld [vmem:[%s0 + $0xe0] sm:$0xff]
  %v43 = vld [vmem:[%s0 + $0xe8] sm:$0xff]
  %v44 = vld [vmem:[%s0 + $0xf0] sm:$0xff]
  %v45 = vld [vmem:[%s0 + $0xf8] sm:$0xff]
  %v46 = vld [vmem:[%s0 + $0x100] sm:$0xff]
  %v47 = vld [vmem:[%s0 + $0x108] sm:$0xff]
  %v48 = vld [vmem:[%s0 + $0x110] sm:$0xff]
  %v49 = vld [vmem:[%s0 + $0x118] sm:$0xff]
  %v50 = vld [vmem:[%s0 + $0x120] sm:$0xff]
  %v51 = vld [vmem:[%s0 + $0x128] sm:$0xff]
  %v52 = vld [vmem:[%s0 + $0x130] sm:$0xff]
  %v53 = vld [vmem:[%s0 + $0x138] sm:$0xff]
  %v54 = vld [vmem:[%s0 + $0x140] sm:$0xff]
  %v55 = vld [vmem:[%s0 + $0x148] sm:$0xff]
  %v56 = vld [vmem:[%s0 + $0x150] sm:$0xff]
  %v57 = vld [vmem:[%s0 + $0x158] sm:$0xff]
  %v58 = vld [vmem:[%s0 + $0x160] sm:$0xff]
  %v59 = vld [vmem:[%s0 + $0x168] sm:$0xff]
  %v60 = vld [vmem:[%s0 + $0x170] sm:$0xff]
  %v61 = vld [vmem:[%s0 + $0x178] sm:$0xff]
  %v62 = vld [vmem:[%s0 + $0x180] sm:$0xff]
  %v63 = vld [vmem:[%s0 + $0x188] sm:$0xff]
  %v64 = vld [vmem:[%s0 + $0x190] sm:$0xff]
  %v65 = vld [vmem:[%s0 + $0x198] sm:$0xff]
  %v66 = vld [vmem:[%s0 + $0x1a0] sm:$0xff]
  %v67 = vld [vmem:[%s0 + $0x1a8] sm:$0xff]
  %v68 = vld [vmem:[%s0 + $0x1b0] sm:$0xff]
  %v69 = vld [vmem:[%s0 + $0x1b8] sm:$0xff]
  %v70 = vld [vmem:[%s0 + $0x1c0] sm:$0xff]
  %v71 = vld [vmem:[%s0 + $0x1c8] sm:$0xff]
  %v72 = vld [vmem:[%s0 + $0x1d0] sm:$0xff]
  %v73 = vld [vmem:[%s0 + $0x1d8] sm:$0xff]
  %v74 = vld [vmem:[%s0 + $0x1e0] sm:$0xff]
  %v75 = vld [vmem:[%s0 + $0x1e8] sm:$0xff]
  %v76 = vld [vmem:[%s0 + $0x1f0] sm:$0xff]
  %v77 = vld [vmem:[%s0 + $0x1f8] sm:$0xff]
  %v78 = vld [vmem:[%s1] sm:$0x1]
  %v80 = vlaneseq
  %v81 = vshrl.u32 %v80, 7
  %v82 = vsub.s32 0, %v81
  %v83 = vrot.slane %v78, %v82
  %v85 = vmul.f32 %v14, %v83
  %v86 = vmul.f32 %v15, %v83
  %v87 = vmul.f32 %v16, %v83
  %v88 = vmul.f32 %v17, %v83
  %v89 = vmul.f32 %v18, %v83
  %v90 = vmul.f32 %v19, %v83
  %v91 = vmul.f32 %v20, %v83
  %v92 = vmul.f32 %v21, %v83
  %v93 = vmul.f32 %v22, %v83
  %v94 = vmul.f32 %v23, %v83
  %v95 = vmul.f32 %v24, %v83
  %v96 = vmul.f32 %v25, %v83
  %v97 = vmul.f32 %v26, %v83
  %v98 = vmul.f32 %v27, %v83
  %v99 = vmul.f32 %v28, %v83
  %v100 = vmul.f32 %v29, %v83
  %v101 = vmul.f32 %v30, %v83
  %v102 = vmul.f32 %v31, %v83
  %v103 = vmul.f32 %v32, %v83
  %v104 = vmul.f32 %v33, %v83
  %v105 = vmul.f32 %v34, %v83
  %v106 = vmul.f32 %v35, %v83
  %v107 = vmul.f32 %v36, %v83
  %v108 = vmul.f32 %v37, %v83
  %v109 = vmul.f32 %v38, %v83
  %v110 = vmul.f32 %v39, %v83
  %v111 = vmul.f32 %v40, %v83
  %v112 = vmul.f32 %v41, %v83
  %v113 = vmul.f32 %v42, %v83
  %v114 = vmul.f32 %v43, %v83
  %v115 = vmul.f32 %v44, %v83
  %v116 = vmul.f32 %v45, %v83
  %v117 = vmul.f32 %v46, %v83
  %v118 = vmul.f32 %v47, %v83
  %v119 = vmul.f32 %v48, %v83
  %v120 = vmul.f32 %v49, %v83
  %v121 = vmul.f32 %v50, %v83
  %v122 = vmul.f32 %v51, %v83
  %v123 = vmul.f32 %v52, %v83
  %v124 = vmul.f32 %v53, %v83
  %v125 = vmul.f32 %v54, %v83
  %v126 = vmul.f32 %v55, %v83
  %v127 = vmul.f32 %v56, %v83
  %v128 = vmul.f32 %v57, %v83
  %v129 = vmul.f32 %v58, %v83
  %v130 = vmul.f32 %v59, %v83
  %v131 = vmul.f32 %v60, %v83
  %v132 = vmul.f32 %v61, %v83
  %v133 = vmul.f32 %v62, %v83
  %v134 = vmul.f32 %v63, %v83
  %v135 = vmul.f32 %v64, %v83
  %v136 = vmul.f32 %v65, %v83
  %v137 = vmul.f32 %v66, %v83
  %v138 = vmul.f32 %v67, %v83
  %v139 = vmul.f32 %v68, %v83
  %v140 = vmul.f32 %v69, %v83
  %v141 = vmul.f32 %v70, %v83
  %v142 = vmul.f32 %v71, %v83
  %v143 = vmul.f32 %v72, %v83
  %v144 = vmul.f32 %v73, %v83
  %v145 = vmul.f32 %v74, %v83
  %v146 = vmul.f32 %v75, %v83
  %v147 = vmul.f32 %v76, %v83
  %v148 = vmul.f32 %v77, %v83
  %v149 = vld [vmem:[%s2] sm:$0x1]
  %v151 = vlaneseq
  %v152 = vshrl.u32 %v151, 7
  %v153 = vsub.s32 0, %v152
  %v154 = vrot.slane %v149, %v153
  %v156 = vadd.f32 %v85, %v154
  %v157 = vadd.f32 %v86, %v154
  %v158 = vadd.f32 %v87, %v154
  %v159 = vadd.f32 %v88, %v154
  %v160 = vadd.f32 %v89, %v154
  %v161 = vadd.f32 %v90, %v154
  %v162 = vadd.f32 %v91, %v154
  %v163 = vadd.f32 %v92, %v154
  %v164 = vadd.f32 %v93, %v154
  %v165 = vadd.f32 %v94, %v154
  %v166 = vadd.f32 %v95, %v154
  %v167 = vadd.f32 %v96, %v154
  %v168 = vadd.f32 %v97, %v154
  %v169 = vadd.f32 %v98, %v154
  %v170 = vadd.f32 %v99, %v154
  %v171 = vadd.f32 %v100, %v154
  %v172 = vadd.f32 %v101, %v154
  %v173 = vadd.f32 %v102, %v154
  %v174 = vadd.f32 %v103, %v154
  %v175 = vadd.f32 %v104, %v154
  %v176 = vadd.f32 %v105, %v154
  %v177 = vadd.f32 %v106, %v154
  %v178 = vadd.f32 %v107, %v154
  %v179 = vadd.f32 %v108, %v154
  %v180 = vadd.f32 %v109, %v154
  %v181 = vadd.f32 %v110, %v154
  %v182 = vadd.f32 %v111, %v154
  %v183 = vadd.f32 %v112, %v154
  %v184 = vadd.f32 %v113, %v154
  %v185 = vadd.f32 %v114, %v154
  %v186 = vadd.f32 %v115, %v154
  %v187 = vadd.f32 %v116, %v154
  %v188 = vadd.f32 %v117, %v154
  %v189 = vadd.f32 %v118, %v154
  %v190 = vadd.f32 %v119, %v154
  %v191 = vadd.f32 %v120, %v154
  %v192 = vadd.f32 %v121, %v154
  %v193 = vadd.f32 %v122, %v154
  %v194 = vadd.f32 %v123, %v154
  %v195 = vadd.f32 %v124, %v154
  %v196 = vadd.f32 %v125, %v154
  %v197 = vadd.f32 %v126, %v154
  %v198 = vadd.f32 %v127, %v154
  %v199 = vadd.f32 %v128, %v154
  %v200 = vadd.f32 %v129, %v154
  %v201 = vadd.f32 %v130, %v154
  %v202 = vadd.f32 %v131, %v154
  %v203 = vadd.f32 %v132, %v154
  %v204 = vadd.f32 %v133, %v154
  %v205 = vadd.f32 %v134, %v154
  %v206 = vadd.f32 %v135, %v154
  %v207 = vadd.f32 %v136, %v154
  %v208 = vadd.f32 %v137, %v154
  %v209 = vadd.f32 %v138, %v154
  %v210 = vadd.f32 %v139, %v154
  %v211 = vadd.f32 %v140, %v154
  %v212 = vadd.f32 %v141, %v154
  %v213 = vadd.f32 %v142, %v154
  %v214 = vadd.f32 %v143, %v154
  %v215 = vadd.f32 %v144, %v154
  %v216 = vadd.f32 %v145, %v154
  %v217 = vadd.f32 %v146, %v154
  %v218 = vadd.f32 %v147, %v154
  %v219 = vadd.f32 %v148, %v154
  %220 = vst [vmem:[%s3] sm:$0xff] %v156
  %221 = vst [vmem:[%s3 + $0x8] sm:$0xff] %v157
  %222 = vst [vmem:[%s3 + $0x10] sm:$0xff] %v158
  %223 = vst [vmem:[%s3 + $0x18] sm:$0xff] %v159
  %224 = vst [vmem:[%s3 + $0x20] sm:$0xff] %v160
  %225 = vst [vmem:[%s3 + $0x28] sm:$0xff] %v161
  %226 = vst [vmem:[%s3 + $0x30] sm:$0xff] %v162
  %227 = vst [vmem:[%s3 + $0x38] sm:$0xff] %v163
  %228 = vst [vmem:[%s3 + $0x40] sm:$0xff] %v164
  %229 = vst [vmem:[%s3 + $0x48] sm:$0xff] %v165
  %230 = vst [vmem:[%s3 + $0x50] sm:$0xff] %v166
  %231 = vst [vmem:[%s3 + $0x58] sm:$0xff] %v167
  %232 = vst [vmem:[%s3 + $0x60] sm:$0xff] %v168
  %233 = vst [vmem:[%s3 + $0x68] sm:$0xff] %v169
  %234 = vst [vmem:[%s3 + $0x70] sm:$0xff] %v170
  %235 = vst [vmem:[%s3 + $0x78] sm:$0xff] %v171
  %236 = vst [vmem:[%s3 + $0x80] sm:$0xff] %v172
  %237 = vst [vmem:[%s3 + $0x88] sm:$0xff] %v173
  %238 = vst [vmem:[%s3 + $0x90] sm:$0xff] %v174
  %239 = vst [vmem:[%s3 + $0x98] sm:$0xff] %v175
  %240 = vst [vmem:[%s3 + $0xa0] sm:$0xff] %v176
  %241 = vst [vmem:[%s3 + $0xa8] sm:$0xff] %v177
  %242 = vst [vmem:[%s3 + $0xb0] sm:$0xff] %v178
  %243 = vst [vmem:[%s3 + $0xb8] sm:$0xff] %v179
  %244 = vst [vmem:[%s3 + $0xc0] sm:$0xff] %v180
  %245 = vst [vmem:[%s3 + $0xc8] sm:$0xff] %v181
  %246 = vst [vmem:[%s3 + $0xd0] sm:$0xff] %v182
  %247 = vst [vmem:[%s3 + $0xd8] sm:$0xff] %v183
  %248 = vst [vmem:[%s3 + $0xe0] sm:$0xff] %v184
  %249 = vst [vmem:[%s3 + $0xe8] sm:$0xff] %v185
  %250 = vst [vmem:[%s3 + $0xf0] sm:$0xff] %v186
  %251 = vst [vmem:[%s3 + $0xf8] sm:$0xff] %v187
  %252 = vst [vmem:[%s3 + $0x100] sm:$0xff] %v188
  %253 = vst [vmem:[%s3 + $0x108] sm:$0xff] %v189
  %254 = vst [vmem:[%s3 + $0x110] sm:$0xff] %v190
  %255 = vst [vmem:[%s3 + $0x118] sm:$0xff] %v191
  %256 = vst [vmem:[%s3 + $0x120] sm:$0xff] %v192
  %257 = vst [vmem:[%s3 + $0x128] sm:$0xff] %v193
  %258 = vst [vmem:[%s3 + $0x130] sm:$0xff] %v194
  %259 = vst [vmem:[%s3 + $0x138] sm:$0xff] %v195
  %260 = vst [vmem:[%s3 + $0x140] sm:$0xff] %v196
  %261 = vst [vmem:[%s3 + $0x148] sm:$0xff] %v197
  %262 = vst [vmem:[%s3 + $0x150] sm:$0xff] %v198
  %263 = vst [vmem:[%s3 + $0x158] sm:$0xff] %v199
  %264 = vst [vmem:[%s3 + $0x160] sm:$0xff] %v200
  %265 = vst [vmem:[%s3 + $0x168] sm:$0xff] %v201
  %266 = vst [vmem:[%s3 + $0x170] sm:$0xff] %v202
  %267 = vst [vmem:[%s3 + $0x178] sm:$0xff] %v203
  %268 = vst [vmem:[%s3 + $0x180] sm:$0xff] %v204
  %269 = vst [vmem:[%s3 + $0x188] sm:$0xff] %v205
  %270 = vst [vmem:[%s3 + $0x190] sm:$0xff] %v206
  %271 = vst [vmem:[%s3 + $0x198] sm:$0xff] %v207
  %272 = vst [vmem:[%s3 + $0x1a0] sm:$0xff] %v208
  %273 = vst [vmem:[%s3 + $0x1a8] sm:$0xff] %v209
  %274 = vst [vmem:[%s3 + $0x1b0] sm:$0xff] %v210
  %275 = vst [vmem:[%s3 + $0x1b8] sm:$0xff] %v211
  %276 = vst [vmem:[%s3 + $0x1c0] sm:$0xff] %v212
  %277 = vst [vmem:[%s3 + $0x1c8] sm:$0xff] %v213
  %278 = vst [vmem:[%s3 + $0x1d0] sm:$0xff] %v214
  %279 = vst [vmem:[%s3 + $0x1d8] sm:$0xff] %v215
  %280 = vst [vmem:[%s3 + $0x1e0] sm:$0xff] %v216
  %281 = vst [vmem:[%s3 + $0x1e8] sm:$0xff] %v217
  %282 = vst [vmem:[%s3 + $0x1f0] sm:$0xff] %v218
  %283 = vst [vmem:[%s3 + $0x1f8] sm:$0xff] %v219
  // Predicated region
  $region14: #{conv_bn_2d.3} parent=0 // pred_check
    _
  $region15: #{conv_bn_2d.3} parent=0 // pred_check_branch
    %285 = sbr.rel (0) target = $region17
  $region16: #{conv_bn_2d.3} parent=0 // pred_region
    _
  $region17: #{conv_bn_2d.3} parent=0 // pred_fallthru
    _
  // Predicated region
  $region18: #{conv_bn_2d.3} parent=0 // pred_check
    _
  $region19: #{conv_bn_2d.3} parent=0 // pred_check_branch
    %287 = sbr.rel (0) target = $region21
  $region20: #{conv_bn_2d.3} parent=0 // pred_region
    _
  $region21: #{conv_bn_2d.3} parent=0 // pred_fallthru
    _

// kernel: conv_bn_2d.2
$region0: #{conv_bn_2d.2}
  #allocation0 [shape = 'u32[]', space=smem, size = 0x4, offset = 0x4, fixed_abs, tag = 'smem constant byte address 0x4 - core index']
  #allocation1 [shape = 'u32[144,128]{1,0:T(1,128)}', space=vmem, size = 0x12000, scoped, tag = 'internal scratch']
  #allocation2 [shape = 'f32[18,18,128]{2,1,0:T(8,128)}', space=vmem, size = 0x36000, scoped, tag = 'scratch operand']
  #allocation3 [shape = 's32[1]{0}', space=sflag, size = 0x4, scoped, tag = 'scratch operand']
  #allocation4 [shape = 's32[]', space=sflag, size = 0x4, offset = 0, fixed_abs, tag = 'sflag constant byte address 0x0 - dummy sync flag']
  %s0 = inlined_call_operand.vmem [shape: f32[2,18,18,128], index: 0, kind: input, shape index: {}]
  %s1 = inlined_call_operand.vmem [shape: f32[3,3,128,128], index: 1, kind: input, shape index: {}]
  %s2 = inlined_call_operand.vmem [shape: f32[2,16,16,128], index: 2, kind: output, shape index: {0}]
  %s3 = inlined_call_operand.vmem [shape: f32[2,1,2,128], index: 3, kind: output, shape index: {1}]
  %4 = xla_tuple %s2, %s3
  %s5 = sld [smem:[#allocation0]]
  $region82: #{conv_bn_2d.2} parent=0
    _
  %s7 = ssub.s32 1, %s5
  %s8 = scalar_select 0, %s7, %s5
  loop: start=0, step=1, limit=4
  $region2: #{conv_bn_2d.2} parent=0 // loop_pre_header
    _
  $region3: #{conv_bn_2d.2} parent=0 // loop_header
    %s10 = sphi 0, %s14
    %p11 = scmp.ge.s32.totalorder %s10, 4
    %s17 = sphi 0, %s36
    %s18 = sphi 0, %s32
    %s19 = sphi 0, %s28
    %s20 = sphi 0, %s17
    %s21 = sphi 0, %s18
    %s22 = sphi 0, %s19
    %s23 = sphi 0, %s20
    %s24 = sphi 0, %s21
    %s25 = sphi 0, %s22
    %s39 = sphi 0, %s41
    %s42 = sphi 0, %s39
    %s43 = sphi 0, %s42
    %s59 = sphi 0, %s43
    %s69 = sphi 0, %s71
    %s72 = sphi 0, %s69
    %s73 = sphi 0, %s72
    %s89 = sphi 0, %s73
    %s99 = sphi 0, %s101
    %s102 = sphi 0, %s99
    %s103 = sphi 0, %s102
    %s119 = sphi 0, %s103
  $region4: #{conv_bn_2d.2} parent=0 // loop_header_branch
    %13 = sbr.rel (%p11) target = $region8
  $region5: #{conv_bn_2d.2} parent=0 // loop_body
    %s15 = ssub.s32 %s10, 1
    %s16 = ssub.s32 %s10, 2
    %s26 = sadd.s32 1, %s19
    %p27 = scmp.ge.s32.totalorder %s26, 1
    %s28 = scalar_select %p27, 0, %s26
    %s29 = sadd.s32 1, %s18
    %s30 = scalar_select %p27, %s29, %s18
    %p31 = scmp.ge.s32.totalorder %s30, 2
    %s32 = scalar_select %p31, 0, %s30
    %s33 = sadd.s32 1, %s17
    %s34 = scalar_select %p31, %s33, %s17
    %p35 = scmp.ge.s32.totalorder %s34, 1
    %s36 = scalar_select %p35, 0, %s34
    %s37 = ssub.s32 %s17, %s36
    %p38 = scmp.eq.s32.totalorder %s37, 0
    %s40 = sadd.s32 %s39, 1
    %s41 = scalar_select %p38, %s39, %s40
    %p44 = pneg %p38
    %p45 = scmp.eq.s32.totalorder %s10, 1
    %p46 = por %p44, %p45
    %p47 = scmp.ne.s32.totalorder %s39, %s42
    %p48 = scmp.eq.s32.totalorder %s10, 0
    %p49 = por %p47, %p48
    %p50 = scmp.ne.s32.totalorder %s39, %s42
    %p51 = scmp.eq.s32.totalorder %s15, 1
    %p52 = por %p50, %p51
    %p53 = scmp.ne.s32.totalorder %s42, %s43
    %p54 = scmp.eq.s32.totalorder %s15, 0
    %p55 = por %p53, %p54
    %p56 = scmp.ne.s32.totalorder %s42, %s43
    %p57 = scmp.eq.s32.totalorder %s16, 1
    %p58 = por %p56, %p57
    %p60 = scmp.ne.s32.totalorder %s43, %s59
    %p61 = scmp.eq.s32.totalorder %s16, 0
    %p62 = por %p60, %p61
    %s63 = ssub.s32 %s18, %s32
    %s64 = ssub.s32 %s19, %s28
    %s65 = sor.u32 %s63, %s64
    %s66 = ssub.s32 %s17, %s36
    %s67 = sor.u32 %s65, %s66
    %p68 = scmp.eq.s32.totalorder %s67, 0
    %s70 = sadd.s32 %s69, 1
    %s71 = scalar_select %p68, %s69, %s70
    %p74 = pneg %p68
    %p75 = scmp.eq.s32.totalorder %s10, 1
    %p76 = por %p74, %p75
    %p77 = scmp.ne.s32.totalorder %s69, %s72
    %p78 = scmp.eq.s32.totalorder %s10, 0
    %p79 = por %p77, %p78
    %p80 = scmp.ne.s32.totalorder %s69, %s72
    %p81 = scmp.eq.s32.totalorder %s15, 1
    %p82 = por %p80, %p81
    %p83 = scmp.ne.s32.totalorder %s72, %s73
    %p84 = scmp.eq.s32.totalorder %s15, 0
    %p85 = por %p83, %p84
    %p86 = scmp.ne.s32.totalorder %s72, %s73
    %p87 = scmp.eq.s32.totalorder %s16, 1
    %p88 = por %p86, %p87
    %p90 = scmp.ne.s32.totalorder %s73, %s89
    %p91 = scmp.eq.s32.totalorder %s16, 0
    %p92 = por %p90, %p91
    %s93 = ssub.s32 %s18, %s32
    %s94 = ssub.s32 %s19, %s28
    %s95 = sor.u32 %s93, %s94
    %s96 = ssub.s32 %s17, %s36
    %s97 = sor.u32 %s95, %s96
    %p98 = scmp.eq.s32.totalorder %s97, 0
    %s100 = sadd.s32 %s99, 1
    %s101 = scalar_select %p98, %s99, %s100
    %p104 = pneg %p98
    %p105 = scmp.eq.s32.totalorder %s10, 1
    %p106 = por %p104, %p105
    %p107 = scmp.ne.s32.totalorder %s99, %s102
    %p108 = scmp.eq.s32.totalorder %s10, 0
    %p109 = por %p107, %p108
    %p110 = scmp.ne.s32.totalorder %s99, %s102
    %p111 = scmp.eq.s32.totalorder %s15, 1
    %p112 = por %p110, %p111
    %p113 = scmp.ne.s32.totalorder %s102, %s103
    %p114 = scmp.eq.s32.totalorder %s15, 0
    %p115 = por %p113, %p114
    %p116 = scmp.ne.s32.totalorder %s102, %s103
    %p117 = scmp.eq.s32.totalorder %s16, 1
    %p118 = por %p116, %p117
    %p120 = scmp.ne.s32.totalorder %s103, %s119
    %p121 = scmp.eq.s32.totalorder %s16, 0
    %p122 = por %p120, %p121
    %p123 = scmp.le.s32.totalorder 1, %s10
    %p124 = scmp.lt.s32.totalorder %s10, 3
    %p125 = pnand %p123, %p124
    %p126 = pneg %p125
    // Predicated region
    $region9: #{conv_bn_2d.2} parent=5 // pred_check
      _
    $region10: #{conv_bn_2d.2} parent=5 // pred_check_branch
      %128 = sbr.rel (%p125) target = $region12
    $region11: #{conv_bn_2d.2} parent=5 // pred_region
      %s129 = ssub.s32 %s10, 1
      // Predicated region
      $region13: #{conv_bn_2d.2} parent=11 // pred_check
        %p130 = pneg %p55
      $region14: #{conv_bn_2d.2} parent=11 // pred_check_branch
        %132 = sbr.rel (%p130) target = $region16
      $region15: #{conv_bn_2d.2} parent=11 // pred_region
        %p133 = scmp.lt.s32.totalorder %s20, 0
        %s134 = scalar_select %p133, %s20, 0
        %s135 = smul.addr %s134, 8
        %s136 = scalar_lea.vmem %s1, %s135
      $region16: #{conv_bn_2d.2} parent=11 // pred_fallthru
        _
    $region12: #{conv_bn_2d.2} parent=5 // pred_fallthru
      _
    %p137 = scmp.lt.s32.totalorder %s10, 2
    // Predicated region
    $region17: #{conv_bn_2d.2} parent=5 // pred_check
      %p138 = pneg %p137
    $region18: #{conv_bn_2d.2} parent=5 // pred_check_branch
      %140 = sbr.rel (%p138) target = $region20
    $region19: #{conv_bn_2d.2} parent=5 // pred_region
      _
    $region20: #{conv_bn_2d.2} parent=5 // pred_fallthru
      _
    %p141 = scmp.le.s32.totalorder 1, %s10
    %p142 = scmp.lt.s32.totalorder %s10, 3
    %p143 = pnand %p141, %p142
    %p144 = pneg %p143
    // Predicated region
    $region21: #{conv_bn_2d.2} parent=5 // pred_check
      _
    $region22: #{conv_bn_2d.2} parent=5 // pred_check_branch
      %146 = sbr.rel (%p143) target = $region24
    $region23: #{conv_bn_2d.2} parent=5 // pred_region
      %s147 = ssub.s32 %s10, 1
      %p148 = scmp.lt.s32.totalorder %s20, 0
      %s149 = scalar_select %p148, %s20, 0
      %s150 = smul.addr %s149, 8
      %s151 = scalar_lea.vmem %s1, %s150
      %p152 = pneg %p55
      %p153 = pneg %p52
      %p154 = pneg %p85
      %p155 = pneg %p82
      %s156 = smul.u32 16, %s22
      %p157 = scmp.lt.s32.totalorder %s21, 1
      %s158 = scalar_select %p157, %s21, 1
      %p159 = scmp.lt.s32.totalorder %s156, 15
      %s160 = scalar_select %p159, %s156, 15
      %p161 = scmp.lt.s32.totalorder %s20, 0
      %s162 = scalar_select %p161, %s20, 0
      %s163 = smul.addr %s160, 2
      %s164 = sadd.s32 %s162, %s163
      %s165 = smul.addr %s158, 32
      %s166 = sadd.s32 %s164, %s165
      %s167 = smul.addr %s166, 8
      %s168 = scalar_lea.vmem %s2, %s167
      %p169 = pneg %p115
      %p170 = pneg %p112
      %p171 = scmp.lt.s32.totalorder %s21, 1
      %s172 = scalar_select %p171, %s21, 1
      %p173 = scmp.lt.s32.totalorder %s22, 0
      %s174 = scalar_select %p173, %s22, 0
      %p175 = scmp.lt.s32.totalorder %s20, 0
      %s176 = scalar_select %p175, %s20, 0
      %s177 = sadd.s32 %s176, %s174
      %s178 = sadd.s32 %s177, %s172
      %s179 = smul.addr %s178, 2
      %s180 = scalar_lea.vmem %s3, %s179
      %p181 = scmp.lt.s32.totalorder %s20, 0
      %s182 = scalar_select %p181, %s20, 0
      %s183 = smul.addr %s182, 8
      %s184 = scalar_lea.vmem %s1, %s183
      %s185 = smul.u32 16, %s22
      %p186 = scmp.lt.s32.totalorder %s21, 1
      %s187 = scalar_select %p186, %s21, 1
      %p188 = scmp.lt.s32.totalorder %s185, 15
      %s189 = scalar_select %p188, %s185, 15
      %p190 = scmp.lt.s32.totalorder %s20, 0
      %s191 = scalar_select %p190, %s20, 0
      %s192 = smul.addr %s189, 2
      %s193 = sadd.s32 %s191, %s192
      %s194 = smul.addr %s187, 32
      %s195 = sadd.s32 %s193, %s194
      %s196 = smul.addr %s195, 8
      %s197 = scalar_lea.vmem %s2, %s196
      %s198 = smul.u32 16, %s22
      %p199 = scmp.lt.s32.totalorder %s21, 1
      %s200 = scalar_select %p199, %s21, 1
      %p201 = scmp.lt.s32.totalorder %s22, 0
      %s202 = scalar_select %p201, %s22, 0
      %p203 = scmp.lt.s32.totalorder %s20, 0
      %s204 = scalar_select %p203, %s20, 0
      %s205 = sadd.s32 %s204, %s202
      %s206 = sadd.s32 %s205, %s200
      %s207 = smul.addr %s206, 2
      %s208 = scalar_lea.vmem %s3, %s207
      %s209 = smul.u32 %s22, 16
      %s210 = smul.u32 %s209, 24
      %s211 = smul.u32 %s21, 432
      %s212 = sadd.s32 %s210, %s211
      %s213 = scalar_lea.vmem %s0, %s212
      %p215 = scmp.lt.u32.totalorder 18, 8
      %p216 = pneg %p215
      // Predicated region
      $region25: #{conv_bn_2d.2} parent=23 // pred_check
        _
      $region26: #{conv_bn_2d.2} parent=23 // pred_check_branch
        %218 = sbr.rel (%p215) target = $region28
      $region27: #{conv_bn_2d.2} parent=23 // pred_region
        %s267 = sand.u32 18, 7
        %p268 = scmp.eq.s32.totalorder %s267, 0
        %p269 = pneg %p268
        // Predicated region
        $region40: #{conv_bn_2d.2} parent=27 // pred_check
          _
        $region41: #{conv_bn_2d.2} parent=27 // pred_check_branch
          %271 = sbr.rel (%p268) target = $region43
        $region42: #{conv_bn_2d.2} parent=27 // pred_region
          %s272 = sand.u32 18, 7
          %s273 = ssub.s32 18, %s272
          %s274 = scalar_lea.vmem %s213, %s273
          %s275 = ssub.s32 18, %s272
          %s276 = scalar_lea.vmem [#allocation2], %s275
          loop: start=0, step=1, limit=1
          $region44: #{conv_bn_2d.2} parent=42 // loop_pre_header
            _
          $region45: #{conv_bn_2d.2} parent=42 // loop_header
            %s278 = sphi 0, %s282
            %p279 = scmp.ge.s32.totalorder %s278, 1
            %s283 = sphi %s213, %s213
            %s284 = sphi [#allocation2], [#allocation2]
          $region46: #{conv_bn_2d.2} parent=42 // loop_header_branch
            %281 = sbr.rel (%p279) target = $region50
          $region47: #{conv_bn_2d.2} parent=42 // loop_body
            %v285 = vld [vmem:[%s283] sm:$0xff]
            %286 = vst [vmem:[%s284] sm:$0xff] %v285
            %v287 = vld [vmem:[%s283 + $0x8] sm:$0xff]
            %288 = vst [vmem:[%s284 + $0x8] sm:$0xff] %v287
            %v289 = vld [vmem:[%s283 + $0x18] sm:$0xff]
            %290 = vst [vmem:[%s284 + $0x18] sm:$0xff] %v289
            %v291 = vld [vmem:[%s283 + $0x20] sm:$0xff]
            %292 = vst [vmem:[%s284 + $0x20] sm:$0xff] %v291
            %v293 = vld [vmem:[%s283 + $0x30] sm:$0xff]
            %294 = vst [vmem:[%s284 + $0x30] sm:$0xff] %v293
            %v295 = vld [vmem:[%s283 + $0x38] sm:$0xff]
            %296 = vst [vmem:[%s284 + $0x38] sm:$0xff] %v295
            %v297 = vld [vmem:[%s283 + $0x48] sm:$0xff]
            %298 = vst [vmem:[%s284 + $0x48] sm:$0xff] %v297
            %v299 = vld [vmem:[%s283 + $0x50] sm:$0xff]
            %300 = vst [vmem:[%s284 + $0x50] sm:$0xff] %v299
            %v301 = vld [vmem:[%s283 + $0x60] sm:$0xff]
            %302 = vst [vmem:[%s284 + $0x60] sm:$0xff] %v301
            %v303 = vld [vmem:[%s283 + $0x68] sm:$0xff]
            %304 = vst [vmem:[%s284 + $0x68] sm:$0xff] %v303
            %v305 = vld [vmem:[%s283 + $0x78] sm:$0xff]
            %306 = vst [vmem:[%s284 + $0x78] sm:$0xff] %v305
            %v307 = vld [vmem:[%s283 + $0x80] sm:$0xff]
            %308 = vst [vmem:[%s284 + $0x80] sm:$0xff] %v307
            %v309 = vld [vmem:[%s283 + $0x90] sm:$0xff]
            %310 = vst [vmem:[%s284 + $0x90] sm:$0xff] %v309
            %v311 = vld [vmem:[%s283 + $0x98] sm:$0xff]
            %312 = vst [vmem:[%s284 + $0x98] sm:$0xff] %v311
            %v313 = vld [vmem:[%s283 + $0xa8] sm:$0xff]
            %314 = vst [vmem:[%s284 + $0xa8] sm:$0xff] %v313
            %v315 = vld [vmem:[%s283 + $0xb0] sm:$0xff]
            %316 = vst [vmem:[%s284 + $0xb0] sm:$0xff] %v315
            %v317 = vld [vmem:[%s283 + $0xc0] sm:$0xff]
            %318 = vst [vmem:[%s284 + $0xc0] sm:$0xff] %v317
            %v319 = vld [vmem:[%s283 + $0xc8] sm:$0xff]
            %320 = vst [vmem:[%s284 + $0xc8] sm:$0xff] %v319
            %v321 = vld [vmem:[%s283 + $0xd8] sm:$0xff]
            %322 = vst [vmem:[%s284 + $0xd8] sm:$0xff] %v321
            %v323 = vld [vmem:[%s283 + $0xe0] sm:$0xff]
            %324 = vst [vmem:[%s284 + $0xe0] sm:$0xff] %v323
            %v325 = vld [vmem:[%s283 + $0xf0] sm:$0xff]
            %326 = vst [vmem:[%s284 + $0xf0] sm:$0xff] %v325
            %v327 = vld [vmem:[%s283 + $0xf8] sm:$0xff]
            %328 = vst [vmem:[%s284 + $0xf8] sm:$0xff] %v327
            %v329 = vld [vmem:[%s283 + $0x108] sm:$0xff]
            %330 = vst [vmem:[%s284 + $0x108] sm:$0xff] %v329
            %v331 = vld [vmem:[%s283 + $0x110] sm:$0xff]
            %332 = vst [vmem:[%s284 + $0x110] sm:$0xff] %v331
            %v333 = vld [vmem:[%s283 + $0x120] sm:$0xff]
            %334 = vst [vmem:[%s284 + $0x120] sm:$0xff] %v333
            %v335 = vld [vmem:[%s283 + $0x128] sm:$0xff]
            %336 = vst [vmem:[%s284 + $0x128] sm:$0xff] %v335
            %v337 = vld [vmem:[%s283 + $0x138] sm:$0xff]
            %338 = vst [vmem:[%s284 + $0x138] sm:$0xff] %v337
            %v339 = vld [vmem:[%s283 + $0x140] sm:$0xff]
            %340 = vst [vmem:[%s284 + $0x140] sm:$0xff] %v339
            %v341 = vld [vmem:[%s283 + $0x150] sm:$0xff]
            %342 = vst [vmem:[%s284 + $0x150] sm:$0xff] %v341
            %v343 = vld [vmem:[%s283 + $0x158] sm:$0xff]
            %344 = vst [vmem:[%s284 + $0x158] sm:$0xff] %v343
            %v345 = vld [vmem:[%s283 + $0x168] sm:$0xff]
            %346 = vst [vmem:[%s284 + $0x168] sm:$0xff] %v345
            %v347 = vld [vmem:[%s283 + $0x170] sm:$0xff]
            %348 = vst [vmem:[%s284 + $0x170] sm:$0xff] %v347
            %v349 = vld [vmem:[%s283 + $0x180] sm:$0xff]
            %350 = vst [vmem:[%s284 + $0x180] sm:$0xff] %v349
            %v351 = vld [vmem:[%s283 + $0x188] sm:$0xff]
            %352 = vst [vmem:[%s284 + $0x188] sm:$0xff] %v351
            %v353 = vld [vmem:[%s283 + $0x198] sm:$0xff]
            %354 = vst [vmem:[%s284 + $0x198] sm:$0xff] %v353
            %v355 = vld [vmem:[%s283 + $0x1a0] sm:$0xff]
            %356 = vst [vmem:[%s284 + $0x1a0] sm:$0xff] %v355
          $region48: #{conv_bn_2d.2} parent=42 // loop_footer
            %s282 = sadd.s32 1, %s278
          $region49: #{conv_bn_2d.2} parent=42 // loop_footer_branch
            %277 = sbr.rel target = $region45
          $region50: #{conv_bn_2d.2} parent=42 // loop_exit
            _
          %s357 = sshllo.u32 0, %s272
          loop: start=0, step=1, limit=1
          $region51: #{conv_bn_2d.2} parent=42 // loop_pre_header
            _
          $region52: #{conv_bn_2d.2} parent=42 // loop_header
            %s359 = sphi 0, %s363
            %p360 = scmp.ge.s32.totalorder %s359, 1
            %s364 = sphi %s274, %s274
            %s365 = sphi %s276, %s276
          $region53: #{conv_bn_2d.2} parent=42 // loop_header_branch
            %362 = sbr.rel (%p360) target = $region57
          $region54: #{conv_bn_2d.2} parent=42 // loop_body
            %v366 = vld [vmem:[%s364] sm:%s357]
            %367 = vst [vmem:[%s365] sm:%s357] %v366
            %v368 = vld [vmem:[%s364 + $0x18] sm:%s357]
            %369 = vst [vmem:[%s365 + $0x18] sm:%s357] %v368
            %v370 = vld [vmem:[%s364 + $0x30] sm:%s357]
            %371 = vst [vmem:[%s365 + $0x30] sm:%s357] %v370
            %v372 = vld [vmem:[%s364 + $0x48] sm:%s357]
            %373 = vst [vmem:[%s365 + $0x48] sm:%s357] %v372
            %v374 = vld [vmem:[%s364 + $0x60] sm:%s357]
            %375 = vst [vmem:[%s365 + $0x60] sm:%s357] %v374
            %v376 = vld [vmem:[%s364 + $0x78] sm:%s357]
            %377 = vst [vmem:[%s365 + $0x78] sm:%s357] %v376
            %v378 = vld [vmem:[%s364 + $0x90] sm:%s357]
            %379 = vst [vmem:[%s365 + $0x90] sm:%s357] %v378
            %v380 = vld [vmem:[%s364 + $0xa8] sm:%s357]
            %381 = vst [vmem:[%s365 + $0xa8] sm:%s357] %v380
            %v382 = vld [vmem:[%s364 + $0xc0] sm:%s357]
            %383 = vst [vmem:[%s365 + $0xc0] sm:%s357] %v382
            %v384 = vld [vmem:[%s364 + $0xd8] sm:%s357]
            %385 = vst [vmem:[%s365 + $0xd8] sm:%s357] %v384
            %v386 = vld [vmem:[%s364 + $0xf0] sm:%s357]
            %387 = vst [vmem:[%s365 + $0xf0] sm:%s357] %v386
            %v388 = vld [vmem:[%s364 + $0x108] sm:%s357]
            %389 = vst [vmem:[%s365 + $0x108] sm:%s357] %v388
            %v390 = vld [vmem:[%s364 + $0x120] sm:%s357]
            %391 = vst [vmem:[%s365 + $0x120] sm:%s357] %v390
            %v392 = vld [vmem:[%s364 + $0x138] sm:%s357]
            %393 = vst [vmem:[%s365 + $0x138] sm:%s357] %v392
            %v394 = vld [vmem:[%s364 + $0x150] sm:%s357]
            %395 = vst [vmem:[%s365 + $0x150] sm:%s357] %v394
            %v396 = vld [vmem:[%s364 + $0x168] sm:%s357]
            %397 = vst [vmem:[%s365 + $0x168] sm:%s357] %v396
            %v398 = vld [vmem:[%s364 + $0x180] sm:%s357]
            %399 = vst [vmem:[%s365 + $0x180] sm:%s357] %v398
            %v400 = vld [vmem:[%s364 + $0x198] sm:%s357]
            %401 = vst [vmem:[%s365 + $0x198] sm:%s357] %v400
          $region55: #{conv_bn_2d.2} parent=42 // loop_footer
            %s363 = sadd.s32 1, %s359
          $region56: #{conv_bn_2d.2} parent=42 // loop_footer_branch
            %358 = sbr.rel target = $region52
          $region57: #{conv_bn_2d.2} parent=42 // loop_exit
            _
        $region43: #{conv_bn_2d.2} parent=27 // pred_fallthru
          _
      $region28: #{conv_bn_2d.2} parent=23 // pred_fallthru
        _
      // Predicated region
      $region29: #{conv_bn_2d.2} parent=23 // pred_check
        %p219 = pneg %p215
      $region30: #{conv_bn_2d.2} parent=23 // pred_check_branch
        %221 = sbr.rel (%p219) target = $region32
      $region31: #{conv_bn_2d.2} parent=23 // pred_region
        %s222 = sshllo.u32 0, 18
        loop: start=0, step=1, limit=1
        $region33: #{conv_bn_2d.2} parent=31 // loop_pre_header
          _
        $region34: #{conv_bn_2d.2} parent=31 // loop_header
          %s224 = sphi 0, %s228
          %p225 = scmp.ge.s32.totalorder %s224, 1
          %s229 = sphi %s213, %s213
          %s230 = sphi [#allocation2], [#allocation2]
        $region35: #{conv_bn_2d.2} parent=31 // loop_header_branch
          %227 = sbr.rel (%p225) target = $region39
        $region36: #{conv_bn_2d.2} parent=31 // loop_body
          %v231 = vld [vmem:[%s229] sm:%s222]
          %232 = vst [vmem:[%s230] sm:%s222] %v231
          %v233 = vld [vmem:[%s229 + $0x18] sm:%s222]
          %234 = vst [vmem:[%s230 + $0x18] sm:%s222] %v233
          %v235 = vld [vmem:[%s229 + $0x30] sm:%s222]
          %236 = vst [vmem:[%s230 + $0x30] sm:%s222] %v235
          %v237 = vld [vmem:[%s229 + $0x48] sm:%s222]
          %238 = vst [vmem:[%s230 + $0x48] sm:%s222] %v237
          %v239 = vld [vmem:[%s229 + $0x60] sm:%s222]
          %240 = vst [vmem:[%s230 + $0x60] sm:%s222] %v239
          %v241 = vld [vmem:[%s229 + $0x78] sm:%s222]
          %242 = vst [vmem:[%s230 + $0x78] sm:%s222] %v241
          %v243 = vld [vmem:[%s229 + $0x90] sm:%s222]
          %244 = vst [vmem:[%s230 + $0x90] sm:%s222] %v243
          %v245 = vld [vmem:[%s229 + $0xa8] sm:%s222]
          %246 = vst [vmem:[%s230 + $0xa8] sm:%s222] %v245
          %v247 = vld [vmem:[%s229 + $0xc0] sm:%s222]
          %248 = vst [vmem:[%s230 + $0xc0] sm:%s222] %v247
          %v249 = vld [vmem:[%s229 + $0xd8] sm:%s222]
          %250 = vst [vmem:[%s230 + $0xd8] sm:%s222] %v249
          %v251 = vld [vmem:[%s229 + $0xf0] sm:%s222]
          %252 = vst [vmem:[%s230 + $0xf0] sm:%s222] %v251
          %v253 = vld [vmem:[%s229 + $0x108] sm:%s222]
          %254 = vst [vmem:[%s230 + $0x108] sm:%s222] %v253
          %v255 = vld [vmem:[%s229 + $0x120] sm:%s222]
          %256 = vst [vmem:[%s230 + $0x120] sm:%s222] %v255
          %v257 = vld [vmem:[%s229 + $0x138] sm:%s222]
          %258 = vst [vmem:[%s230 + $0x138] sm:%s222] %v257
          %v259 = vld [vmem:[%s229 + $0x150] sm:%s222]
          %260 = vst [vmem:[%s230 + $0x150] sm:%s222] %v259
          %v261 = vld [vmem:[%s229 + $0x168] sm:%s222]
          %262 = vst [vmem:[%s230 + $0x168] sm:%s222] %v261
          %v263 = vld [vmem:[%s229 + $0x180] sm:%s222]
          %264 = vst [vmem:[%s230 + $0x180] sm:%s222] %v263
          %v265 = vld [vmem:[%s229 + $0x198] sm:%s222]
          %266 = vst [vmem:[%s230 + $0x198] sm:%s222] %v265
        $region37: #{conv_bn_2d.2} parent=31 // loop_footer
          %s228 = sadd.s32 1, %s224
        $region38: #{conv_bn_2d.2} parent=31 // loop_footer_branch
          %223 = sbr.rel target = $region34
        $region39: #{conv_bn_2d.2} parent=31 // loop_exit
          _
      $region32: #{conv_bn_2d.2} parent=23 // pred_fallthru
        _
      // Predicated region
      $region58: #{conv_bn_2d.2} parent=23 // pred_check
        _
      $region59: #{conv_bn_2d.2} parent=23 // pred_check_branch
        %404 = sbr.rel (0) target = $region61
      $region60: #{conv_bn_2d.2} parent=23 // pred_region
        %405 = vsyncadd [#allocation3], 5184
      $region61: #{conv_bn_2d.2} parent=23 // pred_fallthru
        _
      %s406 = smul.u32 18, 18
      %s407 = smul.u32 %s406, 1
      %s408 = sshll.u32 %s407, 4
      %409 = dma.done [#allocation3], %s408
      %v410 = vld [vmem:[#allocation2] sm:$0xff]
      %v411 = vld [vmem:[#allocation2 + $0x8] sm:$0xff]
      %v412 = vld [vmem:[#allocation2 + $0x18] sm:$0xff]
      %v413 = vld [vmem:[#allocation2 + $0x20] sm:$0xff]
      %v414 = vld [vmem:[#allocation2 + $0x30] sm:$0xff]
      %v415 = vld [vmem:[#allocation2 + $0x38] sm:$0xff]
      %v416 = vld [vmem:[#allocation2 + $0x48] sm:$0xff]
      %v417 = vld [vmem:[#allocation2 + $0x50] sm:$0xff]
      %v418 = vld [vmem:[#allocation2 + $0x60] sm:$0xff]
      %v419 = vld [vmem:[#allocation2 + $0x68] sm:$0xff]
      %v420 = vld [vmem:[#allocation2 + $0x78] sm:$0xff]
      %v421 = vld [vmem:[#allocation2 + $0x80] sm:$0xff]
      %v422 = vld [vmem:[#allocation2 + $0x90] sm:$0xff]
      %v423 = vld [vmem:[#allocation2 + $0x98] sm:$0xff]
      %v424 = vld [vmem:[#allocation2 + $0xa8] sm:$0xff]
      %v425 = vld [vmem:[#allocation2 + $0xb0] sm:$0xff]
      %v426 = vld [vmem:[#allocation2 + $0xc0] sm:$0xff]
      %v427 = vld [vmem:[#allocation2 + $0xc8] sm:$0xff]
      %v428 = vld [vmem:[#allocation2 + $0xd8] sm:$0xff]
      %v429 = vld [vmem:[#allocation2 + $0xe0] sm:$0xff]
      %v430 = vld [vmem:[#allocation2 + $0xf0] sm:$0xff]
      %v431 = vld [vmem:[#allocation2 + $0xf8] sm:$0xff]
      %v432 = vld [vmem:[#allocation2 + $0x108] sm:$0xff]
      %v433 = vld [vmem:[#allocation2 + $0x110] sm:$0xff]
      %v434 = vld [vmem:[#allocation2 + $0x120] sm:$0xff]
      %v435 = vld [vmem:[#allocation2 + $0x128] sm:$0xff]
      %v436 = vld [vmem:[#allocation2 + $0x138] sm:$0xff]
      %v437 = vld [vmem:[#allocation2 + $0x140] sm:$0xff]
      %v438 = vld [vmem:[#allocation2 + $0x150] sm:$0xff]
      %v439 = vld [vmem:[#allocation2 + $0x158] sm:$0xff]
      %v440 = vld [vmem:[#allocation2 + $0x168] sm:$0xff]
      %v441 = vld [vmem:[#allocation2 + $0x170] sm:$0xff]
      %v442 = vld [vmem:[#allocation2 + $0x180] sm:$0xff]
      %v443 = vld [vmem:[#allocation2 + $0x188] sm:$0xff]
      %v444 = vld [vmem:[#allocation2 + $0x198] sm:$0xff]
      %v445 = vld [vmem:[#allocation2 + $0x1a0] sm:$0xff]
      %v446 = vld [vmem:[%s184] sm:$0xff]
      %v447 = vld [vmem:[%s184 + $0x8] sm:$0xff]
      %v448 = vld [vmem:[%s184 + $0x10] sm:$0xff]
      %v449 = vld [vmem:[%s184 + $0x18] sm:$0xff]
      %v450 = vld [vmem:[%s184 + $0x20] sm:$0xff]
      %v451 = vld [vmem:[%s184 + $0x28] sm:$0xff]
      %v452 = vld [vmem:[%s184 + $0x30] sm:$0xff]
      %v453 = vld [vmem:[%s184 + $0x38] sm:$0xff]
      %v454 = vld [vmem:[%s184 + $0x40] sm:$0xff]
      %v455 = vld [vmem:[%s184 + $0x48] sm:$0xff]
      %v456 = vld [vmem:[%s184 + $0x50] sm:$0xff]
      %v457 = vld [vmem:[%s184 + $0x58] sm:$0xff]
      %v458 = vld [vmem:[%s184 + $0x60] sm:$0xff]
      %v459 = vld [vmem:[%s184 + $0x68] sm:$0xff]
      %v460 = vld [vmem:[%s184 + $0x70] sm:$0xff]
      %v461 = vld [vmem:[%s184 + $0x78] sm:$0xff]
      %s462 = scalar_lea.vmem %s184, 384
      %v463 = vld [vmem:[%s462] sm:$0xff]
      %v464 = vld [vmem:[%s462 + $0x8] sm:$0xff]
      %v465 = vld [vmem:[%s462 + $0x10] sm:$0xff]
      %v466 = vld [vmem:[%s462 + $0x18] sm:$0xff]
      %v467 = vld [vmem:[%s462 + $0x20] sm:$0xff]
      %v468 = vld [vmem:[%s462 + $0x28] sm:$0xff]
      %v469 = vld [vmem:[%s462 + $0x30] sm:$0xff]
      %v470 = vld [vmem:[%s462 + $0x38] sm:$0xff]
      %v471 = vld [vmem:[%s462 + $0x40] sm:$0xff]
      %v472 = vld [vmem:[%s462 + $0x48] sm:$0xff]
      %v473 = vld [vmem:[%s462 + $0x50] sm:$0xff]
      %v474 = vld [vmem:[%s462 + $0x58] sm:$0xff]
      %v475 = vld [vmem:[%s462 + $0x60] sm:$0xff]
      %v476 = vld [vmem:[%s462 + $0x68] sm:$0xff]
      %v477 = vld [vmem:[%s462 + $0x70] sm:$0xff]
      %v478 = vld [vmem:[%s462 + $0x78] sm:$0xff]
      %479 = vmatprep.subr.mxu0 0.0
      %480 = vmatpush1.msra.mxu0 %v463
      %481 = vmatprep.subr.mxu0 0.0
      %482 = vmatpush1.msra.mxu0 %v464
      %483 = vmatprep.subr.mxu0 0.0
      %484 = vmatpush1.msra.mxu0 %v465
      %485 = vmatprep.subr.mxu0 0.0
      %486 = vmatpush1.msra.mxu0 %v466
      %487 = vmatprep.subr.mxu0 0.0
      %488 = vmatpush1.msra.mxu0 %v467
      %489 = vmatprep.subr.mxu0 0.0
      %490 = vmatpush1.msra.mxu0 %v468
      %491 = vmatprep.subr.mxu0 0.0
      %492 = vmatpush1.msra.mxu0 %v469
      %493 = vmatprep.subr.mxu0 0.0
      %494 = vmatpush1.msra.mxu0 %v470
      %495 = vmatprep.subr.mxu0 0.0
      %496 = vmatpush1.msra.mxu0 %v471
      %497 = vmatprep.subr.mxu0 0.0
      %498 = vmatpush1.msra.mxu0 %v472
      %499 = vmatprep.subr.mxu0 0.0
      %500 = vmatpush1.msra.mxu0 %v473
      %501 = vmatprep.subr.mxu0 0.0
      %502 = vmatpush1.msra.mxu0 %v474
      %503 = vmatprep.subr.mxu0 0.0
      %504 = vmatpush1.msra.mxu0 %v475
      %505 = vmatprep.subr.mxu0 0.0
      %506 = vmatpush1.msra.mxu0 %v476
      %507 = vmatprep.subr.mxu0 0.0
      %508 = vmatpush1.msra.mxu0 %v477
      %509 = vmatprep.subr.mxu0 0.0
      %510 = vmatpush1.msra.mxu0 %v478
      %511 = vmatprep.subr.mxu0 0.0
      %512 = vmatpush1.msra.mxu0 0.0
      %513 = vmatprep.subr.mxu0 0.0
      %514 = vmatpush1.msra.mxu0 0.0
      %515 = vmatprep.subr.mxu0 0.0
      %516 = vmatpush1.msra.mxu0 0.0
      %517 = vmatprep.subr.mxu0 0.0
      %518 = vmatpush1.msra.mxu0 0.0
      %519 = vmatprep.subr.mxu0 0.0
      %520 = vmatpush1.msra.mxu0 0.0
      %521 = vmatprep.subr.mxu0 0.0
      %522 = vmatpush1.msra.mxu0 0.0
      %523 = vmatprep.subr.mxu0 0.0
      %524 = vmatpush1.msra.mxu0 0.0
      %525 = vmatprep.subr.mxu0 0.0
      %526 = vmatpush1.msra.mxu0 0.0
      %527 = vmatprep.subr.mxu0 0.0
      %528 = vmatpush1.msra.mxu0 0.0
      %529 = vmatprep.subr.mxu0 0.0
      %530 = vmatpush1.msra.mxu0 0.0
      %531 = vmatprep.subr.mxu0 0.0
      %532 = vmatpush1.msra.mxu0 0.0
      %533 = vmatprep.subr.mxu0 0.0
      %534 = vmatpush1.msra.mxu0 0.0
      %535 = vmatprep.subr.mxu0 0.0
      %536 = vmatpush1.msra.mxu0 0.0
      %537 = vmatprep.subr.mxu0 0.0
      %538 = vmatpush1.msra.mxu0 0.0
      %539 = vmatprep.subr.mxu0 0.0
      %540 = vmatpush1.msra.mxu0 0.0
      %541 = vmatprep.subr.mxu0 0.0
      %542 = vmatpush1.msra.mxu0 0.0
      %543 = vmatprep.mubr.f32.mxu0 0.0
      %544 = vmatmul.mubr.f32.gmra.mrb[0].mxu0 %v412
      %v545 = vpop.f32.mrb[0].mxu0
      %v546 = vadd.f32 0.0, %v545
      %v547 = vpop.f32.mrb[0].mxu0
      %548 = vmatprep.mubr.f32.mxu0 0.0
      %549 = vmatmul.mubr.f32.gmra.mrb[0].mxu0 %v413
      %v550 = vpop.f32.mrb[0].mxu0
      %v551 = vadd.f32 0.0, %v550
      %v552 = vpop.f32.mrb[0].mxu0
      %553 = vmatprep.mubr.f32.mxu0 0.0
      %554 = vmatmul.mubr.f32.gmra.mrb[0].mxu0 %v414
      %v555 = vpop.f32.mrb[0].mxu0
      %v556 = vadd.f32 0.0, %v555
      %v557 = vpop.f32.mrb[0].mxu0
      %558 = vmatprep.mubr.f32.mxu0 0.0
      %559 = vmatmul.mubr.f32.gmra.mrb[0].mxu0 %v415
      %v560 = vpop.f32.mrb[0].mxu0
      %v561 = vadd.f32 0.0, %v560
      %v562 = vpop.f32.mrb[0].mxu0
      %563 = vmatprep.mubr.f32.mxu0 0.0
      %564 = vmatmul.mubr.f32.gmra.mrb[0].mxu0 %v416
      %v565 = vpop.f32.mrb[0].mxu0
      %v566 = vadd.f32 0.0, %v565
      %v567 = vpop.f32.mrb[0].mxu0
      %568 = vmatprep.mubr.f32.mxu0 0.0
      %569 = vmatmul.mubr.f32.gmra.mrb[0].mxu0 %v417
      %v570 = vpop.f32.mrb[0].mxu0
      %v571 = vadd.f32 0.0, %v570
      %v572 = vpop.f32.mrb[0].mxu0
      %573 = vmatprep.mubr.f32.mxu0 0.0
      %574 = vmatmul.mubr.f32.gmra.mrb[0].mxu0 %v418
      %v575 = vpop.f32.mrb[0].mxu0
      %v576 = vadd.f32 0.0, %v575
      %v577 = vpop.f32.mrb[0].mxu0
      %578 = vmatprep.mubr.f32.mxu0 0.0
      %579 = vmatmul.mubr.f32.gmra.mrb[0].mxu0 %v419
      %v580 = vpop.f32.mrb[0].mxu0
      %v581 = vadd.f32 0.0, %v580
      %v582 = vpop.f32.mrb[0].mxu0
      %583 = vmatprep.mubr.f32.mxu0 0.0
      %584 = vmatmul.mubr.f32.gmra.mrb[0].mxu0 %v420
      %v585 = vpop.f32.mrb[0].mxu0
      %v586 = vadd.f32 0.0, %v585
      %v587 = vpop.f32.mrb[0].mxu0
      %588 = vmatprep.mubr.f32.mxu0 0.0
      %589 = vmatmul.mubr.f32.gmra.mrb[0].mxu0 %v421
      %v590 = vpop.f32.mrb[0].mxu0
      %v591 = vadd.f32 0.0, %v590
      %v592 = vpop.f32.mrb[0].mxu0
      %593 = vmatprep.mubr.f32.mxu0 0.0
      %594 = vmatmul.mubr.f32.gmra.mrb[0].mxu0 %v422
      %v595 = vpop.f32.mrb[0].mxu0
      %v596 = vadd.f32 0.0, %v595
      %v597 = vpop.f32.mrb[0].mxu0
      %598 = vmatprep.mubr.f32.mxu0 0.0
      %599 = vmatmul.mubr.f32.gmra.mrb[0].mxu0 %v423
      %v600 = vpop.f32.mrb[0].mxu0
      %v601 = vadd.f32 0.0, %v600
      %v602 = vpop.f32.mrb[0].mxu0
      %603 = vmatprep.mubr.f32.mxu0 0.0
      %604 = vmatmul.mubr.f32.gmra.mrb[0].mxu0 %v424
      %v605 = vpop.f32.mrb[0].mxu0
      %v606 = vadd.f32 0.0, %v605
      %v607 = vpop.f32.mrb[0].mxu0
      %608 = vmatprep.mubr.f32.mxu0 0.0
      %609 = vmatmul.mubr.f32.gmra.mrb[0].mxu0 %v425
      %v610 = vpop.f32.mrb[0].mxu0
      %v611 = vadd.f32 0.0, %v610
      %v612 = vpop.f32.mrb[0].mxu0
      %613 = vmatprep.mubr.f32.mxu0 0.0
      %614 = vmatmul.mubr.f32.gmra.mrb[0].mxu0 %v426
      %v615 = vpop.f32.mrb[0].mxu0
      %v616 = vadd.f32 0.0, %v615
      %v617 = vpop.f32.mrb[0].mxu0
      %618 = vmatprep.mubr.f32.mxu0 0.0
      %619 = vmatmul.mubr.f32.gmra.mrb[0].mxu0 %v427
      %v620 = vpop.f32.mrb[0].mxu0
      %v621 = vadd.f32 0.0, %v620
      %v622 = vpop.f32.mrb[0].mxu0
      %623 = vmatprep.mubr.f32.mxu0 0.0
      %624 = vmatmul.mubr.f32.gmra.mrb[0].mxu0 %v428
      %v625 = vpop.f32.mrb[0].mxu0
      %v626 = vadd.f32 0.0, %v625
      %v627 = vpop.f32.mrb[0].mxu0
      %628 = vmatprep.mubr.f32.mxu0 0.0
      %629 = vmatmul.mubr.f32.gmra.mrb[0].mxu0 %v429
      %v630 = vpop.f32.mrb[0].mxu0
      %v631 = vadd.f32 0.0, %v630
      %v632 = vpop.f32.mrb[0].mxu0
      %633 = vmatprep.mubr.f32.mxu0 0.0
      %634 = vmatmul.mubr.f32.gmra.mrb[0].mxu0 %v430
      %v635 = vpop.f32.mrb[0].mxu0
      %v636 = vadd.f32 0.0, %v635
      %v637 = vpop.f32.mrb[0].mxu0
      %638 = vmatprep.mubr.f32.mxu0 0.0
      %639 = vmatmul.mubr.f32.gmra.mrb[0].mxu0 %v431
      %v640 = vpop.f32.mrb[0].mxu0
      %v641 = vadd.f32 0.0, %v640
      %v642 = vpop.f32.mrb[0].mxu0
      %643 = vmatprep.mubr.f32.mxu0 0.0
      %644 = vmatmul.mubr.f32.gmra.mrb[0].mxu0 %v432
      %v645 = vpop.f32.mrb[0].mxu0
      %v646 = vadd.f32 0.0, %v645
      %v647 = vpop.f32.mrb[0].mxu0
      %648 = vmatprep.mubr.f32.mxu0 0.0
      %649 = vmatmul.mubr.f32.gmra.mrb[0].mxu0 %v433
      %v650 = vpop.f32.mrb[0].mxu0
      %v651 = vadd.f32 0.0, %v650
      %v652 = vpop.f32.mrb[0].mxu0
      %653 = vmatprep.mubr.f32.mxu0 0.0
      %654 = vmatmul.mubr.f32.gmra.mrb[0].mxu0 %v434
      %v655 = vpop.f32.mrb[0].mxu0
      %v656 = vadd.f32 0.0, %v655
      %v657 = vpop.f32.mrb[0].mxu0
      %658 = vmatprep.mubr.f32.mxu0 0.0
      %659 = vmatmul.mubr.f32.gmra.mrb[0].mxu0 %v435
      %v660 = vpop.f32.mrb[0].mxu0
      %v661 = vadd.f32 0.0, %v660
      %v662 = vpop.f32.mrb[0].mxu0
      %663 = vmatprep.mubr.f32.mxu0 0.0
      %664 = vmatmul.mubr.f32.gmra.mrb[0].mxu0 %v436
      %v665 = vpop.f32.mrb[0].mxu0
      %v666 = vadd.f32 0.0, %v665
      %v667 = vpop.f32.mrb[0].mxu0
      %668 = vmatprep.mubr.f32.mxu0 0.0
      %669 = vmatmul.mubr.f32.gmra.mrb[0].mxu0 %v437
      %v670 = vpop.f32.mrb[0].mxu0
      %v671 = vadd.f32 0.0, %v670
      %v672 = vpop.f32.mrb[0].mxu0
      %673 = vmatprep.mubr.f32.mxu0 0.0
      %674 = vmatmul.mubr.f32.gmra.mrb[0].mxu0 %v438
      %v675 = vpop.f32.mrb[0].mxu0
      %v676 = vadd.f32 0.0, %v675
      %v677 = vpop.f32.mrb[0].mxu0
      %678 = vmatprep.mubr.f32.mxu0 0.0
      %679 = vmatmul.mubr.f32.gmra.mrb[0].mxu0 %v439
      %v680 = vpop.f32.mrb[0].mxu0
      %v681 = vadd.f32 0.0, %v680
      %v682 = vpop.f32.mrb[0].mxu0
      %683 = vmatprep.mubr.f32.mxu0 0.0
      %684 = vmatmul.mubr.f32.gmra.mrb[0].mxu0 %v440
      %v685 = vpop.f32.mrb[0].mxu0
      %v686 = vadd.f32 0.0, %v685
      %v687 = vpop.f32.mrb[0].mxu0
      %688 = vmatprep.mubr.f32.mxu0 0.0
      %689 = vmatmul.mubr.f32.gmra.mrb[0].mxu0 %v441
      %v690 = vpop.f32.mrb[0].mxu0
      %v691 = vadd.f32 0.0, %v690
      %v692 = vpop.f32.mrb[0].mxu0
      %693 = vmatprep.mubr.f32.mxu0 0.0
      %694 = vmatmul.mubr.f32.gmra.mrb[0].mxu0 %v442
      %v695 = vpop.f32.mrb[0].mxu0
      %v696 = vadd.f32 0.0, %v695
      %v697 = vpop.f32.mrb[0].mxu0
      %698 = vmatprep.mubr.f32.mxu0 0.0
      %699 = vmatmul.mubr.f32.gmra.mrb[0].mxu0 %v443
      %v700 = vpop.f32.mrb[0].mxu0
      %v701 = vadd.f32 0.0, %v700
      %v702 = vpop.f32.mrb[0].mxu0
      %703 = vdwg.mxu0
      %704 = vmatprep.subr.mxu0 0.0
      %705 = vmatpush1.msra.mxu0 %v446
      %706 = vmatprep.subr.mxu0 0.0
      %707 = vmatpush1.msra.mxu0 %v447
      %708 = vmatprep.subr.mxu0 0.0
      %709 = vmatpush1.msra.mxu0 %v448
      %710 = vmatprep.subr.mxu0 0.0
      %711 = vmatpush1.msra.mxu0 %v449
      %712 = vmatprep.subr.mxu0 0.0
      %713 = vmatpush1.msra.mxu0 %v450
      %714 = vmatprep.subr.mxu0 0.0
      %715 = vmatpush1.msra.mxu0 %v451
      %716 = vmatprep.subr.mxu0 0.0
      %717 = vmatpush1.msra.mxu0 %v452
      %718 = vmatprep.subr.mxu0 0.0
      %719 = vmatpush1.msra.mxu0 %v453
      %720 = vmatprep.subr.mxu0 0.0
      %721 = vmatpush1.msra.mxu0 %v454
      %722 = vmatprep.subr.mxu0 0.0
      %723 = vmatpush1.msra.mxu0 %v455
      %724 = vmatprep.subr.mxu0 0.0
      %725 = vmatpush1.msra.mxu0 %v456
      %726 = vmatprep.subr.mxu0 0.0
      %727 = vmatpush1.msra.mxu0 %v457
      %728 = vmatprep.subr.mxu0 0.0
      %729 = vmatpush1.msra.mxu0 %v458
      %730 = vmatprep.subr.mxu0 0.0
      %731 = vmatpush1.msra.mxu0 %v459
      %732 = vmatprep.subr.mxu0 0.0
      %733 = vmatpush1.msra.mxu0 %v460
      %734 = vmatprep.subr.mxu0 0.0
      %735 = vmatpush1.msra.mxu0 %v461
      %736 = vmatprep.subr.mxu0 0.0
      %737 = vmatpush1.msra.mxu0 0.0
      %738 = vmatprep.subr.mxu0 0.0
      %739 = vmatpush1.msra.mxu0 0.0
      %740 = vmatprep.subr.mxu0 0.0
      %741 = vmatpush1.msra.mxu0 0.0
      %742 = vmatprep.subr.mxu0 0.0
      %743 = vmatpush1.msra.mxu0 0.0
      %744 = vmatprep.subr.mxu0 0.0
      %745 = vmatpush1.msra.mxu0 0.0
      %746 = vmatprep.subr.mxu0 0.0
      %747 = vmatpush1.msra.mxu0 0.0
      %748 = vmatprep.subr.mxu0 0.0
      %749 = vmatpush1.msra.mxu0 0.0
      %750 = vmatprep.subr.mxu0 0.0
      %751 = vmatpush1.msra.mxu0 0.0
      %752 = vmatprep.subr.mxu0 0.0
      %753 = vmatpush1.msra.mxu0 0.0
      %754 = vmatprep.subr.mxu0 0.0
      %755 = vmatpush1.msra.mxu0 0.0
      %756 = vmatprep.subr.mxu0 0.0
      %757 = vmatpush1.msra.mxu0 0.0
      %758 = vmatprep.subr.mxu0 0.0
      %759 = vmatpush1.msra.mxu0 0.0
      %760 = vmatprep.subr.mxu0 0.0
      %761 = vmatpush1.msra.mxu0 0.0
      %762 = vmatprep.subr.mxu0 0.0
      %763 = vmatpush1.msra.mxu0 0.0
      %764 = vmatprep.subr.mxu0 0.0
      %765 = vmatpush1.msra.mxu0 0.0
      %766 = vmatprep.subr.mxu0 0.0
      %767 = vmatpush1.msra.mxu0 0.0
      %768 = vmatprep.mubr.f32.mxu0 0.0
      %769 = vmatmul.mubr.f32.gmra.mrb[0].mxu0 %v410
      %v770 = vpop.f32.mrb[0].mxu0
      %v771 = vadd.f32 %v546, %v770
      %v772 = vpop.f32.mrb[0].mxu0
      %773 = vmatprep.mubr.f32.mxu0 0.0
      %774 = vmatmul.mubr.f32.gmra.mrb[0].mxu0 %v411
      %v775 = vpop.f32.mrb[0].mxu0
      %v776 = vadd.f32 %v551, %v775
      %v777 = vpop.f32.mrb[0].mxu0
      %778 = vmatprep.mubr.f32.mxu0 0.0
      %779 = vmatmul.mubr.f32.gmra.mrb[0].mxu0 %v412
      %v780 = vpop.f32.mrb[0].mxu0
      %v781 = vadd.f32 %v556, %v780
      %v782 = vpop.f32.mrb[0].mxu0
      %783 = vmatprep.mubr.f32.mxu0 0.0
      %784 = vmatmul.mubr.f32.gmra.mrb[0].mxu0 %v413
      %v785 = vpop.f32.mrb[0].mxu0
      %v786 = vadd.f32 %v561, %v785
      %v787 = vpop.f32.mrb[0].mxu0
      %788 = vmatprep.mubr.f32.mxu0 0.0
      %789 = vmatmul.mubr.f32.gmra.mrb[0].mxu0 %v414
      %v790 = vpop.f32.mrb[0].mxu0
      %v791 = vadd.f32 %v566, %v790
      %v792 = vpop.f32.mrb[0].mxu0
      %793 = vmatprep.mubr.f32.mxu0 0.0
      %794 = vmatmul.mubr.f32.gmra.mrb[0].mxu0 %v415
      %v795 = vpop.f32.mrb[0].mxu0
      %v796 = vadd.f32 %v571, %v795
      %v797 = vpop.f32.mrb[0].mxu0
      %798 = vmatprep.mubr.f32.mxu0 0.0
      %799 = vmatmul.mubr.f32.gmra.mrb[0].mxu0 %v416
      %v800 = vpop.f32.mrb[0].mxu0
      %v801 = vadd.f32 %v576, %v800
      %v802 = vpop.f32.mrb[0].mxu0
      %803 = vmatprep.mubr.f32.mxu0 0.0
      %804 = vmatmul.mubr.f32.gmra.mrb[0].mxu0 %v417
      %v805 = vpop.f32.mrb[0].mxu0
      %v806 = vadd.f32 %v581, %v805
      %v807 = vpop.f32.mrb[0].mxu0
      %808 = vmatprep.mubr.f32.mxu0 0.0
      %809 = vmatmul.mubr.f32.gmra.mrb[0].mxu0 %v418
      %v810 = vpop.f32.mrb[0].mxu0
      %v811 = vadd.f32 %v586, %v810
      %v812 = vpop.f32.mrb[0].mxu0
      %813 = vmatprep.mubr.f32.mxu0 0.0
      %814 = vmatmul.mubr.f32.gmra.mrb[0].mxu0 %v419
      %v815 = vpop.f32.mrb[0].mxu0
      %v816 = vadd.f32 %v591, %v815
      %v817 = vpop.f32.mrb[0].mxu0
      %818 = vmatprep.mubr.f32.mxu0 0.0
      %819 = vmatmul.mubr.f32.gmra.mrb[0].mxu0 %v420
      %v820 = vpop.f32.mrb[0].mxu0
      %v821 = vadd.f32 %v596, %v820
      %v822 = vpop.f32.mrb[0].mxu0
      %823 = vmatprep.mubr.f32.mxu0 0.0
      %824 = vmatmul.mubr.f32.gmra.mrb[0].mxu0 %v421
      %v825 = vpop.f32.mrb[0].mxu0
      %v826 = vadd.f32 %v601, %v825
      %v827 = vpop.f32.mrb[0].mxu0
      %828 = vmatprep.mubr.f32.mxu0 0.0
      %829 = vmatmul.mubr.f32.gmra.mrb[0].mxu0 %v422
      %v830 = vpop.f32.mrb[0].mxu0
      %v831 = vadd.f32 %v606, %v830
      %v832 = vpop.f32.mrb[0].mxu0
      %833 = vmatprep.mubr.f32.mxu0 0.0
      %834 = vmatmul.mubr.f32.gmra.mrb[0].mxu0 %v423
      %v835 = vpop.f32.mrb[0].mxu0
      %v836 = vadd.f32 %v611, %v835
      %v837 = vpop.f32.mrb[0].mxu0
      %838 = vmatprep.mubr.f32.mxu0 0.0
      %839 = vmatmul.mubr.f32.gmra.mrb[0].mxu0 %v424
      %v840 = vpop.f32.mrb[0].mxu0
      %v841 = vadd.f32 %v616, %v840
      %v842 = vpop.f32.mrb[0].mxu0
      %843 = vmatprep.mubr.f32.mxu0 0.0
      %844 = vmatmul.mubr.f32.gmra.mrb[0].mxu0 %v425
      %v845 = vpop.f32.mrb[0].mxu0
      %v846 = vadd.f32 %v621, %v845
      %v847 = vpop.f32.mrb[0].mxu0
      %848 = vmatprep.mubr.f32.mxu0 0.0
      %849 = vmatmul.mubr.f32.gmra.mrb[0].mxu0 %v426
      %v850 = vpop.f32.mrb[0].mxu0
      %v851 = vadd.f32 %v626, %v850
      %v852 = vpop.f32.mrb[0].mxu0
      %853 = vmatprep.mubr.f32.mxu0 0.0
      %854 = vmatmul.mubr.f32.gmra.mrb[0].mxu0 %v427
      %v855 = vpop.f32.mrb[0].mxu0
      %v856 = vadd.f32 %v631, %v855
      %v857 = vpop.f32.mrb[0].mxu0
      %858 = vmatprep.mubr.f32.mxu0 0.0
      %859 = vmatmul.mubr.f32.gmra.mrb[0].mxu0 %v428
      %v860 = vpop.f32.mrb[0].mxu0
      %v861 = vadd.f32 %v636, %v860
      %v862 = vpop.f32.mrb[0].mxu0
      %863 = vmatprep.mubr.f32.mxu0 0.0
      %864 = vmatmul.mubr.f32.gmra.mrb[0].mxu0 %v429
      %v865 = vpop.f32.mrb[0].mxu0
      %v866 = vadd.f32 %v641, %v865
      %v867 = vpop.f32.mrb[0].mxu0
      %868 = vmatprep.mubr.f32.mxu0 0.0
      %869 = vmatmul.mubr.f32.gmra.mrb[0].mxu0 %v430
      %v870 = vpop.f32.mrb[0].mxu0
      %v871 = vadd.f32 %v646, %v870
      %v872 = vpop.f32.mrb[0].mxu0
      %873 = vmatprep.mubr.f32.mxu0 0.0
      %874 = vmatmul.mubr.f32.gmra.mrb[0].mxu0 %v431
      %v875 = vpop.f32.mrb[0].mxu0
      %v876 = vadd.f32 %v651, %v875
      %v877 = vpop.f32.mrb[0].mxu0
      %878 = vmatprep.mubr.f32.mxu0 0.0
      %879 = vmatmul.mubr.f32.gmra.mrb[0].mxu0 %v432
      %v880 = vpop.f32.mrb[0].mxu0
      %v881 = vadd.f32 %v656, %v880
      %v882 = vpop.f32.mrb[0].mxu0
      %883 = vmatprep.mubr.f32.mxu0 0.0
      %884 = vmatmul.mubr.f32.gmra.mrb[0].mxu0 %v433
      %v885 = vpop.f32.mrb[0].mxu0
      %v886 = vadd.f32 %v661, %v885
      %v887 = vpop.f32.mrb[0].mxu0
      %888 = vmatprep.mubr.f32.mxu0 0.0
      %889 = vmatmul.mubr.f32.gmra.mrb[0].mxu0 %v434
      %v890 = vpop.f32.mrb[0].mxu0
      %v891 = vadd.f32 %v666, %v890
      %v892 = vpop.f32.mrb[0].mxu0
      %893 = vmatprep.mubr.f32.mxu0 0.0
      %894 = vmatmul.mubr.f32.gmra.mrb[0].mxu0 %v435
      %v895 = vpop.f32.mrb[0].mxu0
      %v896 = vadd.f32 %v671, %v895
      %v897 = vpop.f32.mrb[0].mxu0
      %898 = vmatprep.mubr.f32.mxu0 0.0
      %899 = vmatmul.mubr.f32.gmra.mrb[0].mxu0 %v436
      %v900 = vpop.f32.mrb[0].mxu0
      %v901 = vadd.f32 %v676, %v900
      %v902 = vpop.f32.mrb[0].mxu0
      %903 = vmatprep.mubr.f32.mxu0 0.0
      %904 = vmatmul.mubr.f32.gmra.mrb[0].mxu0 %v437
      %v905 = vpop.f32.mrb[0].mxu0
      %v906 = vadd.f32 %v681, %v905
      %v907 = vpop.f32.mrb[0].mxu0
      %908 = vmatprep.mubr.f32.mxu0 0.0
      %909 = vmatmul.mubr.f32.gmra.mrb[0].mxu0 %v438
      %v910 = vpop.f32.mrb[0].mxu0
      %v911 = vadd.f32 %v686, %v910
      %v912 = vpop.f32.mrb[0].mxu0
      %913 = vmatprep.mubr.f32.mxu0 0.0
      %914 = vmatmul.mubr.f32.gmra.mrb[0].mxu0 %v439
      %v915 = vpop.f32.mrb[0].mxu0
      %v916 = vadd.f32 %v691, %v915
      %v917 = vpop.f32.mrb[0].mxu0
      %918 = vmatprep.mubr.f32.mxu0 0.0
      %919 = vmatmul.mubr.f32.gmra.mrb[0].mxu0 %v440
      %v920 = vpop.f32.mrb[0].mxu0
      %v921 = vadd.f32 %v696, %v920
      %v922 = vpop.f32.mrb[0].mxu0
      %923 = vmatprep.mubr.f32.mxu0 0.0
      %924 = vmatmul.mubr.f32.gmra.mrb[0].mxu0 %v441
      %v925 = vpop.f32.mrb[0].mxu0
      %v926 = vadd.f32 %v701, %v925
      %v927 = vpop.f32.mrb[0].mxu0
      %928 = vdwg.mxu0
      %s929 = scalar_lea.vmem %s184, 768
      %v930 = vld [vmem:[%s929] sm:$0xff]
      %v931 = vld [vmem:[%s929 + $0x8] sm:$0xff]
      %v932 = vld [vmem:[%s929 + $0x10] sm:$0xff]
      %v933 = vld [vmem:[%s929 + $0x18] sm:$0xff]
      %v934 = vld [vmem:[%s929 + $0x20] sm:$0xff]
      %v935 = vld [vmem:[%s929 + $0x28] sm:$0xff]
      %v936 = vld [vmem:[%s929 + $0x30] sm:$0xff]
      %v937 = vld [vmem:[%s929 + $0x38] sm:$0xff]
      %v938 = vld [vmem:[%s929 + $0x40] sm:$0xff]
      %v939 = vld [vmem:[%s929 + $0x48] sm:$0xff]
      %v940 = vld [vmem:[%s929 + $0x50] sm:$0xff]
      %v941 = vld [vmem:[%s929 + $0x58] sm:$0xff]
      %v942 = vld [vmem:[%s929 + $0x60] sm:$0xff]
      %v943 = vld [vmem:[%s929 + $0x68] sm:$0xff]
      %v944 = vld [vmem:[%s929 + $0x70] sm:$0xff]
      %v945 = vld [vmem:[%s929 + $0x78] sm:$0xff]
      %946 = vmatprep.subr.mxu0 0.0
      %947 = vmatpush1.msra.mxu0 %v930
      %948 = vmatprep.subr.mxu0 0.0
      %949 = vmatpush1.msra.mxu0 %v931
      %950 = vmatprep.subr.mxu0 0.0
      %951 = vmatpush1.msra.mxu0 %v932
      %952 = vmatprep.subr.mxu0 0.0
      %953 = vmatpush1.msra.mxu0 %v933
      %954 = vmatprep.subr.mxu0 0.0
      %955 = vmatpush1.msra.mxu0 %v934
      %956 = vmatprep.subr.mxu0 0.0
      %957 = vmatpush1.msra.mxu0 %v935
      %958 = vmatprep.subr.mxu0 0.0
      %959 = vmatpush1.msra.mxu0 %v936
      %960 = vmatprep.subr.mxu0 0.0
      %961 = vmatpush1.msra.mxu0 %v937
      %962 = vmatprep.subr.mxu0 0.0
      %963 = vmatpush1.msra.mxu0 %v938
      %964 = vmatprep.subr.mxu0 0.0
      %965 = vmatpush1.msra.mxu0 %v939
      %966 = vmatprep.subr.mxu0 0.0
      %967 = vmatpush1.msra.mxu0 %v940
      %968 = vmatprep.subr.mxu0 0.0
      %969 = vmatpush1.msra.mxu0 %v941
      %970 = vmatprep.subr.mxu0 0.0
      %971 = vmatpush1.msra.mxu0 %v942
      %972 = vmatprep.subr.mxu0 0.0
      %973 = vmatpush1.msra.mxu0 %v943
      %974 = vmatprep.subr.mxu0 0.0
      %975 = vmatpush1.msra.mxu0 %v944
      %976 = vmatprep.subr.mxu0 0.0
      %977 = vmatpush1.msra.mxu0 %v945
      %978 = vmatprep.subr.mxu0 0.0
      %979 = vmatpush1.msra.mxu0 0.0
      %980 = vmatprep.subr.mxu0 0.0
      %981 = vmatpush1.msra.mxu0 0.0
      %982 = vmatprep.subr.mxu0 0.0
      %983 = vmatpush1.msra.mxu0 0.0
      %984 = vmatprep.subr.mxu0 0.0
      %985 = vmatpush1.msra.mxu0 0.0
      %986 = vmatprep.subr.mxu0 0.0
      %987 = vmatpush1.msra.mxu0 0.0
      %988 = vmatprep.subr.mxu0 0.0
      %989 = vmatpush1.msra.mxu0 0.0
      %990 = vmatprep.subr.mxu0 0.0
      %991 = vmatpush1.msra.mxu0 0.0
      %992 = vmatprep.subr.mxu0 0.0
      %993 = vmatpush1.msra.mxu0 0.0
      %994 = vmatprep.subr.mxu0 0.0
      %995 = vmatpush1.msra.mxu0 0.0
      %996 = vmatprep.subr.mxu0 0.0
      %997 = vmatpush1.msra.mxu0 0.0
      %998 = vmatprep.subr.mxu0 0.0
      %999 = vmatpush1.msra.mxu0 0.0
      %1000 = vmatprep.subr.mxu0 0.0
      %1001 = vmatpush1.msra.mxu0 0.0
      %1002 = vmatprep.subr.mxu0 0.0
      %1003 = vmatpush1.msra.mxu0 0.0
      %1004 = vmatprep.subr.mxu0 0.0
      %1005 = vmatpush1.msra.mxu0 0.0
      %1006 = vmatprep.subr.mxu0 0.0
      %1007 = vmatpush1.msra.mxu0 0.0
      %1008 = vmatprep.subr.mxu0 0.0
      %1009 = vmatpush1.msra.mxu0 0.0
      %1010 = vmatprep.mubr.f32.mxu0 0.0
      %1011 = vmatmul.mubr.f32.gmra.mrb[0].mxu0 %v414
      %v1012 = vpop.f32.mrb[0].mxu0
      %v1013 = vadd.f32 0.0, %v1012
      %v1014 = vpop.f32.mrb[0].mxu0
      %1015 = vmatprep.mubr.f32.mxu0 0.0
      %1016 = vmatmul.mubr.f32.gmra.mrb[0].mxu0 %v415
      %v1017 = vpop.f32.mrb[0].mxu0
      %v1018 = vadd.f32 0.0, %v1017
      %v1019 = vpop.f32.mrb[0].mxu0
      %1020 = vmatprep.mubr.f32.mxu0 0.0
      %1021 = vmatmul.mubr.f32.gmra.mrb[0].mxu0 %v416
      %v1022 = vpop.f32.mrb[0].mxu0
      %v1023 = vadd.f32 0.0, %v1022
      %v1024 = vpop.f32.mrb[0].mxu0
      %1025 = vmatprep.mubr.f32.mxu0 0.0
      %1026 = vmatmul.mubr.f32.gmra.mrb[0].mxu0 %v417
      %v1027 = vpop.f32.mrb[0].mxu0
      %v1028 = vadd.f32 0.0, %v1027
      %v1029 = vpop.f32.mrb[0].mxu0
      %1030 = vmatprep.mubr.f32.mxu0 0.0
      %1031 = vmatmul.mubr.f32.gmra.mrb[0].mxu0 %v418
      %v1032 = vpop.f32.mrb[0].mxu0
      %v1033 = vadd.f32 0.0, %v1032
      %v1034 = vpop.f32.mrb[0].mxu0
      %1035 = vmatprep.mubr.f32.mxu0 0.0
      %1036 = vmatmul.mubr.f32.gmra.mrb[0].mxu0 %v419
      %v1037 = vpop.f32.mrb[0].mxu0
      %v1038 = vadd.f32 0.0, %v1037
      %v1039 = vpop.f32.mrb[0].mxu0
      %1040 = vmatprep.mubr.f32.mxu0 0.0
      %1041 = vmatmul.mubr.f32.gmra.mrb[0].mxu0 %v420
      %v1042 = vpop.f32.mrb[0].mxu0
      %v1043 = vadd.f32 0.0, %v1042
      %v1044 = vpop.f32.mrb[0].mxu0
      %1045 = vmatprep.mubr.f32.mxu0 0.0
      %1046 = vmatmul.mubr.f32.gmra.mrb[0].mxu0 %v421
      %v1047 = vpop.f32.mrb[0].mxu0
      %v1048 = vadd.f32 0.0, %v1047
      %v1049 = vpop.f32.mrb[0].mxu0
      %1050 = vmatprep.mubr.f32.mxu0 0.0
      %1051 = vmatmul.mubr.f32.gmra.mrb[0].mxu0 %v422
      %v1052 = vpop.f32.mrb[0].mxu0
      %v1053 = vadd.f32 0.0, %v1052
      %v1054 = vpop.f32.mrb[0].mxu0
      %1055 = vmatprep.mubr.f32.mxu0 0.0
      %1056 = vmatmul.mubr.f32.gmra.mrb[0].mxu0 %v423
      %v1057 = vpop.f32.mrb[0].mxu0
      %v1058 = vadd.f32 0.0, %v1057
      %v1059 = vpop.f32.mrb[0].mxu0
      %1060 = vmatprep.mubr.f32.mxu0 0.0
      %1061 = vmatmul.mubr.f32.gmra.mrb[0].mxu0 %v424
      %v1062 = vpop.f32.mrb[0].mxu0
      %v1063 = vadd.f32 0.0, %v1062
      %v1064 = vpop.f32.mrb[0].mxu0
      %1065 = vmatprep.mubr.f32.mxu0 0.0
      %1066 = vmatmul.mubr.f32.gmra.mrb[0].mxu0 %v425
      %v1067 = vpop.f32.mrb[0].mxu0
      %v1068 = vadd.f32 0.0, %v1067
      %v1069 = vpop.f32.mrb[0].mxu0
      %1070 = vmatprep.mubr.f32.mxu0 0.0
      %1071 = vmatmul.mubr.f32.gmra.mrb[0].mxu0 %v426
      %v1072 = vpop.f32.mrb[0].mxu0
      %v1073 = vadd.f32 0.0, %v1072
      %v1074 = vpop.f32.mrb[0].mxu0
      %1075 = vmatprep.mubr.f32.mxu0 0.0
      %1076 = vmatmul.mubr.f32.gmra.mrb[0].mxu0 %v427
      %v1077 = vpop.f32.mrb[0].mxu0
      %v1078 = vadd.f32 0.0, %v1077
      %v1079 = vpop.f32.mrb[0].mxu0
      %1080 = vmatprep.mubr.f32.mxu0 0.0
      %1081 = vmatmul.mubr.f32.gmra.mrb[0].mxu0 %v428
      %v1082 = vpop.f32.mrb[0].mxu0
      %v1083 = vadd.f32 0.0, %v1082
      %v1084 = vpop.f32.mrb[0].mxu0
      %1085 = vmatprep.mubr.f32.mxu0 0.0
      %1086 = vmatmul.mubr.f32.gmra.mrb[0].mxu0 %v429
      %v1087 = vpop.f32.mrb[0].mxu0
      %v1088 = vadd.f32 0.0, %v1087
      %v1089 = vpop.f32.mrb[0].mxu0
      %1090 = vmatprep.mubr.f32.mxu0 0.0
      %1091 = vmatmul.mubr.f32.gmra.mrb[0].mxu0 %v430
      %v1092 = vpop.f32.mrb[0].mxu0
      %v1093 = vadd.f32 0.0, %v1092
      %v1094 = vpop.f32.mrb[0].mxu0
      %1095 = vmatprep.mubr.f32.mxu0 0.0
      %1096 = vmatmul.mubr.f32.gmra.mrb[0].mxu0 %v431
      %v1097 = vpop.f32.mrb[0].mxu0
      %v1098 = vadd.f32 0.0, %v1097
      %v1099 = vpop.f32.mrb[0].mxu0
      %1100 = vmatprep.mubr.f32.mxu0 0.0
      %1101 = vmatmul.mubr.f32.gmra.mrb[0].mxu0 %v432
      %v1102 = vpop.f32.mrb[0].mxu0
      %v1103 = vadd.f32 0.0, %v1102
      %v1104 = vpop.f32.mrb[0].mxu0
      %1105 = vmatprep.mubr.f32.mxu0 0.0
      %1106 = vmatmul.mubr.f32.gmra.mrb[0].mxu0 %v433
      %v1107 = vpop.f32.mrb[0].mxu0
      %v1108 = vadd.f32 0.0, %v1107
      %v1109 = vpop.f32.mrb[0].mxu0
      %1110 = vmatprep.mubr.f32.mxu0 0.0
      %1111 = vmatmul.mubr.f32.gmra.mrb[0].mxu0 %v434
      %v1112 = vpop.f32.mrb[0].mxu0
      %v1113 = vadd.f32 0.0, %v1112
      %v1114 = vpop.f32.mrb[0].mxu0
      %1115 = vmatprep.mubr.f32.mxu0 0.0
      %1116 = vmatmul.mubr.f32.gmra.mrb[0].mxu0 %v435
      %v1117 = vpop.f32.mrb[0].mxu0
      %v1118 = vadd.f32 0.0, %v1117
      %v1119 = vpop.f32.mrb[0].mxu0
      %1120 = vmatprep.mubr.f32.mxu0 0.0
      %1121 = vmatmul.mubr.f32.gmra.mrb[0].mxu0 %v436
      %v1122 = vpop.f32.mrb[0].mxu0
      %v1123 = vadd.f32 0.0, %v1122
      %v1124 = vpop.f32.mrb[0].mxu0
      %1125 = vmatprep.mubr.f32.mxu0 0.0
      %1126 = vmatmul.mubr.f32.gmra.mrb[0].mxu0 %v437
      %v1127 = vpop.f32.mrb[0].mxu0
      %v1128 = vadd.f32 0.0, %v1127
      %v1129 = vpop.f32.mrb[0].mxu0
      %1130 = vmatprep.mubr.f32.mxu0 0.0
      %1131 = vmatmul.mubr.f32.gmra.mrb[0].mxu0 %v438
      %v1132 = vpop.f32.mrb[0].mxu0
      %v1133 = vadd.f32 0.0, %v1132
      %v1134 = vpop.f32.mrb[0].mxu0
      %1135 = vmatprep.mubr.f32.mxu0 0.0
      %1136 = vmatmul.mubr.f32.gmra.mrb[0].mxu0 %v439
      %v1137 = vpop.f32.mrb[0].mxu0
      %v1138 = vadd.f32 0.0, %v1137
      %v1139 = vpop.f32.mrb[0].mxu0
      %1140 = vmatprep.mubr.f32.mxu0 0.0
      %1141 = vmatmul.mubr.f32.gmra.mrb[0].mxu0 %v440
      %v1142 = vpop.f32.mrb[0].mxu0
      %v1143 = vadd.f32 0.0, %v1142
      %v1144 = vpop.f32.mrb[0].mxu0
      %1145 = vmatprep.mubr.f32.mxu0 0.0
      %1146 = vmatmul.mubr.f32.gmra.mrb[0].mxu0 %v441
      %v1147 = vpop.f32.mrb[0].mxu0
      %v1148 = vadd.f32 0.0, %v1147
      %v1149 = vpop.f32.mrb[0].mxu0
      %1150 = vmatprep.mubr.f32.mxu0 0.0
      %1151 = vmatmul.mubr.f32.gmra.mrb[0].mxu0 %v442
      %v1152 = vpop.f32.mrb[0].mxu0
      %v1153 = vadd.f32 0.0, %v1152
      %v1154 = vpop.f32.mrb[0].mxu0
      %1155 = vmatprep.mubr.f32.mxu0 0.0
      %1156 = vmatmul.mubr.f32.gmra.mrb[0].mxu0 %v443
      %v1157 = vpop.f32.mrb[0].mxu0
      %v1158 = vadd.f32 0.0, %v1157
      %v1159 = vpop.f32.mrb[0].mxu0
      %1160 = vmatprep.mubr.f32.mxu0 0.0
      %1161 = vmatmul.mubr.f32.gmra.mrb[0].mxu0 %v444
      %v1162 = vpop.f32.mrb[0].mxu0
      %v1163 = vadd.f32 0.0, %v1162
      %v1164 = vpop.f32.mrb[0].mxu0
      %1165 = vmatprep.mubr.f32.mxu0 0.0
      %1166 = vmatmul.mubr.f32.gmra.mrb[0].mxu0 %v445
      %v1167 = vpop.f32.mrb[0].mxu0
      %v1168 = vadd.f32 0.0, %v1167
      %v1169 = vpop.f32.mrb[0].mxu0
      %1170 = vdwg.mxu0
      %v1171 = vadd.f32 %v771, %v1013
      %v1172 = vadd.f32 %v776, %v1018
      %v1173 = vadd.f32 %v781, %v1023
      %v1174 = vadd.f32 %v786, %v1028
      %v1175 = vadd.f32 %v791, %v1033
      %v1176 = vadd.f32 %v796, %v1038
      %v1177 = vadd.f32 %v801, %v1043
      %v1178 = vadd.f32 %v806, %v1048
      %v1179 = vadd.f32 %v811, %v1053
      %v1180 = vadd.f32 %v816, %v1058
      %v1181 = vadd.f32 %v821, %v1063
      %v1182 = vadd.f32 %v826, %v1068
      %v1183 = vadd.f32 %v831, %v1073
      %v1184 = vadd.f32 %v836, %v1078
      %v1185 = vadd.f32 %v841, %v1083
      %v1186 = vadd.f32 %v846, %v1088
      %v1187 = vadd.f32 %v851, %v1093
      %v1188 = vadd.f32 %v856, %v1098
      %v1189 = vadd.f32 %v861, %v1103
      %v1190 = vadd.f32 %v866, %v1108
      %v1191 = vadd.f32 %v871, %v1113
      %v1192 = vadd.f32 %v876, %v1118
      %v1193 = vadd.f32 %v881, %v1123
      %v1194 = vadd.f32 %v886, %v1128
      %v1195 = vadd.f32 %v891, %v1133
      %v1196 = vadd.f32 %v896, %v1138
      %v1197 = vadd.f32 %v901, %v1143
      %v1198 = vadd.f32 %v906, %v1148
      %v1199 = vadd.f32 %v911, %v1153
      %v1200 = vadd.f32 %v916, %v1158
      %v1201 = vadd.f32 %v921, %v1163
      %v1202 = vadd.f32 %v926, %v1168
      %v1203 = vld [vmem:[#allocation2 + $0x1] sm:$0xff]
      %v1204 = vld [vmem:[#allocation2 + $0x9] sm:$0xff]
      %v1205 = vld [vmem:[#allocation2 + $0x19] sm:$0xff]
      %v1206 = vld [vmem:[#allocation2 + $0x21] sm:$0xff]
      %v1207 = vld [vmem:[#allocation2 + $0x31] sm:$0xff]
      %v1208 = vld [vmem:[#allocation2 + $0x39] sm:$0xff]
      %v1209 = vld [vmem:[#allocation2 + $0x49] sm:$0xff]
      %v1210 = vld [vmem:[#allocation2 + $0x51] sm:$0xff]
      %v1211 = vld [vmem:[#allocation2 + $0x61] sm:$0xff]
      %v1212 = vld [vmem:[#allocation2 + $0x69] sm:$0xff]
      %v1213 = vld [vmem:[#allocation2 + $0x79] sm:$0xff]
      %v1214 = vld [vmem:[#allocation2 + $0x81] sm:$0xff]
      %v1215 = vld [vmem:[#allocation2 + $0x91] sm:$0xff]
      %v1216 = vld [vmem:[#allocation2 + $0x99] sm:$0xff]
      %v1217 = vld [vmem:[#allocation2 + $0xa9] sm:$0xff]
      %v1218 = vld [vmem:[#allocation2 + $0xb1] sm:$0xff]
      %v1219 = vld [vmem:[#allocation2 + $0xc1] sm:$0xff]
      %v1220 = vld [vmem:[#allocation2 + $0xc9] sm:$0xff]
      %v1221 = vld [vmem:[#allocation2 + $0xd9] sm:$0xff]
      %v1222 = vld [vmem:[#allocation2 + $0xe1] sm:$0xff]
      %v1223 = vld [vmem:[#allocation2 + $0xf1] sm:$0xff]
      %v1224 = vld [vmem:[#allocation2 + $0xf9] sm:$0xff]
      %v1225 = vld [vmem:[#allocation2 + $0x109] sm:$0xff]
      %v1226 = vld [vmem:[#allocation2 + $0x111] sm:$0xff]
      %v1227 = vld [vmem:[#allocation2 + $0x121] sm:$0xff]
      %v1228 = vld [vmem:[#allocation2 + $0x129] sm:$0xff]
      %v1229 = vld [vmem:[#allocation2 + $0x139] sm:$0xff]
      %v1230 = vld [vmem:[#allocation2 + $0x141] sm:$0xff]
      %v1231 = vld [vmem:[#allocation2 + $0x151] sm:$0xff]
      %v1232 = vld [vmem:[#allocation2 + $0x159] sm:$0xff]
      %v1233 = vld [vmem:[#allocation2 + $0x169] sm:$0xff]
      %v1234 = vld [vmem:[#allocation2 + $0x171] sm:$0xff]
      %v1235 = vld [vmem:[#allocation2 + $0x181] sm:$0xff]
      %v1236 = vld [vmem:[#allocation2 + $0x189] sm:$0xff]
      %v1237 = vld [vmem:[#allocation2 + $0x199] sm:$0xff]
      %v1238 = vld [vmem:[#allocation2 + $0x1a1] sm:$0xff]
      %s1239 = scalar_lea.vmem %s184, 128
      %v1240 = vld [vmem:[%s1239] sm:$0xff]
      %v1241 = vld [vmem:[%s1239 + $0x8] sm:$0xff]
      %v1242 = vld [vmem:[%s1239 + $0x10] sm:$0xff]
      %v1243 = vld [vmem:[%s1239 + $0x18] sm:$0xff]
      %v1244 = vld [vmem:[%s1239 + $0x20] sm:$0xff]
      %v1245 = vld [vmem:[%s1239 + $0x28] sm:$0xff]
      %v1246 = vld [vmem:[%s1239 + $0x30] sm:$0xff]
      %v1247 = vld [vmem:[%s1239 + $0x38] sm:$0xff]
      %v1248 = vld [vmem:[%s1239 + $0x40] sm:$0xff]
      %v1249 = vld [vmem:[%s1239 + $0x48] sm:$0xff]
      %v1250 = vld [vmem:[%s1239 + $0x50] sm:$0xff]
      %v1251 = vld [vmem:[%s1239 + $0x58] sm:$0xff]
      %v1252 = vld [vmem:[%s1239 + $0x60] sm:$0xff]
      %v1253 = vld [vmem:[%s1239 + $0x68] sm:$0xff]
      %v1254 = vld [vmem:[%s1239 + $0x70] sm:$0xff]
      %v1255 = vld [vmem:[%s1239 + $0x78] sm:$0xff]
      %1256 = vmatprep.subr.mxu0 0.0
      %1257 = vmatpush1.msra.mxu0 %v1240
      %1258 = vmatprep.subr.mxu0 0.0
      %1259 = vmatpush1.msra.mxu0 %v1241
      %1260 = vmatprep.subr.mxu0 0.0
      %1261 = vmatpush1.msra.mxu0 %v1242
      %1262 = vmatprep.subr.mxu0 0.0
      %1263 = vmatpush1.msra.mxu0 %v1243
      %1264 = vmatprep.subr.mxu0 0.0
      %1265 = vmatpush1.msra.mxu0 %v1244
      %1266 = vmatprep.subr.mxu0 0.0
      %1267 = vmatpush1.msra.mxu0 %v1245
      %1268 = vmatprep.subr.mxu0 0.0
      %1269 = vmatpush1.msra.mxu0 %v1246
      %1270 = vmatprep.subr.mxu0 0.0
      %1271 = vmatpush1.msra.mxu0 %v1247
      %1272 = vmatprep.subr.mxu0 0.0
      %1273 = vmatpush1.msra.mxu0 %v1248
      %1274 = vmatprep.subr.mxu0 0.0
      %1275 = vmatpush1.msra.mxu0 %v1249
      %1276 = vmatprep.subr.mxu0 0.0
      %1277 = vmatpush1.msra.mxu0 %v1250
      %1278 = vmatprep.subr.mxu0 0.0
      %1279 = vmatpush1.msra.mxu0 %v1251
      %1280 = vmatprep.subr.mxu0 0.0
      %1281 = vmatpush1.msra.mxu0 %v1252
      %1282 = vmatprep.subr.mxu0 0.0
      %1283 = vmatpush1.msra.mxu0 %v1253
      %1284 = vmatprep.subr.mxu0 0.0
      %1285 = vmatpush1.msra.mxu0 %v1254
      %1286 = vmatprep.subr.mxu0 0.0
      %1287 = vmatpush1.msra.mxu0 %v1255
      %1288 = vmatprep.subr.mxu0 0.0
      %1289 = vmatpush1.msra.mxu0 0.0
      %1290 = vmatprep.subr.mxu0 0.0
      %1291 = vmatpush1.msra.mxu0 0.0
      %1292 = vmatprep.subr.mxu0 0.0
      %1293 = vmatpush1.msra.mxu0 0.0
      %1294 = vmatprep.subr.mxu0 0.0
      %1295 = vmatpush1.msra.mxu0 0.0
      %1296 = vmatprep.subr.mxu0 0.0
      %1297 = vmatpush1.msra.mxu0 0.0
      %1298 = vmatprep.subr.mxu0 0.0
      %1299 = vmatpush1.msra.mxu0 0.0
      %1300 = vmatprep.subr.mxu0 0.0
      %1301 = vmatpush1.msra.mxu0 0.0
      %1302 = vmatprep.subr.mxu0 0.0
      %1303 = vmatpush1.msra.mxu0 0.0
      %1304 = vmatprep.subr.mxu0 0.0
      %1305 = vmatpush1.msra.mxu0 0.0
      %1306 = vmatprep.subr.mxu0 0.0
      %1307 = vmatpush1.msra.mxu0 0.0
      %1308 = vmatprep.subr.mxu0 0.0
      %1309 = vmatpush1.msra.mxu0 0.0
      %1310 = vmatprep.subr.mxu0 0.0
      %1311 = vmatpush1.msra.mxu0 0.0
      %1312 = vmatprep.subr.mxu0 0.0
      %1313 = vmatpush1.msra.mxu0 0.0
      %1314 = vmatprep.subr.mxu0 0.0
      %1315 = vmatpush1.msra.mxu0 0.0
      %1316 = vmatprep.subr.mxu0 0.0
      %1317 = vmatpush1.msra.mxu0 0.0
      %1318 = vmatprep.subr.mxu0 0.0
      %1319 = vmatpush1.msra.mxu0 0.0
      %1320 = vmatprep.mubr.f32.mxu0 0.0
      %1321 = vmatmul.mubr.f32.gmra.mrb[0].mxu0 %v1203
      %v1322 = vpop.f32.mrb[0].mxu0
      %v1323 = vadd.f32 0.0, %v1322
      %v1324 = vpop.f32.mrb[0].mxu0
      %1325 = vmatprep.mubr.f32.mxu0 0.0
      %1326 = vmatmul.mubr.f32.gmra.mrb[0].mxu0 %v1204
      %v1327 = vpop.f32.mrb[0].mxu0
      %v1328 = vadd.f32 0.0, %v1327
      %v1329 = vpop.f32.mrb[0].mxu0
      %1330 = vmatprep.mubr.f32.mxu0 0.0
      %1331 = vmatmul.mubr.f32.gmra.mrb[0].mxu0 %v1205
      %v1332 = vpop.f32.mrb[0].mxu0
      %v1333 = vadd.f32 0.0, %v1332
      %v1334 = vpop.f32.mrb[0].mxu0
      %1335 = vmatprep.mubr.f32.mxu0 0.0
      %1336 = vmatmul.mubr.f32.gmra.mrb[0].mxu0 %v1206
      %v1337 = vpop.f32.mrb[0].mxu0
      %v1338 = vadd.f32 0.0, %v1337
      %v1339 = vpop.f32.mrb[0].mxu0
      %1340 = vmatprep.mubr.f32.mxu0 0.0
      %1341 = vmatmul.mubr.f32.gmra.mrb[0].mxu0 %v1207
      %v1342 = vpop.f32.mrb[0].mxu0
      %v1343 = vadd.f32 0.0, %v1342
      %v1344 = vpop.f32.mrb[0].mxu0
      %1345 = vmatprep.mubr.f32.mxu0 0.0
      %1346 = vmatmul.mubr.f32.gmra.mrb[0].mxu0 %v1208
      %v1347 = vpop.f32.mrb[0].mxu0
      %v1348 = vadd.f32 0.0, %v1347
      %v1349 = vpop.f32.mrb[0].mxu0
      %1350 = vmatprep.mubr.f32.mxu0 0.0
      %1351 = vmatmul.mubr.f32.gmra.mrb[0].mxu0 %v1209
      %v1352 = vpop.f32.mrb[0].mxu0
      %v1353 = vadd.f32 0.0, %v1352
      %v1354 = vpop.f32.mrb[0].mxu0
      %1355 = vmatprep.mubr.f32.mxu0 0.0
      %1356 = vmatmul.mubr.f32.gmra.mrb[0].mxu0 %v1210
      %v1357 = vpop.f32.mrb[0].mxu0
      %v1358 = vadd.f32 0.0, %v1357
      %v1359 = vpop.f32.mrb[0].mxu0
      %1360 = vmatprep.mubr.f32.mxu0 0.0
      %1361 = vmatmul.mubr.f32.gmra.mrb[0].mxu0 %v1211
      %v1362 = vpop.f32.mrb[0].mxu0
      %v1363 = vadd.f32 0.0, %v1362
      %v1364 = vpop.f32.mrb[0].mxu0
      %1365 = vmatprep.mubr.f32.mxu0 0.0
      %1366 = vmatmul.mubr.f32.gmra.mrb[0].mxu0 %v1212
      %v1367 = vpop.f32.mrb[0].mxu0
      %v1368 = vadd.f32 0.0, %v1367
      %v1369 = vpop.f32.mrb[0].mxu0
      %1370 = vmatprep.mubr.f32.mxu0 0.0
      %1371 = vmatmul.mubr.f32.gmra.mrb[0].mxu0 %v1213
      %v1372 = vpop.f32.mrb[0].mxu0
      %v1373 = vadd.f32 0.0, %v1372
      %v1374 = vpop.f32.mrb[0].mxu0
      %1375 = vmatprep.mubr.f32.mxu0 0.0
      %1376 = vmatmul.mubr.f32.gmra.mrb[0].mxu0 %v1214
      %v1377 = vpop.f32.mrb[0].mxu0
      %v1378 = vadd.f32 0.0, %v1377
      %v1379 = vpop.f32.mrb[0].mxu0
      %1380 = vmatprep.mubr.f32.mxu0 0.0
      %1381 = vmatmul.mubr.f32.gmra.mrb[0].mxu0 %v1215
      %v1382 = vpop.f32.mrb[0].mxu0
      %v1383 = vadd.f32 0.0, %v1382
      %v1384 = vpop.f32.mrb[0].mxu0
      %1385 = vmatprep.mubr.f32.mxu0 0.0
      %1386 = vmatmul.mubr.f32.gmra.mrb[0].mxu0 %v1216
      %v1387 = vpop.f32.mrb[0].mxu0
      %v1388 = vadd.f32 0.0, %v1387
      %v1389 = vpop.f32.mrb[0].mxu0
      %1390 = vmatprep.mubr.f32.mxu0 0.0
      %1391 = vmatmul.mubr.f32.gmra.mrb[0].mxu0 %v1217
      %v1392 = vpop.f32.mrb[0].mxu0
      %v1393 = vadd.f32 0.0, %v1392
      %v1394 = vpop.f32.mrb[0].mxu0
      %1395 = vmatprep.mubr.f32.mxu0 0.0
      %1396 = vmatmul.mubr.f32.gmra.mrb[0].mxu0 %v1218
      %v1397 = vpop.f32.mrb[0].mxu0
      %v1398 = vadd.f32 0.0, %v1397
      %v1399 = vpop.f32.mrb[0].mxu0
      %1400 = vmatprep.mubr.f32.mxu0 0.0
      %1401 = vmatmul.mubr.f32.gmra.mrb[0].mxu0 %v1219
      %v1402 = vpop.f32.mrb[0].mxu0
      %v1403 = vadd.f32 0.0, %v1402
      %v1404 = vpop.f32.mrb[0].mxu0
      %1405 = vmatprep.mubr.f32.mxu0 0.0
      %1406 = vmatmul.mubr.f32.gmra.mrb[0].mxu0 %v1220
      %v1407 = vpop.f32.mrb[0].mxu0
      %v1408 = vadd.f32 0.0, %v1407
      %v1409 = vpop.f32.mrb[0].mxu0
      %1410 = vmatprep.mubr.f32.mxu0 0.0
      %1411 = vmatmul.mubr.f32.gmra.mrb[0].mxu0 %v1221
      %v1412 = vpop.f32.mrb[0].mxu0
      %v1413 = vadd.f32 0.0, %v1412
      %v1414 = vpop.f32.mrb[0].mxu0
      %1415 = vmatprep.mubr.f32.mxu0 0.0
      %1416 = vmatmul.mubr.f32.gmra.mrb[0].mxu0 %v1222
      %v1417 = vpop.f32.mrb[0].mxu0
      %v1418 = vadd.f32 0.0, %v1417
      %v1419 = vpop.f32.mrb[0].mxu0
      %1420 = vmatprep.mubr.f32.mxu0 0.0
      %1421 = vmatmul.mubr.f32.gmra.mrb[0].mxu0 %v1223
      %v1422 = vpop.f32.mrb[0].mxu0
      %v1423 = vadd.f32 0.0, %v1422
      %v1424 = vpop.f32.mrb[0].mxu0
      %1425 = vmatprep.mubr.f32.mxu0 0.0
      %1426 = vmatmul.mubr.f32.gmra.mrb[0].mxu0 %v1224
      %v1427 = vpop.f32.mrb[0].mxu0
      %v1428 = vadd.f32 0.0, %v1427
      %v1429 = vpop.f32.mrb[0].mxu0
      %1430 = vmatprep.mubr.f32.mxu0 0.0
      %1431 = vmatmul.mubr.f32.gmra.mrb[0].mxu0 %v1225
      %v1432 = vpop.f32.mrb[0].mxu0
      %v1433 = vadd.f32 0.0, %v1432
      %v1434 = vpop.f32.mrb[0].mxu0
      %1435 = vmatprep.mubr.f32.mxu0 0.0
      %1436 = vmatmul.mubr.f32.gmra.mrb[0].mxu0 %v1226
      %v1437 = vpop.f32.mrb[0].mxu0
      %v1438 = vadd.f32 0.0, %v1437
      %v1439 = vpop.f32.mrb[0].mxu0
      %1440 = vmatprep.mubr.f32.mxu0 0.0
      %1441 = vmatmul.mubr.f32.gmra.mrb[0].mxu0 %v1227
      %v1442 = vpop.f32.mrb[0].mxu0
      %v1443 = vadd.f32 0.0, %v1442
      %v1444 = vpop.f32.mrb[0].mxu0
      %1445 = vmatprep.mubr.f32.mxu0 0.0
      %1446 = vmatmul.mubr.f32.gmra.mrb[0].mxu0 %v1228
      %v1447 = vpop.f32.mrb[0].mxu0
      %v1448 = vadd.f32 0.0, %v1447
      %v1449 = vpop.f32.mrb[0].mxu0
      %1450 = vmatprep.mubr.f32.mxu0 0.0
      %1451 = vmatmul.mubr.f32.gmra.mrb[0].mxu0 %v1229
      %v1452 = vpop.f32.mrb[0].mxu0
      %v1453 = vadd.f32 0.0, %v1452
      %v1454 = vpop.f32.mrb[0].mxu0
      %1455 = vmatprep.mubr.f32.mxu0 0.0
      %1456 = vmatmul.mubr.f32.gmra.mrb[0].mxu0 %v1230
      %v1457 = vpop.f32.mrb[0].mxu0
      %v1458 = vadd.f32 0.0, %v1457
      %v1459 = vpop.f32.mrb[0].mxu0
      %1460 = vmatprep.mubr.f32.mxu0 0.0
      %1461 = vmatmul.mubr.f32.gmra.mrb[0].mxu0 %v1231
      %v1462 = vpop.f32.mrb[0].mxu0
      %v1463 = vadd.f32 0.0, %v1462
      %v1464 = vpop.f32.mrb[0].mxu0
      %1465 = vmatprep.mubr.f32.mxu0 0.0
      %1466 = vmatmul.mubr.f32.gmra.mrb[0].mxu0 %v1232
      %v1467 = vpop.f32.mrb[0].mxu0
      %v1468 = vadd.f32 0.0, %v1467
      %v1469 = vpop.f32.mrb[0].mxu0
      %1470 = vmatprep.mubr.f32.mxu0 0.0
      %1471 = vmatmul.mubr.f32.gmra.mrb[0].mxu0 %v1233
      %v1472 = vpop.f32.mrb[0].mxu0
      %v1473 = vadd.f32 0.0, %v1472
      %v1474 = vpop.f32.mrb[0].mxu0
      %1475 = vmatprep.mubr.f32.mxu0 0.0
      %1476 = vmatmul.mubr.f32.gmra.mrb[0].mxu0 %v1234
      %v1477 = vpop.f32.mrb[0].mxu0
      %v1478 = vadd.f32 0.0, %v1477
      %v1479 = vpop.f32.mrb[0].mxu0
      %1480 = vdwg.mxu0
      %v1481 = vadd.f32 %v1171, %v1323
      %v1482 = vadd.f32 %v1172, %v1328
      %v1483 = vadd.f32 %v1173, %v1333
      %v1484 = vadd.f32 %v1174, %v1338
      %v1485 = vadd.f32 %v1175, %v1343
      %v1486 = vadd.f32 %v1176, %v1348
      %v1487 = vadd.f32 %v1177, %v1353
      %v1488 = vadd.f32 %v1178, %v1358
      %v1489 = vadd.f32 %v1179, %v1363
      %v1490 = vadd.f32 %v1180, %v1368
      %v1491 = vadd.f32 %v1181, %v1373
      %v1492 = vadd.f32 %v1182, %v1378
      %v1493 = vadd.f32 %v1183, %v1383
      %v1494 = vadd.f32 %v1184, %v1388
      %v1495 = vadd.f32 %v1185, %v1393
      %v1496 = vadd.f32 %v1186, %v1398
      %v1497 = vadd.f32 %v1187, %v1403
      %v1498 = vadd.f32 %v1188, %v1408
      %v1499 = vadd.f32 %v1189, %v1413
      %v1500 = vadd.f32 %v1190, %v1418
      %v1501 = vadd.f32 %v1191, %v1423
      %v1502 = vadd.f32 %v1192, %v1428
      %v1503 = vadd.f32 %v1193, %v1433
      %v1504 = vadd.f32 %v1194, %v1438
      %v1505 = vadd.f32 %v1195, %v1443
      %v1506 = vadd.f32 %v1196, %v1448
      %v1507 = vadd.f32 %v1197, %v1453
      %v1508 = vadd.f32 %v1198, %v1458
      %v1509 = vadd.f32 %v1199, %v1463
      %v1510 = vadd.f32 %v1200, %v1468
      %v1511 = vadd.f32 %v1201, %v1473
      %v1512 = vadd.f32 %v1202, %v1478
      %s1513 = scalar_lea.vmem %s184, 512
      %v1514 = vld [vmem:[%s1513] sm:$0xff]
      %v1515 = vld [vmem:[%s1513 + $0x8] sm:$0xff]
      %v1516 = vld [vmem:[%s1513 + $0x10] sm:$0xff]
      %v1517 = vld [vmem:[%s1513 + $0x18] sm:$0xff]
      %v1518 = vld [vmem:[%s1513 + $0x20] sm:$0xff]
      %v1519 = vld [vmem:[%s1513 + $0x28] sm:$0xff]
      %v1520 = vld [vmem:[%s1513 + $0x30] sm:$0xff]
      %v1521 = vld [vmem:[%s1513 + $0x38] sm:$0xff]
      %v1522 = vld [vmem:[%s1513 + $0x40] sm:$0xff]
      %v1523 = vld [vmem:[%s1513 + $0x48] sm:$0xff]
      %v1524 = vld [vmem:[%s1513 + $0x50] sm:$0xff]
      %v1525 = vld [vmem:[%s1513 + $0x58] sm:$0xff]
      %v1526 = vld [vmem:[%s1513 + $0x60] sm:$0xff]
      %v1527 = vld [vmem:[%s1513 + $0x68] sm:$0xff]
      %v1528 = vld [vmem:[%s1513 + $0x70] sm:$0xff]
      %v1529 = vld [vmem:[%s1513 + $0x78] sm:$0xff]
      %1530 = vmatprep.subr.mxu0 0.0
      %1531 = vmatpush1.msra.mxu0 %v1514
      %1532 = vmatprep.subr.mxu0 0.0
      %1533 = vmatpush1.msra.mxu0 %v1515
      %1534 = vmatprep.subr.mxu0 0.0
      %1535 = vmatpush1.msra.mxu0 %v1516
      %1536 = vmatprep.subr.mxu0 0.0
      %1537 = vmatpush1.msra.mxu0 %v1517
      %1538 = vmatprep.subr.mxu0 0.0
      %1539 = vmatpush1.msra.mxu0 %v1518
      %1540 = vmatprep.subr.mxu0 0.0
      %1541 = vmatpush1.msra.mxu0 %v1519
      %1542 = vmatprep.subr.mxu0 0.0
      %1543 = vmatpush1.msra.mxu0 %v1520
      %1544 = vmatprep.subr.mxu0 0.0
      %1545 = vmatpush1.msra.mxu0 %v1521
      %1546 = vmatprep.subr.mxu0 0.0
      %1547 = vmatpush1.msra.mxu0 %v1522
      %1548 = vmatprep.subr.mxu0 0.0
      %1549 = vmatpush1.msra.mxu0 %v1523
      %1550 = vmatprep.subr.mxu0 0.0
      %1551 = vmatpush1.msra.mxu0 %v1524
      %1552 = vmatprep.subr.mxu0 0.0
      %1553 = vmatpush1.msra.mxu0 %v1525
      %1554 = vmatprep.subr.mxu0 0.0
      %1555 = vmatpush1.msra.mxu0 %v1526
      %1556 = vmatprep.subr.mxu0 0.0
      %1557 = vmatpush1.msra.mxu0 %v1527
      %1558 = vmatprep.subr.mxu0 0.0
      %1559 = vmatpush1.msra.mxu0 %v1528
      %1560 = vmatprep.subr.mxu0 0.0
      %1561 = vmatpush1.msra.mxu0 %v1529
      %1562 = vmatprep.subr.mxu0 0.0
      %1563 = vmatpush1.msra.mxu0 0.0
      %1564 = vmatprep.subr.mxu0 0.0
      %1565 = vmatpush1.msra.mxu0 0.0
      %1566 = vmatprep.subr.mxu0 0.0
      %1567 = vmatpush1.msra.mxu0 0.0
      %1568 = vmatprep.subr.mxu0 0.0
      %1569 = vmatpush1.msra.mxu0 0.0
      %1570 = vmatprep.subr.mxu0 0.0
      %1571 = vmatpush1.msra.mxu0 0.0
      %1572 = vmatprep.subr.mxu0 0.0
      %1573 = vmatpush1.msra.mxu0 0.0
      %1574 = vmatprep.subr.mxu0 0.0
      %1575 = vmatpush1.msra.mxu0 0.0
      %1576 = vmatprep.subr.mxu0 0.0
      %1577 = vmatpush1.msra.mxu0 0.0
      %1578 = vmatprep.subr.mxu0 0.0
      %1579 = vmatpush1.msra.mxu0 0.0
      %1580 = vmatprep.subr.mxu0 0.0
      %1581 = vmatpush1.msra.mxu0 0.0
      %1582 = vmatprep.subr.mxu0 0.0
      %1583 = vmatpush1.msra.mxu0 0.0
      %1584 = vmatprep.subr.mxu0 0.0
      %1585 = vmatpush1.msra.mxu0 0.0
      %1586 = vmatprep.subr.mxu0 0.0
      %1587 = vmatpush1.msra.mxu0 0.0
      %1588 = vmatprep.subr.mxu0 0.0
      %1589 = vmatpush1.msra.mxu0 0.0
      %1590 = vmatprep.subr.mxu0 0.0
      %1591 = vmatpush1.msra.mxu0 0.0
      %1592 = vmatprep.subr.mxu0 0.0
      %1593 = vmatpush1.msra.mxu0 0.0
      %1594 = vmatprep.mubr.f32.mxu0 0.0
      %1595 = vmatmul.mubr.f32.gmra.mrb[0].mxu0 %v1205
      %v1596 = vpop.f32.mrb[0].mxu0
      %v1597 = vadd.f32 0.0, %v1596
      %v1598 = vpop.f32.mrb[0].mxu0
      %1599 = vmatprep.mubr.f32.mxu0 0.0
      %1600 = vmatmul.mubr.f32.gmra.mrb[0].mxu0 %v1206
      %v1601 = vpop.f32.mrb[0].mxu0
      %v1602 = vadd.f32 0.0, %v1601
      %v1603 = vpop.f32.mrb[0].mxu0
      %1604 = vmatprep.mubr.f32.mxu0 0.0
      %1605 = vmatmul.mubr.f32.gmra.mrb[0].mxu0 %v1207
      %v1606 = vpop.f32.mrb[0].mxu0
      %v1607 = vadd.f32 0.0, %v1606
      %v1608 = vpop.f32.mrb[0].mxu0
      %1609 = vmatprep.mubr.f32.mxu0 0.0
      %1610 = vmatmul.mubr.f32.gmra.mrb[0].mxu0 %v1208
      %v1611 = vpop.f32.mrb[0].mxu0
      %v1612 = vadd.f32 0.0, %v1611
      %v1613 = vpop.f32.mrb[0].mxu0
      %1614 = vmatprep.mubr.f32.mxu0 0.0
      %1615 = vmatmul.mubr.f32.gmra.mrb[0].mxu0 %v1209
      %v1616 = vpop.f32.mrb[0].mxu0
      %v1617 = vadd.f32 0.0, %v1616
      %v1618 = vpop.f32.mrb[0].mxu0
      %1619 = vmatprep.mubr.f32.mxu0 0.0
      %1620 = vmatmul.mubr.f32.gmra.mrb[0].mxu0 %v1210
      %v1621 = vpop.f32.mrb[0].mxu0
      %v1622 = vadd.f32 0.0, %v1621
      %v1623 = vpop.f32.mrb[0].mxu0
      %1624 = vmatprep.mubr.f32.mxu0 0.0
      %1625 = vmatmul.mubr.f32.gmra.mrb[0].mxu0 %v1211
      %v1626 = vpop.f32.mrb[0].mxu0
      %v1627 = vadd.f32 0.0, %v1626
      %v1628 = vpop.f32.mrb[0].mxu0
      %1629 = vmatprep.mubr.f32.mxu0 0.0
      %1630 = vmatmul.mubr.f32.gmra.mrb[0].mxu0 %v1212
      %v1631 = vpop.f32.mrb[0].mxu0
      %v1632 = vadd.f32 0.0, %v1631
      %v1633 = vpop.f32.mrb[0].mxu0
      %1634 = vmatprep.mubr.f32.mxu0 0.0
      %1635 = vmatmul.mubr.f32.gmra.mrb[0].mxu0 %v1213
      %v1636 = vpop.f32.mrb[0].mxu0
      %v1637 = vadd.f32 0.0, %v1636
      %v1638 = vpop.f32.mrb[0].mxu0
      %1639 = vmatprep.mubr.f32.mxu0 0.0
      %1640 = vmatmul.mubr.f32.gmra.mrb[0].mxu0 %v1214
      %v1641 = vpop.f32.mrb[0].mxu0
      %v1642 = vadd.f32 0.0, %v1641
      %v1643 = vpop.f32.mrb[0].mxu0
      %1644 = vmatprep.mubr.f32.mxu0 0.0
      %1645 = vmatmul.mubr.f32.gmra.mrb[0].mxu0 %v1215
      %v1646 = vpop.f32.mrb[0].mxu0
      %v1647 = vadd.f32 0.0, %v1646
      %v1648 = vpop.f32.mrb[0].mxu0
      %1649 = vmatprep.mubr.f32.mxu0 0.0
      %1650 = vmatmul.mubr.f32.gmra.mrb[0].mxu0 %v1216
      %v1651 = vpop.f32.mrb[0].mxu0
      %v1652 = vadd.f32 0.0, %v1651
      %v1653 = vpop.f32.mrb[0].mxu0
      %1654 = vmatprep.mubr.f32.mxu0 0.0
      %1655 = vmatmul.mubr.f32.gmra.mrb[0].mxu0 %v1217
      %v1656 = vpop.f32.mrb[0].mxu0
      %v1657 = vadd.f32 0.0, %v1656
      %v1658 = vpop.f32.mrb[0].mxu0
      %1659 = vmatprep.mubr.f32.mxu0 0.0
      %1660 = vmatmul.mubr.f32.gmra.mrb[0].mxu0 %v1218
      %v1661 = vpop.f32.mrb[0].mxu0
      %v1662 = vadd.f32 0.0, %v1661
      %v1663 = vpop.f32.mrb[0].mxu0
      %1664 = vmatprep.mubr.f32.mxu0 0.0
      %1665 = vmatmul.mubr.f32.gmra.mrb[0].mxu0 %v1219
      %v1666 = vpop.f32.mrb[0].mxu0
      %v1667 = vadd.f32 0.0, %v1666
      %v1668 = vpop.f32.mrb[0].mxu0
      %1669 = vmatprep.mubr.f32.mxu0 0.0
      %1670 = vmatmul.mubr.f32.gmra.mrb[0].mxu0 %v1220
      %v1671 = vpop.f32.mrb[0].mxu0
      %v1672 = vadd.f32 0.0, %v1671
      %v1673 = vpop.f32.mrb[0].mxu0
      %1674 = vmatprep.mubr.f32.mxu0 0.0
      %1675 = vmatmul.mubr.f32.gmra.mrb[0].mxu0 %v1221
      %v1676 = vpop.f32.mrb[0].mxu0
      %v1677 = vadd.f32 0.0, %v1676
      %v1678 = vpop.f32.mrb[0].mxu0
      %1679 = vmatprep.mubr.f32.mxu0 0.0
      %1680 = vmatmul.mubr.f32.gmra.mrb[0].mxu0 %v1222
      %v1681 = vpop.f32.mrb[0].mxu0
      %v1682 = vadd.f32 0.0, %v1681
      %v1683 = vpop.f32.mrb[0].mxu0
      %1684 = vmatprep.mubr.f32.mxu0 0.0
      %1685 = vmatmul.mubr.f32.gmra.mrb[0].mxu0 %v1223
      %v1686 = vpop.f32.mrb[0].mxu0
      %v1687 = vadd.f32 0.0, %v1686
      %v1688 = vpop.f32.mrb[0].mxu0
      %1689 = vmatprep.mubr.f32.mxu0 0.0
      %1690 = vmatmul.mubr.f32.gmra.mrb[0].mxu0 %v1224
      %v1691 = vpop.f32.mrb[0].mxu0
      %v1692 = vadd.f32 0.0, %v1691
      %v1693 = vpop.f32.mrb[0].mxu0
      %1694 = vmatprep.mubr.f32.mxu0 0.0
      %1695 = vmatmul.mubr.f32.gmra.mrb[0].mxu0 %v1225
      %v1696 = vpop.f32.mrb[0].mxu0
      %v1697 = vadd.f32 0.0, %v1696
      %v1698 = vpop.f32.mrb[0].mxu0
      %1699 = vmatprep.mubr.f32.mxu0 0.0
      %1700 = vmatmul.mubr.f32.gmra.mrb[0].mxu0 %v1226
      %v1701 = vpop.f32.mrb[0].mxu0
      %v1702 = vadd.f32 0.0, %v1701
      %v1703 = vpop.f32.mrb[0].mxu0
      %1704 = vmatprep.mubr.f32.mxu0 0.0
      %1705 = vmatmul.mubr.f32.gmra.mrb[0].mxu0 %v1227
      %v1706 = vpop.f32.mrb[0].mxu0
      %v1707 = vadd.f32 0.0, %v1706
      %v1708 = vpop.f32.mrb[0].mxu0
      %1709 = vmatprep.mubr.f32.mxu0 0.0
      %1710 = vmatmul.mubr.f32.gmra.mrb[0].mxu0 %v1228
      %v1711 = vpop.f32.mrb[0].mxu0
      %v1712 = vadd.f32 0.0, %v1711
      %v1713 = vpop.f32.mrb[0].mxu0
      %1714 = vmatprep.mubr.f32.mxu0 0.0
      %1715 = vmatmul.mubr.f32.gmra.mrb[0].mxu0 %v1229
      %v1716 = vpop.f32.mrb[0].mxu0
      %v1717 = vadd.f32 0.0, %v1716
      %v1718 = vpop.f32.mrb[0].mxu0
      %1719 = vmatprep.mubr.f32.mxu0 0.0
      %1720 = vmatmul.mubr.f32.gmra.mrb[0].mxu0 %v1230
      %v1721 = vpop.f32.mrb[0].mxu0
      %v1722 = vadd.f32 0.0, %v1721
      %v1723 = vpop.f32.mrb[0].mxu0
      %1724 = vmatprep.mubr.f32.mxu0 0.0
      %1725 = vmatmul.mubr.f32.gmra.mrb[0].mxu0 %v1231
      %v1726 = vpop.f32.mrb[0].mxu0
      %v1727 = vadd.f32 0.0, %v1726
      %v1728 = vpop.f32.mrb[0].mxu0
      %1729 = vmatprep.mubr.f32.mxu0 0.0
      %1730 = vmatmul.mubr.f32.gmra.mrb[0].mxu0 %v1232
      %v1731 = vpop.f32.mrb[0].mxu0
      %v1732 = vadd.f32 0.0, %v1731
      %v1733 = vpop.f32.mrb[0].mxu0
      %1734 = vmatprep.mubr.f32.mxu0 0.0
      %1735 = vmatmul.mubr.f32.gmra.mrb[0].mxu0 %v1233
      %v1736 = vpop.f32.mrb[0].mxu0
      %v1737 = vadd.f32 0.0, %v1736
      %v1738 = vpop.f32.mrb[0].mxu0
      %1739 = vmatprep.mubr.f32.mxu0 0.0
      %1740 = vmatmul.mubr.f32.gmra.mrb[0].mxu0 %v1234
      %v1741 = vpop.f32.mrb[0].mxu0
      %v1742 = vadd.f32 0.0, %v1741
      %v1743 = vpop.f32.mrb[0].mxu0
      %1744 = vmatprep.mubr.f32.mxu0 0.0
      %1745 = vmatmul.mubr.f32.gmra.mrb[0].mxu0 %v1235
      %v1746 = vpop.f32.mrb[0].mxu0
      %v1747 = vadd.f32 0.0, %v1746
      %v1748 = vpop.f32.mrb[0].mxu0
      %1749 = vmatprep.mubr.f32.mxu0 0.0
      %1750 = vmatmul.mubr.f32.gmra.mrb[0].mxu0 %v1236
      %v1751 = vpop.f32.mrb[0].mxu0
      %v1752 = vadd.f32 0.0, %v1751
      %v1753 = vpop.f32.mrb[0].mxu0
      %1754 = vdwg.mxu0
      %v1755 = vadd.f32 %v1481, %v1597
      %v1756 = vadd.f32 %v1482, %v1602
      %v1757 = vadd.f32 %v1483, %v1607
      %v1758 = vadd.f32 %v1484, %v1612
      %v1759 = vadd.f32 %v1485, %v1617
      %v1760 = vadd.f32 %v1486, %v1622
      %v1761 = vadd.f32 %v1487, %v1627
      %v1762 = vadd.f32 %v1488, %v1632
      %v1763 = vadd.f32 %v1489, %v1637
      %v1764 = vadd.f32 %v1490, %v1642
      %v1765 = vadd.f32 %v1491, %v1647
      %v1766 = vadd.f32 %v1492, %v1652
      %v1767 = vadd.f32 %v1493, %v1657
      %v1768 = vadd.f32 %v1494, %v1662
      %v1769 = vadd.f32 %v1495, %v1667
      %v1770 = vadd.f32 %v1496, %v1672
      %v1771 = vadd.f32 %v1497, %v1677
      %v1772 = vadd.f32 %v1498, %v1682
      %v1773 = vadd.f32 %v1499, %v1687
      %v1774 = vadd.f32 %v1500, %v1692
      %v1775 = vadd.f32 %v1501, %v1697
      %v1776 = vadd.f32 %v1502, %v1702
      %v1777 = vadd.f32 %v1503, %v1707
      %v1778 = vadd.f32 %v1504, %v1712
      %v1779 = vadd.f32 %v1505, %v1717
      %v1780 = vadd.f32 %v1506, %v1722
      %v1781 = vadd.f32 %v1507, %v1727
      %v1782 = vadd.f32 %v1508, %v1732
      %v1783 = vadd.f32 %v1509, %v1737
      %v1784 = vadd.f32 %v1510, %v1742
      %v1785 = vadd.f32 %v1511, %v1747
      %v1786 = vadd.f32 %v1512, %v1752
      %s1787 = scalar_lea.vmem %s184, 896
      %v1788 = vld [vmem:[%s1787] sm:$0xff]
      %v1789 = vld [vmem:[%s1787 + $0x8] sm:$0xff]
      %v1790 = vld [vmem:[%s1787 + $0x10] sm:$0xff]
      %v1791 = vld [vmem:[%s1787 + $0x18] sm:$0xff]
      %v1792 = vld [vmem:[%s1787 + $0x20] sm:$0xff]
      %v1793 = vld [vmem:[%s1787 + $0x28] sm:$0xff]
      %v1794 = vld [vmem:[%s1787 + $0x30] sm:$0xff]
      %v1795 = vld [vmem:[%s1787 + $0x38] sm:$0xff]
      %v1796 = vld [vmem:[%s1787 + $0x40] sm:$0xff]
      %v1797 = vld [vmem:[%s1787 + $0x48] sm:$0xff]
      %v1798 = vld [vmem:[%s1787 + $0x50] sm:$0xff]
      %v1799 = vld [vmem:[%s1787 + $0x58] sm:$0xff]
      %v1800 = vld [vmem:[%s1787 + $0x60] sm:$0xff]
      %v1801 = vld [vmem:[%s1787 + $0x68] sm:$0xff]
      %v1802 = vld [vmem:[%s1787 + $0x70] sm:$0xff]
      %v1803 = vld [vmem:[%s1787 + $0x78] sm:$0xff]
      %1804 = vmatprep.subr.mxu0 0.0
      %1805 = vmatpush1.msra.mxu0 %v1788
      %1806 = vmatprep.subr.mxu0 0.0
      %1807 = vmatpush1.msra.mxu0 %v1789
      %1808 = vmatprep.subr.mxu0 0.0
      %1809 = vmatpush1.msra.mxu0 %v1790
      %1810 = vmatprep.subr.mxu0 0.0
      %1811 = vmatpush1.msra.mxu0 %v1791
      %1812 = vmatprep.subr.mxu0 0.0
      %1813 = vmatpush1.msra.mxu0 %v1792
      %1814 = vmatprep.subr.mxu0 0.0
      %1815 = vmatpush1.msra.mxu0 %v1793
      %1816 = vmatprep.subr.mxu0 0.0
      %1817 = vmatpush1.msra.mxu0 %v1794
      %1818 = vmatprep.subr.mxu0 0.0
      %1819 = vmatpush1.msra.mxu0 %v1795
      %1820 = vmatprep.subr.mxu0 0.0
      %1821 = vmatpush1.msra.mxu0 %v1796
      %1822 = vmatprep.subr.mxu0 0.0
      %1823 = vmatpush1.msra.mxu0 %v1797
      %1824 = vmatprep.subr.mxu0 0.0
      %1825 = vmatpush1.msra.mxu0 %v1798
      %1826 = vmatprep.subr.mxu0 0.0
      %1827 = vmatpush1.msra.mxu0 %v1799
      %1828 = vmatprep.subr.mxu0 0.0
      %1829 = vmatpush1.msra.mxu0 %v1800
      %1830 = vmatprep.subr.mxu0 0.0
      %1831 = vmatpush1.msra.mxu0 %v1801
      %1832 = vmatprep.subr.mxu0 0.0
      %1833 = vmatpush1.msra.mxu0 %v1802
      %1834 = vmatprep.subr.mxu0 0.0
      %1835 = vmatpush1.msra.mxu0 %v1803
      %1836 = vmatprep.subr.mxu0 0.0
      %1837 = vmatpush1.msra.mxu0 0.0
      %1838 = vmatprep.subr.mxu0 0.0
      %1839 = vmatpush1.msra.mxu0 0.0
      %1840 = vmatprep.subr.mxu0 0.0
      %1841 = vmatpush1.msra.mxu0 0.0
      %1842 = vmatprep.subr.mxu0 0.0
      %1843 = vmatpush1.msra.mxu0 0.0
      %1844 = vmatprep.subr.mxu0 0.0
      %1845 = vmatpush1.msra.mxu0 0.0
      %1846 = vmatprep.subr.mxu0 0.0
      %1847 = vmatpush1.msra.mxu0 0.0
      %1848 = vmatprep.subr.mxu0 0.0
      %1849 = vmatpush1.msra.mxu0 0.0
      %1850 = vmatprep.subr.mxu0 0.0
      %1851 = vmatpush1.msra.mxu0 0.0
      %1852 = vmatprep.subr.mxu0 0.0
      %1853 = vmatpush1.msra.mxu0 0.0
      %1854 = vmatprep.subr.mxu0 0.0
      %1855 = vmatpush1.msra.mxu0 0.0
      %1856 = vmatprep.subr.mxu0 0.0
      %1857 = vmatpush1.msra.mxu0 0.0
      %1858 = vmatprep.subr.mxu0 0.0
      %1859 = vmatpush1.msra.mxu0 0.0
      %1860 = vmatprep.subr.mxu0 0.0
      %1861 = vmatpush1.msra.mxu0 0.0
      %1862 = vmatprep.subr.mxu0 0.0
      %1863 = vmatpush1.msra.mxu0 0.0
      %1864 = vmatprep.subr.mxu0 0.0
      %1865 = vmatpush1.msra.mxu0 0.0
      %1866 = vmatprep.subr.mxu0 0.0
      %1867 = vmatpush1.msra.mxu0 0.0
      %1868 = vmatprep.mubr.f32.mxu0 0.0
      %1869 = vmatmul.mubr.f32.gmra.mrb[0].mxu0 %v1207
      %v1870 = vpop.f32.mrb[0].mxu0
      %v1871 = vadd.f32 0.0, %v1870
      %v1872 = vpop.f32.mrb[0].mxu0
      %1873 = vmatprep.mubr.f32.mxu0 0.0
      %1874 = vmatmul.mubr.f32.gmra.mrb[0].mxu0 %v1208
      %v1875 = vpop.f32.mrb[0].mxu0
      %v1876 = vadd.f32 0.0, %v1875
      %v1877 = vpop.f32.mrb[0].mxu0
      %1878 = vmatprep.mubr.f32.mxu0 0.0
      %1879 = vmatmul.mubr.f32.gmra.mrb[0].mxu0 %v1209
      %v1880 = vpop.f32.mrb[0].mxu0
      %v1881 = vadd.f32 0.0, %v1880
      %v1882 = vpop.f32.mrb[0].mxu0
      %1883 = vmatprep.mubr.f32.mxu0 0.0
      %1884 = vmatmul.mubr.f32.gmra.mrb[0].mxu0 %v1210
      %v1885 = vpop.f32.mrb[0].mxu0
      %v1886 = vadd.f32 0.0, %v1885
      %v1887 = vpop.f32.mrb[0].mxu0
      %1888 = vmatprep.mubr.f32.mxu0 0.0
      %1889 = vmatmul.mubr.f32.gmra.mrb[0].mxu0 %v1211
      %v1890 = vpop.f32.mrb[0].mxu0
      %v1891 = vadd.f32 0.0, %v1890
      %v1892 = vpop.f32.mrb[0].mxu0
      %1893 = vmatprep.mubr.f32.mxu0 0.0
      %1894 = vmatmul.mubr.f32.gmra.mrb[0].mxu0 %v1212
      %v1895 = vpop.f32.mrb[0].mxu0
      %v1896 = vadd.f32 0.0, %v1895
      %v1897 = vpop.f32.mrb[0].mxu0
      %1898 = vmatprep.mubr.f32.mxu0 0.0
      %1899 = vmatmul.mubr.f32.gmra.mrb[0].mxu0 %v1213
      %v1900 = vpop.f32.mrb[0].mxu0
      %v1901 = vadd.f32 0.0, %v1900
      %v1902 = vpop.f32.mrb[0].mxu0
      %1903 = vmatprep.mubr.f32.mxu0 0.0
      %1904 = vmatmul.mubr.f32.gmra.mrb[0].mxu0 %v1214
      %v1905 = vpop.f32.mrb[0].mxu0
      %v1906 = vadd.f32 0.0, %v1905
      %v1907 = vpop.f32.mrb[0].mxu0
      %1908 = vmatprep.mubr.f32.mxu0 0.0
      %1909 = vmatmul.mubr.f32.gmra.mrb[0].mxu0 %v1215
      %v1910 = vpop.f32.mrb[0].mxu0
      %v1911 = vadd.f32 0.0, %v1910
      %v1912 = vpop.f32.mrb[0].mxu0
      %1913 = vmatprep.mubr.f32.mxu0 0.0
      %1914 = vmatmul.mubr.f32.gmra.mrb[0].mxu0 %v1216
      %v1915 = vpop.f32.mrb[0].mxu0
      %v1916 = vadd.f32 0.0, %v1915
      %v1917 = vpop.f32.mrb[0].mxu0
      %1918 = vmatprep.mubr.f32.mxu0 0.0
      %1919 = vmatmul.mubr.f32.gmra.mrb[0].mxu0 %v1217
      %v1920 = vpop.f32.mrb[0].mxu0
      %v1921 = vadd.f32 0.0, %v1920
      %v1922 = vpop.f32.mrb[0].mxu0
      %1923 = vmatprep.mubr.f32.mxu0 0.0
      %1924 = vmatmul.mubr.f32.gmra.mrb[0].mxu0 %v1218
      %v1925 = vpop.f32.mrb[0].mxu0
      %v1926 = vadd.f32 0.0, %v1925
      %v1927 = vpop.f32.mrb[0].mxu0
      %1928 = vmatprep.mubr.f32.mxu0 0.0
      %1929 = vmatmul.mubr.f32.gmra.mrb[0].mxu0 %v1219
      %v1930 = vpop.f32.mrb[0].mxu0
      %v1931 = vadd.f32 0.0, %v1930
      %v1932 = vpop.f32.mrb[0].mxu0
      %1933 = vmatprep.mubr.f32.mxu0 0.0
      %1934 = vmatmul.mubr.f32.gmra.mrb[0].mxu0 %v1220
      %v1935 = vpop.f32.mrb[0].mxu0
      %v1936 = vadd.f32 0.0, %v1935
      %v1937 = vpop.f32.mrb[0].mxu0
      %1938 = vmatprep.mubr.f32.mxu0 0.0
      %1939 = vmatmul.mubr.f32.gmra.mrb[0].mxu0 %v1221
      %v1940 = vpop.f32.mrb[0].mxu0
      %v1941 = vadd.f32 0.0, %v1940
      %v1942 = vpop.f32.mrb[0].mxu0
      %1943 = vmatprep.mubr.f32.mxu0 0.0
      %1944 = vmatmul.mubr.f32.gmra.mrb[0].mxu0 %v1222
      %v1945 = vpop.f32.mrb[0].mxu0
      %v1946 = vadd.f32 0.0, %v1945
      %v1947 = vpop.f32.mrb[0].mxu0
      %1948 = vmatprep.mubr.f32.mxu0 0.0
      %1949 = vmatmul.mubr.f32.gmra.mrb[0].mxu0 %v1223
      %v1950 = vpop.f32.mrb[0].mxu0
      %v1951 = vadd.f32 0.0, %v1950
      %v1952 = vpop.f32.mrb[0].mxu0
      %1953 = vmatprep.mubr.f32.mxu0 0.0
      %1954 = vmatmul.mubr.f32.gmra.mrb[0].mxu0 %v1224
      %v1955 = vpop.f32.mrb[0].mxu0
      %v1956 = vadd.f32 0.0, %v1955
      %v1957 = vpop.f32.mrb[0].mxu0
      %1958 = vmatprep.mubr.f32.mxu0 0.0
      %1959 = vmatmul.mubr.f32.gmra.mrb[0].mxu0 %v1225
      %v1960 = vpop.f32.mrb[0].mxu0
      %v1961 = vadd.f32 0.0, %v1960
      %v1962 = vpop.f32.mrb[0].mxu0
      %1963 = vmatprep.mubr.f32.mxu0 0.0
      %1964 = vmatmul.mubr.f32.gmra.mrb[0].mxu0 %v1226
      %v1965 = vpop.f32.mrb[0].mxu0
      %v1966 = vadd.f32 0.0, %v1965
      %v1967 = vpop.f32.mrb[0].mxu0
      %1968 = vmatprep.mubr.f32.mxu0 0.0
      %1969 = vmatmul.mubr.f32.gmra.mrb[0].mxu0 %v1227
      %v1970 = vpop.f32.mrb[0].mxu0
      %v1971 = vadd.f32 0.0, %v1970
      %v1972 = vpop.f32.mrb[0].mxu0
      %1973 = vmatprep.mubr.f32.mxu0 0.0
      %1974 = vmatmul.mubr.f32.gmra.mrb[0].mxu0 %v1228
      %v1975 = vpop.f32.mrb[0].mxu0
      %v1976 = vadd.f32 0.0, %v1975
      %v1977 = vpop.f32.mrb[0].mxu0
      %1978 = vmatprep.mubr.f32.mxu0 0.0
      %1979 = vmatmul.mubr.f32.gmra.mrb[0].mxu0 %v1229
      %v1980 = vpop.f32.mrb[0].mxu0
      %v1981 = vadd.f32 0.0, %v1980
      %v1982 = vpop.f32.mrb[0].mxu0
      %1983 = vmatprep.mubr.f32.mxu0 0.0
      %1984 = vmatmul.mubr.f32.gmra.mrb[0].mxu0 %v1230
      %v1985 = vpop.f32.mrb[0].mxu0
      %v1986 = vadd.f32 0.0, %v1985
      %v1987 = vpop.f32.mrb[0].mxu0
      %1988 = vmatprep.mubr.f32.mxu0 0.0
      %1989 = vmatmul.mubr.f32.gmra.mrb[0].mxu0 %v1231
      %v1990 = vpop.f32.mrb[0].mxu0
      %v1991 = vadd.f32 0.0, %v1990
      %v1992 = vpop.f32.mrb[0].mxu0
      %1993 = vmatprep.mubr.f32.mxu0 0.0
      %1994 = vmatmul.mubr.f32.gmra.mrb[0].mxu0 %v1232
      %v1995 = vpop.f32.mrb[0].mxu0
      %v1996 = vadd.f32 0.0, %v1995
      %v1997 = vpop.f32.mrb[0].mxu0
      %1998 = vmatprep.mubr.f32.mxu0 0.0
      %1999 = vmatmul.mubr.f32.gmra.mrb[0].mxu0 %v1233
      %v2000 = vpop.f32.mrb[0].mxu0
      %v2001 = vadd.f32 0.0, %v2000
      %v2002 = vpop.f32.mrb[0].mxu0
      %2003 = vmatprep.mubr.f32.mxu0 0.0
      %2004 = vmatmul.mubr.f32.gmra.mrb[0].mxu0 %v1234
      %v2005 = vpop.f32.mrb[0].mxu0
      %v2006 = vadd.f32 0.0, %v2005
      %v2007 = vpop.f32.mrb[0].mxu0
      %2008 = vmatprep.mubr.f32.mxu0 0.0
      %2009 = vmatmul.mubr.f32.gmra.mrb[0].mxu0 %v1235
      %v2010 = vpop.f32.mrb[0].mxu0
      %v2011 = vadd.f32 0.0, %v2010
      %v2012 = vpop.f32.mrb[0].mxu0
      %2013 = vmatprep.mubr.f32.mxu0 0.0
      %2014 = vmatmul.mubr.f32.gmra.mrb[0].mxu0 %v1236
      %v2015 = vpop.f32.mrb[0].mxu0
      %v2016 = vadd.f32 0.0, %v2015
      %v2017 = vpop.f32.mrb[0].mxu0
      %2018 = vmatprep.mubr.f32.mxu0 0.0
      %2019 = vmatmul.mubr.f32.gmra.mrb[0].mxu0 %v1237
      %v2020 = vpop.f32.mrb[0].mxu0
      %v2021 = vadd.f32 0.0, %v2020
      %v2022 = vpop.f32.mrb[0].mxu0
      %2023 = vmatprep.mubr.f32.mxu0 0.0
      %2024 = vmatmul.mubr.f32.gmra.mrb[0].mxu0 %v1238
      %v2025 = vpop.f32.mrb[0].mxu0
      %v2026 = vadd.f32 0.0, %v2025
      %v2027 = vpop.f32.mrb[0].mxu0
      %2028 = vdwg.mxu0
      %v2029 = vadd.f32 %v1755, %v1871
      %v2030 = vadd.f32 %v1756, %v1876
      %v2031 = vadd.f32 %v1757, %v1881
      %v2032 = vadd.f32 %v1758, %v1886
      %v2033 = vadd.f32 %v1759, %v1891
      %v2034 = vadd.f32 %v1760, %v1896
      %v2035 = vadd.f32 %v1761, %v1901
      %v2036 = vadd.f32 %v1762, %v1906
      %v2037 = vadd.f32 %v1763, %v1911
      %v2038 = vadd.f32 %v1764, %v1916
      %v2039 = vadd.f32 %v1765, %v1921
      %v2040 = vadd.f32 %v1766, %v1926
      %v2041 = vadd.f32 %v1767, %v1931
      %v2042 = vadd.f32 %v1768, %v1936
      %v2043 = vadd.f32 %v1769, %v1941
      %v2044 = vadd.f32 %v1770, %v1946
      %v2045 = vadd.f32 %v1771, %v1951
      %v2046 = vadd.f32 %v1772, %v1956
      %v2047 = vadd.f32 %v1773, %v1961
      %v2048 = vadd.f32 %v1774, %v1966
      %v2049 = vadd.f32 %v1775, %v1971
      %v2050 = vadd.f32 %v1776, %v1976
      %v2051 = vadd.f32 %v1777, %v1981
      %v2052 = vadd.f32 %v1778, %v1986
      %v2053 = vadd.f32 %v1779, %v1991
      %v2054 = vadd.f32 %v1780, %v1996
      %v2055 = vadd.f32 %v1781, %v2001
      %v2056 = vadd.f32 %v1782, %v2006
      %v2057 = vadd.f32 %v1783, %v2011
      %v2058 = vadd.f32 %v1784, %v2016
      %v2059 = vadd.f32 %v1785, %v2021
      %v2060 = vadd.f32 %v1786, %v2026
      %v2061 = vld [vmem:[#allocation2 + $0x2] sm:$0xff]
      %v2062 = vld [vmem:[#allocation2 + $0xa] sm:$0xff]
      %v2063 = vld [vmem:[#allocation2 + $0x1a] sm:$0xff]
      %v2064 = vld [vmem:[#allocation2 + $0x22] sm:$0xff]
      %v2065 = vld [vmem:[#allocation2 + $0x32] sm:$0xff]
      %v2066 = vld [vmem:[#allocation2 + $0x3a] sm:$0xff]
      %v2067 = vld [vmem:[#allocation2 + $0x4a] sm:$0xff]
      %v2068 = vld [vmem:[#allocation2 + $0x52] sm:$0xff]
      %v2069 = vld [vmem:[#allocation2 + $0x62] sm:$0xff]
      %v2070 = vld [vmem:[#allocation2 + $0x6a] sm:$0xff]
      %v2071 = vld [vmem:[#allocation2 + $0x7a] sm:$0xff]
      %v2072 = vld [vmem:[#allocation2 + $0x82] sm:$0xff]
      %v2073 = vld [vmem:[#allocation2 + $0x92] sm:$0xff]
      %v2074 = vld [vmem:[#allocation2 + $0x9a] sm:$0xff]
      %v2075 = vld [vmem:[#allocation2 + $0xaa] sm:$0xff]
      %v2076 = vld [vmem:[#allocation2 + $0xb2] sm:$0xff]
      %v2077 = vld [vmem:[#allocation2 + $0xc2] sm:$0xff]
      %v2078 = vld [vmem:[#allocation2 + $0xca] sm:$0xff]
      %v2079 = vld [vmem:[#allocation2 + $0xda] sm:$0xff]
      %v2080 = vld [vmem:[#allocation2 + $0xe2] sm:$0xff]
      %v2081 = vld [vmem:[#allocation2 + $0xf2] sm:$0xff]
      %v2082 = vld [vmem:[#allocation2 + $0xfa] sm:$0xff]
      %v2083 = vld [vmem:[#allocation2 + $0x10a] sm:$0xff]
      %v2084 = vld [vmem:[#allocation2 + $0x112] sm:$0xff]
      %v2085 = vld [vmem:[#allocation2 + $0x122] sm:$0xff]
      %v2086 = vld [vmem:[#allocation2 + $0x12a] sm:$0xff]
      %v2087 = vld [vmem:[#allocation2 + $0x13a] sm:$0xff]
      %v2088 = vld [vmem:[#allocation2 + $0x142] sm:$0xff]
      %v2089 = vld [vmem:[#allocation2 + $0x152] sm:$0xff]
      %v2090 = vld [vmem:[#allocation2 + $0x15a] sm:$0xff]
      %v2091 = vld [vmem:[#allocation2 + $0x16a] sm:$0xff]
      %v2092 = vld [vmem:[#allocation2 + $0x172] sm:$0xff]
      %v2093 = vld [vmem:[#allocation2 + $0x182] sm:$0xff]
      %v2094 = vld [vmem:[#allocation2 + $0x18a] sm:$0xff]
      %v2095 = vld [vmem:[#allocation2 + $0x19a] sm:$0xff]
      %v2096 = vld [vmem:[#allocation2 + $0x1a2] sm:$0xff]
      %s2097 = scalar_lea.vmem %s184, 256
      %v2098 = vld [vmem:[%s2097] sm:$0xff]
      %v2099 = vld [vmem:[%s2097 + $0x8] sm:$0xff]
      %v2100 = vld [vmem:[%s2097 + $0x10] sm:$0xff]
      %v2101 = vld [vmem:[%s2097 + $0x18] sm:$0xff]
      %v2102 = vld [vmem:[%s2097 + $0x20] sm:$0xff]
      %v2103 = vld [vmem:[%s2097 + $0x28] sm:$0xff]
      %v2104 = vld [vmem:[%s2097 + $0x30] sm:$0xff]
      %v2105 = vld [vmem:[%s2097 + $0x38] sm:$0xff]
      %v2106 = vld [vmem:[%s2097 + $0x40] sm:$0xff]
      %v2107 = vld [vmem:[%s2097 + $0x48] sm:$0xff]
      %v2108 = vld [vmem:[%s2097 + $0x50] sm:$0xff]
      %v2109 = vld [vmem:[%s2097 + $0x58] sm:$0xff]
      %v2110 = vld [vmem:[%s2097 + $0x60] sm:$0xff]
      %v2111 = vld [vmem:[%s2097 + $0x68] sm:$0xff]
      %v2112 = vld [vmem:[%s2097 + $0x70] sm:$0xff]
      %v2113 = vld [vmem:[%s2097 + $0x78] sm:$0xff]
      %2114 = vmatprep.subr.mxu0 0.0
      %2115 = vmatpush1.msra.mxu0 %v2098
      %2116 = vmatprep.subr.mxu0 0.0
      %2117 = vmatpush1.msra.mxu0 %v2099
      %2118 = vmatprep.subr.mxu0 0.0
      %2119 = vmatpush1.msra.mxu0 %v2100
      %2120 = vmatprep.subr.mxu0 0.0
      %2121 = vmatpush1.msra.mxu0 %v2101
      %2122 = vmatprep.subr.mxu0 0.0
      %2123 = vmatpush1.msra.mxu0 %v2102
      %2124 = vmatprep.subr.mxu0 0.0
      %2125 = vmatpush1.msra.mxu0 %v2103
      %2126 = vmatprep.subr.mxu0 0.0
      %2127 = vmatpush1.msra.mxu0 %v2104
      %2128 = vmatprep.subr.mxu0 0.0
      %2129 = vmatpush1.msra.mxu0 %v2105
      %2130 = vmatprep.subr.mxu0 0.0
      %2131 = vmatpush1.msra.mxu0 %v2106
      %2132 = vmatprep.subr.mxu0 0.0
      %2133 = vmatpush1.msra.mxu0 %v2107
      %2134 = vmatprep.subr.mxu0 0.0
      %2135 = vmatpush1.msra.mxu0 %v2108
      %2136 = vmatprep.subr.mxu0 0.0
      %2137 = vmatpush1.msra.mxu0 %v2109
      %2138 = vmatprep.subr.mxu0 0.0
      %2139 = vmatpush1.msra.mxu0 %v2110
      %2140 = vmatprep.subr.mxu0 0.0
      %2141 = vmatpush1.msra.mxu0 %v2111
      %2142 = vmatprep.subr.mxu0 0.0
      %2143 = vmatpush1.msra.mxu0 %v2112
      %2144 = vmatprep.subr.mxu0 0.0
      %2145 = vmatpush1.msra.mxu0 %v2113
      %2146 = vmatprep.subr.mxu0 0.0
      %2147 = vmatpush1.msra.mxu0 0.0
      %2148 = vmatprep.subr.mxu0 0.0
      %2149 = vmatpush1.msra.mxu0 0.0
      %2150 = vmatprep.subr.mxu0 0.0
      %2151 = vmatpush1.msra.mxu0 0.0
      %2152 = vmatprep.subr.mxu0 0.0
      %2153 = vmatpush1.msra.mxu0 0.0
      %2154 = vmatprep.subr.mxu0 0.0
      %2155 = vmatpush1.msra.mxu0 0.0
      %2156 = vmatprep.subr.mxu0 0.0
      %2157 = vmatpush1.msra.mxu0 0.0
      %2158 = vmatprep.subr.mxu0 0.0
      %2159 = vmatpush1.msra.mxu0 0.0
      %2160 = vmatprep.subr.mxu0 0.0
      %2161 = vmatpush1.msra.mxu0 0.0
      %2162 = vmatprep.subr.mxu0 0.0
      %2163 = vmatpush1.msra.mxu0 0.0
      %2164 = vmatprep.subr.mxu0 0.0
      %2165 = vmatpush1.msra.mxu0 0.0
      %2166 = vmatprep.subr.mxu0 0.0
      %2167 = vmatpush1.msra.mxu0 0.0
      %2168 = vmatprep.subr.mxu0 0.0
      %2169 = vmatpush1.msra.mxu0 0.0
      %2170 = vmatprep.subr.mxu0 0.0
      %2171 = vmatpush1.msra.mxu0 0.0
      %2172 = vmatprep.subr.mxu0 0.0
      %2173 = vmatpush1.msra.mxu0 0.0
      %2174 = vmatprep.subr.mxu0 0.0
      %2175 = vmatpush1.msra.mxu0 0.0
      %2176 = vmatprep.subr.mxu0 0.0
      %2177 = vmatpush1.msra.mxu0 0.0
      %2178 = vmatprep.mubr.f32.mxu0 0.0
      %2179 = vmatmul.mubr.f32.gmra.mrb[0].mxu0 %v2061
      %v2180 = vpop.f32.mrb[0].mxu0
      %v2181 = vadd.f32 0.0, %v2180
      %v2182 = vpop.f32.mrb[0].mxu0
      %2183 = vmatprep.mubr.f32.mxu0 0.0
      %2184 = vmatmul.mubr.f32.gmra.mrb[0].mxu0 %v2062
      %v2185 = vpop.f32.mrb[0].mxu0
      %v2186 = vadd.f32 0.0, %v2185
      %v2187 = vpop.f32.mrb[0].mxu0
      %2188 = vmatprep.mubr.f32.mxu0 0.0
      %2189 = vmatmul.mubr.f32.gmra.mrb[0].mxu0 %v2063
      %v2190 = vpop.f32.mrb[0].mxu0
      %v2191 = vadd.f32 0.0, %v2190
      %v2192 = vpop.f32.mrb[0].mxu0
      %2193 = vmatprep.mubr.f32.mxu0 0.0
      %2194 = vmatmul.mubr.f32.gmra.mrb[0].mxu0 %v2064
      %v2195 = vpop.f32.mrb[0].mxu0
      %v2196 = vadd.f32 0.0, %v2195
      %v2197 = vpop.f32.mrb[0].mxu0
      %2198 = vmatprep.mubr.f32.mxu0 0.0
      %2199 = vmatmul.mubr.f32.gmra.mrb[0].mxu0 %v2065
      %v2200 = vpop.f32.mrb[0].mxu0
      %v2201 = vadd.f32 0.0, %v2200
      %v2202 = vpop.f32.mrb[0].mxu0
      %2203 = vmatprep.mubr.f32.mxu0 0.0
      %2204 = vmatmul.mubr.f32.gmra.mrb[0].mxu0 %v2066
      %v2205 = vpop.f32.mrb[0].mxu0
      %v2206 = vadd.f32 0.0, %v2205
      %v2207 = vpop.f32.mrb[0].mxu0
      %2208 = vmatprep.mubr.f32.mxu0 0.0
      %2209 = vmatmul.mubr.f32.gmra.mrb[0].mxu0 %v2067
      %v2210 = vpop.f32.mrb[0].mxu0
      %v2211 = vadd.f32 0.0, %v2210
      %v2212 = vpop.f32.mrb[0].mxu0
      %2213 = vmatprep.mubr.f32.mxu0 0.0
      %2214 = vmatmul.mubr.f32.gmra.mrb[0].mxu0 %v2068
      %v2215 = vpop.f32.mrb[0].mxu0
      %v2216 = vadd.f32 0.0, %v2215
      %v2217 = vpop.f32.mrb[0].mxu0
      %2218 = vmatprep.mubr.f32.mxu0 0.0
      %2219 = vmatmul.mubr.f32.gmra.mrb[0].mxu0 %v2069
      %v2220 = vpop.f32.mrb[0].mxu0
      %v2221 = vadd.f32 0.0, %v2220
      %v2222 = vpop.f32.mrb[0].mxu0
      %2223 = vmatprep.mubr.f32.mxu0 0.0
      %2224 = vmatmul.mubr.f32.gmra.mrb[0].mxu0 %v2070
      %v2225 = vpop.f32.mrb[0].mxu0
      %v2226 = vadd.f32 0.0, %v2225
      %v2227 = vpop.f32.mrb[0].mxu0
      %2228 = vmatprep.mubr.f32.mxu0 0.0
      %2229 = vmatmul.mubr.f32.gmra.mrb[0].mxu0 %v2071
      %v2230 = vpop.f32.mrb[0].mxu0
      %v2231 = vadd.f32 0.0, %v2230
      %v2232 = vpop.f32.mrb[0].mxu0
      %2233 = vmatprep.mubr.f32.mxu0 0.0
      %2234 = vmatmul.mubr.f32.gmra.mrb[0].mxu0 %v2072
      %v2235 = vpop.f32.mrb[0].mxu0
      %v2236 = vadd.f32 0.0, %v2235
      %v2237 = vpop.f32.mrb[0].mxu0
      %2238 = vmatprep.mubr.f32.mxu0 0.0
      %2239 = vmatmul.mubr.f32.gmra.mrb[0].mxu0 %v2073
      %v2240 = vpop.f32.mrb[0].mxu0
      %v2241 = vadd.f32 0.0, %v2240
      %v2242 = vpop.f32.mrb[0].mxu0
      %2243 = vmatprep.mubr.f32.mxu0 0.0
      %2244 = vmatmul.mubr.f32.gmra.mrb[0].mxu0 %v2074
      %v2245 = vpop.f32.mrb[0].mxu0
      %v2246 = vadd.f32 0.0, %v2245
      %v2247 = vpop.f32.mrb[0].mxu0
      %2248 = vmatprep.mubr.f32.mxu0 0.0
      %2249 = vmatmul.mubr.f32.gmra.mrb[0].mxu0 %v2075
      %v2250 = vpop.f32.mrb[0].mxu0
      %v2251 = vadd.f32 0.0, %v2250
      %v2252 = vpop.f32.mrb[0].mxu0
      %2253 = vmatprep.mubr.f32.mxu0 0.0
      %2254 = vmatmul.mubr.f32.gmra.mrb[0].mxu0 %v2076
      %v2255 = vpop.f32.mrb[0].mxu0
      %v2256 = vadd.f32 0.0, %v2255
      %v2257 = vpop.f32.mrb[0].mxu0
      %2258 = vmatprep.mubr.f32.mxu0 0.0
      %2259 = vmatmul.mubr.f32.gmra.mrb[0].mxu0 %v2077
      %v2260 = vpop.f32.mrb[0].mxu0
      %v2261 = vadd.f32 0.0, %v2260
      %v2262 = vpop.f32.mrb[0].mxu0
      %2263 = vmatprep.mubr.f32.mxu0 0.0
      %2264 = vmatmul.mubr.f32.gmra.mrb[0].mxu0 %v2078
      %v2265 = vpop.f32.mrb[0].mxu0
      %v2266 = vadd.f32 0.0, %v2265
      %v2267 = vpop.f32.mrb[0].mxu0
      %2268 = vmatprep.mubr.f32.mxu0 0.0
      %2269 = vmatmul.mubr.f32.gmra.mrb[0].mxu0 %v2079
      %v2270 = vpop.f32.mrb[0].mxu0
      %v2271 = vadd.f32 0.0, %v2270
      %v2272 = vpop.f32.mrb[0].mxu0
      %2273 = vmatprep.mubr.f32.mxu0 0.0
      %2274 = vmatmul.mubr.f32.gmra.mrb[0].mxu0 %v2080
      %v2275 = vpop.f32.mrb[0].mxu0
      %v2276 = vadd.f32 0.0, %v2275
      %v2277 = vpop.f32.mrb[0].mxu0
      %2278 = vmatprep.mubr.f32.mxu0 0.0
      %2279 = vmatmul.mubr.f32.gmra.mrb[0].mxu0 %v2081
      %v2280 = vpop.f32.mrb[0].mxu0
      %v2281 = vadd.f32 0.0, %v2280
      %v2282 = vpop.f32.mrb[0].mxu0
      %2283 = vmatprep.mubr.f32.mxu0 0.0
      %2284 = vmatmul.mubr.f32.gmra.mrb[0].mxu0 %v2082
      %v2285 = vpop.f32.mrb[0].mxu0
      %v2286 = vadd.f32 0.0, %v2285
      %v2287 = vpop.f32.mrb[0].mxu0
      %2288 = vmatprep.mubr.f32.mxu0 0.0
      %2289 = vmatmul.mubr.f32.gmra.mrb[0].mxu0 %v2083
      %v2290 = vpop.f32.mrb[0].mxu0
      %v2291 = vadd.f32 0.0, %v2290
      %v2292 = vpop.f32.mrb[0].mxu0
      %2293 = vmatprep.mubr.f32.mxu0 0.0
      %2294 = vmatmul.mubr.f32.gmra.mrb[0].mxu0 %v2084
      %v2295 = vpop.f32.mrb[0].mxu0
      %v2296 = vadd.f32 0.0, %v2295
      %v2297 = vpop.f32.mrb[0].mxu0
      %2298 = vmatprep.mubr.f32.mxu0 0.0
      %2299 = vmatmul.mubr.f32.gmra.mrb[0].mxu0 %v2085
      %v2300 = vpop.f32.mrb[0].mxu0
      %v2301 = vadd.f32 0.0, %v2300
      %v2302 = vpop.f32.mrb[0].mxu0
      %2303 = vmatprep.mubr.f32.mxu0 0.0
      %2304 = vmatmul.mubr.f32.gmra.mrb[0].mxu0 %v2086
      %v2305 = vpop.f32.mrb[0].mxu0
      %v2306 = vadd.f32 0.0, %v2305
      %v2307 = vpop.f32.mrb[0].mxu0
      %2308 = vmatprep.mubr.f32.mxu0 0.0
      %2309 = vmatmul.mubr.f32.gmra.mrb[0].mxu0 %v2087
      %v2310 = vpop.f32.mrb[0].mxu0
      %v2311 = vadd.f32 0.0, %v2310
      %v2312 = vpop.f32.mrb[0].mxu0
      %2313 = vmatprep.mubr.f32.mxu0 0.0
      %2314 = vmatmul.mubr.f32.gmra.mrb[0].mxu0 %v2088
      %v2315 = vpop.f32.mrb[0].mxu0
      %v2316 = vadd.f32 0.0, %v2315
      %v2317 = vpop.f32.mrb[0].mxu0
      %2318 = vmatprep.mubr.f32.mxu0 0.0
      %2319 = vmatmul.mubr.f32.gmra.mrb[0].mxu0 %v2089
      %v2320 = vpop.f32.mrb[0].mxu0
      %v2321 = vadd.f32 0.0, %v2320
      %v2322 = vpop.f32.mrb[0].mxu0
      %2323 = vmatprep.mubr.f32.mxu0 0.0
      %2324 = vmatmul.mubr.f32.gmra.mrb[0].mxu0 %v2090
      %v2325 = vpop.f32.mrb[0].mxu0
      %v2326 = vadd.f32 0.0, %v2325
      %v2327 = vpop.f32.mrb[0].mxu0
      %2328 = vmatprep.mubr.f32.mxu0 0.0
      %2329 = vmatmul.mubr.f32.gmra.mrb[0].mxu0 %v2091
      %v2330 = vpop.f32.mrb[0].mxu0
      %v2331 = vadd.f32 0.0, %v2330
      %v2332 = vpop.f32.mrb[0].mxu0
      %2333 = vmatprep.mubr.f32.mxu0 0.0
      %2334 = vmatmul.mubr.f32.gmra.mrb[0].mxu0 %v2092
      %v2335 = vpop.f32.mrb[0].mxu0
      %v2336 = vadd.f32 0.0, %v2335
      %v2337 = vpop.f32.mrb[0].mxu0
      %2338 = vdwg.mxu0
      %v2339 = vadd.f32 %v2029, %v2181
      %v2340 = vadd.f32 %v2030, %v2186
      %v2341 = vadd.f32 %v2031, %v2191
      %v2342 = vadd.f32 %v2032, %v2196
      %v2343 = vadd.f32 %v2033, %v2201
      %v2344 = vadd.f32 %v2034, %v2206
      %v2345 = vadd.f32 %v2035, %v2211
      %v2346 = vadd.f32 %v2036, %v2216
      %v2347 = vadd.f32 %v2037, %v2221
      %v2348 = vadd.f32 %v2038, %v2226
      %v2349 = vadd.f32 %v2039, %v2231
      %v2350 = vadd.f32 %v2040, %v2236
      %v2351 = vadd.f32 %v2041, %v2241
      %v2352 = vadd.f32 %v2042, %v2246
      %v2353 = vadd.f32 %v2043, %v2251
      %v2354 = vadd.f32 %v2044, %v2256
      %v2355 = vadd.f32 %v2045, %v2261
      %v2356 = vadd.f32 %v2046, %v2266
      %v2357 = vadd.f32 %v2047, %v2271
      %v2358 = vadd.f32 %v2048, %v2276
      %v2359 = vadd.f32 %v2049, %v2281
      %v2360 = vadd.f32 %v2050, %v2286
      %v2361 = vadd.f32 %v2051, %v2291
      %v2362 = vadd.f32 %v2052, %v2296
      %v2363 = vadd.f32 %v2053, %v2301
      %v2364 = vadd.f32 %v2054, %v2306
      %v2365 = vadd.f32 %v2055, %v2311
      %v2366 = vadd.f32 %v2056, %v2316
      %v2367 = vadd.f32 %v2057, %v2321
      %v2368 = vadd.f32 %v2058, %v2326
      %v2369 = vadd.f32 %v2059, %v2331
      %v2370 = vadd.f32 %v2060, %v2336
      %s2371 = scalar_lea.vmem %s184, 640
      %v2372 = vld [vmem:[%s2371] sm:$0xff]
      %v2373 = vld [vmem:[%s2371 + $0x8] sm:$0xff]
      %v2374 = vld [vmem:[%s2371 + $0x10] sm:$0xff]
      %v2375 = vld [vmem:[%s2371 + $0x18] sm:$0xff]
      %v2376 = vld [vmem:[%s2371 + $0x20] sm:$0xff]
      %v2377 = vld [vmem:[%s2371 + $0x28] sm:$0xff]
      %v2378 = vld [vmem:[%s2371 + $0x30] sm:$0xff]
      %v2379 = vld [vmem:[%s2371 + $0x38] sm:$0xff]
      %v2380 = vld [vmem:[%s2371 + $0x40] sm:$0xff]
      %v2381 = vld [vmem:[%s2371 + $0x48] sm:$0xff]
      %v2382 = vld [vmem:[%s2371 + $0x50] sm:$0xff]
      %v2383 = vld [vmem:[%s2371 + $0x58] sm:$0xff]
      %v2384 = vld [vmem:[%s2371 + $0x60] sm:$0xff]
      %v2385 = vld [vmem:[%s2371 + $0x68] sm:$0xff]
      %v2386 = vld [vmem:[%s2371 + $0x70] sm:$0xff]
      %v2387 = vld [vmem:[%s2371 + $0x78] sm:$0xff]
      %2388 = vmatprep.subr.mxu0 0.0
      %2389 = vmatpush1.msra.mxu0 %v2372
      %2390 = vmatprep.subr.mxu0 0.0
      %2391 = vmatpush1.msra.mxu0 %v2373
      %2392 = vmatprep.subr.mxu0 0.0
      %2393 = vmatpush1.msra.mxu0 %v2374
      %2394 = vmatprep.subr.mxu0 0.0
      %2395 = vmatpush1.msra.mxu0 %v2375
      %2396 = vmatprep.subr.mxu0 0.0
      %2397 = vmatpush1.msra.mxu0 %v2376
      %2398 = vmatprep.subr.mxu0 0.0
      %2399 = vmatpush1.msra.mxu0 %v2377
      %2400 = vmatprep.subr.mxu0 0.0
      %2401 = vmatpush1.msra.mxu0 %v2378
      %2402 = vmatprep.subr.mxu0 0.0
      %2403 = vmatpush1.msra.mxu0 %v2379
      %2404 = vmatprep.subr.mxu0 0.0
      %2405 = vmatpush1.msra.mxu0 %v2380
      %2406 = vmatprep.subr.mxu0 0.0
      %2407 = vmatpush1.msra.mxu0 %v2381
      %2408 = vmatprep.subr.mxu0 0.0
      %2409 = vmatpush1.msra.mxu0 %v2382
      %2410 = vmatprep.subr.mxu0 0.0
      %2411 = vmatpush1.msra.mxu0 %v2383
      %2412 = vmatprep.subr.mxu0 0.0
      %2413 = vmatpush1.msra.mxu0 %v2384
      %2414 = vmatprep.subr.mxu0 0.0
      %2415 = vmatpush1.msra.mxu0 %v2385
      %2416 = vmatprep.subr.mxu0 0.0
      %2417 = vmatpush1.msra.mxu0 %v2386
      %2418 = vmatprep.subr.mxu0 0.0
      %2419 = vmatpush1.msra.mxu0 %v2387
      %2420 = vmatprep.subr.mxu0 0.0
      %2421 = vmatpush1.msra.mxu0 0.0
      %2422 = vmatprep.subr.mxu0 0.0
      %2423 = vmatpush1.msra.mxu0 0.0
      %2424 = vmatprep.subr.mxu0 0.0
      %2425 = vmatpush1.msra.mxu0 0.0
      %2426 = vmatprep.subr.mxu0 0.0
      %2427 = vmatpush1.msra.mxu0 0.0
      %2428 = vmatprep.subr.mxu0 0.0
      %2429 = vmatpush1.msra.mxu0 0.0
      %2430 = vmatprep.subr.mxu0 0.0
      %2431 = vmatpush1.msra.mxu0 0.0
      %2432 = vmatprep.subr.mxu0 0.0
      %2433 = vmatpush1.msra.mxu0 0.0
      %2434 = vmatprep.subr.mxu0 0.0
      %2435 = vmatpush1.msra.mxu0 0.0
      %2436 = vmatprep.subr.mxu0 0.0
      %2437 = vmatpush1.msra.mxu0 0.0
      %2438 = vmatprep.subr.mxu0 0.0
      %2439 = vmatpush1.msra.mxu0 0.0
      %2440 = vmatprep.subr.mxu0 0.0
      %2441 = vmatpush1.msra.mxu0 0.0
      %2442 = vmatprep.subr.mxu0 0.0
      %2443 = vmatpush1.msra.mxu0 0.0
      %2444 = vmatprep.subr.mxu0 0.0
      %2445 = vmatpush1.msra.mxu0 0.0
      %2446 = vmatprep.subr.mxu0 0.0
      %2447 = vmatpush1.msra.mxu0 0.0
      %2448 = vmatprep.subr.mxu0 0.0
      %2449 = vmatpush1.msra.mxu0 0.0
      %2450 = vmatprep.subr.mxu0 0.0
      %2451 = vmatpush1.msra.mxu0 0.0
      %2452 = vmatprep.mubr.f32.mxu0 0.0
      %2453 = vmatmul.mubr.f32.gmra.mrb[0].mxu0 %v2063
      %v2454 = vpop.f32.mrb[0].mxu0
      %v2455 = vadd.f32 0.0, %v2454
      %v2456 = vpop.f32.mrb[0].mxu0
      %2457 = vmatprep.mubr.f32.mxu0 0.0
      %2458 = vmatmul.mubr.f32.gmra.mrb[0].mxu0 %v2064
      %v2459 = vpop.f32.mrb[0].mxu0
      %v2460 = vadd.f32 0.0, %v2459
      %v2461 = vpop.f32.mrb[0].mxu0
      %2462 = vmatprep.mubr.f32.mxu0 0.0
      %2463 = vmatmul.mubr.f32.gmra.mrb[0].mxu0 %v2065
      %v2464 = vpop.f32.mrb[0].mxu0
      %v2465 = vadd.f32 0.0, %v2464
      %v2466 = vpop.f32.mrb[0].mxu0
      %2467 = vmatprep.mubr.f32.mxu0 0.0
      %2468 = vmatmul.mubr.f32.gmra.mrb[0].mxu0 %v2066
      %v2469 = vpop.f32.mrb[0].mxu0
      %v2470 = vadd.f32 0.0, %v2469
      %v2471 = vpop.f32.mrb[0].mxu0
      %2472 = vmatprep.mubr.f32.mxu0 0.0
      %2473 = vmatmul.mubr.f32.gmra.mrb[0].mxu0 %v2067
      %v2474 = vpop.f32.mrb[0].mxu0
      %v2475 = vadd.f32 0.0, %v2474
      %v2476 = vpop.f32.mrb[0].mxu0
      %2477 = vmatprep.mubr.f32.mxu0 0.0
      %2478 = vmatmul.mubr.f32.gmra.mrb[0].mxu0 %v2068
      %v2479 = vpop.f32.mrb[0].mxu0
      %v2480 = vadd.f32 0.0, %v2479
      %v2481 = vpop.f32.mrb[0].mxu0
      %2482 = vmatprep.mubr.f32.mxu0 0.0
      %2483 = vmatmul.mubr.f32.gmra.mrb[0].mxu0 %v2069
      %v2484 = vpop.f32.mrb[0].mxu0
      %v2485 = vadd.f32 0.0, %v2484
      %v2486 = vpop.f32.mrb[0].mxu0
      %2487 = vmatprep.mubr.f32.mxu0 0.0
      %2488 = vmatmul.mubr.f32.gmra.mrb[0].mxu0 %v2070
      %v2489 = vpop.f32.mrb[0].mxu0
      %v2490 = vadd.f32 0.0, %v2489
      %v2491 = vpop.f32.mrb[0].mxu0
      %2492 = vmatprep.mubr.f32.mxu0 0.0
      %2493 = vmatmul.mubr.f32.gmra.mrb[0].mxu0 %v2071
      %v2494 = vpop.f32.mrb[0].mxu0
      %v2495 = vadd.f32 0.0, %v2494
      %v2496 = vpop.f32.mrb[0].mxu0
      %2497 = vmatprep.mubr.f32.mxu0 0.0
      %2498 = vmatmul.mubr.f32.gmra.mrb[0].mxu0 %v2072
      %v2499 = vpop.f32.mrb[0].mxu0
      %v2500 = vadd.f32 0.0, %v2499
      %v2501 = vpop.f32.mrb[0].mxu0
      %2502 = vmatprep.mubr.f32.mxu0 0.0
      %2503 = vmatmul.mubr.f32.gmra.mrb[0].mxu0 %v2073
      %v2504 = vpop.f32.mrb[0].mxu0
      %v2505 = vadd.f32 0.0, %v2504
      %v2506 = vpop.f32.mrb[0].mxu0
      %2507 = vmatprep.mubr.f32.mxu0 0.0
      %2508 = vmatmul.mubr.f32.gmra.mrb[0].mxu0 %v2074
      %v2509 = vpop.f32.mrb[0].mxu0
      %v2510 = vadd.f32 0.0, %v2509
      %v2511 = vpop.f32.mrb[0].mxu0
      %2512 = vmatprep.mubr.f32.mxu0 0.0
      %2513 = vmatmul.mubr.f32.gmra.mrb[0].mxu0 %v2075
      %v2514 = vpop.f32.mrb[0].mxu0
      %v2515 = vadd.f32 0.0, %v2514
      %v2516 = vpop.f32.mrb[0].mxu0
      %2517 = vmatprep.mubr.f32.mxu0 0.0
      %2518 = vmatmul.mubr.f32.gmra.mrb[0].mxu0 %v2076
      %v2519 = vpop.f32.mrb[0].mxu0
      %v2520 = vadd.f32 0.0, %v2519
      %v2521 = vpop.f32.mrb[0].mxu0
      %2522 = vmatprep.mubr.f32.mxu0 0.0
      %2523 = vmatmul.mubr.f32.gmra.mrb[0].mxu0 %v2077
      %v2524 = vpop.f32.mrb[0].mxu0
      %v2525 = vadd.f32 0.0, %v2524
      %v2526 = vpop.f32.mrb[0].mxu0
      %2527 = vmatprep.mubr.f32.mxu0 0.0
      %2528 = vmatmul.mubr.f32.gmra.mrb[0].mxu0 %v2078
      %v2529 = vpop.f32.mrb[0].mxu0
      %v2530 = vadd.f32 0.0, %v2529
      %v2531 = vpop.f32.mrb[0].mxu0
      %2532 = vmatprep.mubr.f32.mxu0 0.0
      %2533 = vmatmul.mubr.f32.gmra.mrb[0].mxu0 %v2079
      %v2534 = vpop.f32.mrb[0].mxu0
      %v2535 = vadd.f32 0.0, %v2534
      %v2536 = vpop.f32.mrb[0].mxu0
      %2537 = vmatprep.mubr.f32.mxu0 0.0
      %2538 = vmatmul.mubr.f32.gmra.mrb[0].mxu0 %v2080
      %v2539 = vpop.f32.mrb[0].mxu0
      %v2540 = vadd.f32 0.0, %v2539
      %v2541 = vpop.f32.mrb[0].mxu0
      %2542 = vmatprep.mubr.f32.mxu0 0.0
      %2543 = vmatmul.mubr.f32.gmra.mrb[0].mxu0 %v2081
      %v2544 = vpop.f32.mrb[0].mxu0
      %v2545 = vadd.f32 0.0, %v2544
      %v2546 = vpop.f32.mrb[0].mxu0
      %2547 = vmatprep.mubr.f32.mxu0 0.0
      %2548 = vmatmul.mubr.f32.gmra.mrb[0].mxu0 %v2082
      %v2549 = vpop.f32.mrb[0].mxu0
      %v2550 = vadd.f32 0.0, %v2549
      %v2551 = vpop.f32.mrb[0].mxu0
      %2552 = vmatprep.mubr.f32.mxu0 0.0
      %2553 = vmatmul.mubr.f32.gmra.mrb[0].mxu0 %v2083
      %v2554 = vpop.f32.mrb[0].mxu0
      %v2555 = vadd.f32 0.0, %v2554
      %v2556 = vpop.f32.mrb[0].mxu0
      %2557 = vmatprep.mubr.f32.mxu0 0.0
      %2558 = vmatmul.mubr.f32.gmra.mrb[0].mxu0 %v2084
      %v2559 = vpop.f32.mrb[0].mxu0
      %v2560 = vadd.f32 0.0, %v2559
      %v2561 = vpop.f32.mrb[0].mxu0
      %2562 = vmatprep.mubr.f32.mxu0 0.0
      %2563 = vmatmul.mubr.f32.gmra.mrb[0].mxu0 %v2085
      %v2564 = vpop.f32.mrb[0].mxu0
      %v2565 = vadd.f32 0.0, %v2564
      %v2566 = vpop.f32.mrb[0].mxu0
      %2567 = vmatprep.mubr.f32.mxu0 0.0
      %2568 = vmatmul.mubr.f32.gmra.mrb[0].mxu0 %v2086
      %v2569 = vpop.f32.mrb[0].mxu0
      %v2570 = vadd.f32 0.0, %v2569
      %v2571 = vpop.f32.mrb[0].mxu0
      %2572 = vmatprep.mubr.f32.mxu0 0.0
      %2573 = vmatmul.mubr.f32.gmra.mrb[0].mxu0 %v2087
      %v2574 = vpop.f32.mrb[0].mxu0
      %v2575 = vadd.f32 0.0, %v2574
      %v2576 = vpop.f32.mrb[0].mxu0
      %2577 = vmatprep.mubr.f32.mxu0 0.0
      %2578 = vmatmul.mubr.f32.gmra.mrb[0].mxu0 %v2088
      %v2579 = vpop.f32.mrb[0].mxu0
      %v2580 = vadd.f32 0.0, %v2579
      %v2581 = vpop.f32.mrb[0].mxu0
      %2582 = vmatprep.mubr.f32.mxu0 0.0
      %2583 = vmatmul.mubr.f32.gmra.mrb[0].mxu0 %v2089
      %v2584 = vpop.f32.mrb[0].mxu0
      %v2585 = vadd.f32 0.0, %v2584
      %v2586 = vpop.f32.mrb[0].mxu0
      %2587 = vmatprep.mubr.f32.mxu0 0.0
      %2588 = vmatmul.mubr.f32.gmra.mrb[0].mxu0 %v2090
      %v2589 = vpop.f32.mrb[0].mxu0
      %v2590 = vadd.f32 0.0, %v2589
      %v2591 = vpop.f32.mrb[0].mxu0
      %2592 = vmatprep.mubr.f32.mxu0 0.0
      %2593 = vmatmul.mubr.f32.gmra.mrb[0].mxu0 %v2091
      %v2594 = vpop.f32.mrb[0].mxu0
      %v2595 = vadd.f32 0.0, %v2594
      %v2596 = vpop.f32.mrb[0].mxu0
      %2597 = vmatprep.mubr.f32.mxu0 0.0
      %2598 = vmatmul.mubr.f32.gmra.mrb[0].mxu0 %v2092
      %v2599 = vpop.f32.mrb[0].mxu0
      %v2600 = vadd.f32 0.0, %v2599
      %v2601 = vpop.f32.mrb[0].mxu0
      %2602 = vmatprep.mubr.f32.mxu0 0.0
      %2603 = vmatmul.mubr.f32.gmra.mrb[0].mxu0 %v2093
      %v2604 = vpop.f32.mrb[0].mxu0
      %v2605 = vadd.f32 0.0, %v2604
      %v2606 = vpop.f32.mrb[0].mxu0
      %2607 = vmatprep.mubr.f32.mxu0 0.0
      %2608 = vmatmul.mubr.f32.gmra.mrb[0].mxu0 %v2094
      %v2609 = vpop.f32.mrb[0].mxu0
      %v2610 = vadd.f32 0.0, %v2609
      %v2611 = vpop.f32.mrb[0].mxu0
      %2612 = vdwg.mxu0
      %v2613 = vadd.f32 %v2339, %v2455
      %v2614 = vadd.f32 %v2340, %v2460
      %v2615 = vadd.f32 %v2341, %v2465
      %v2616 = vadd.f32 %v2342, %v2470
      %v2617 = vadd.f32 %v2343, %v2475
      %v2618 = vadd.f32 %v2344, %v2480
      %v2619 = vadd.f32 %v2345, %v2485
      %v2620 = vadd.f32 %v2346, %v2490
      %v2621 = vadd.f32 %v2347, %v2495
      %v2622 = vadd.f32 %v2348, %v2500
      %v2623 = vadd.f32 %v2349, %v2505
      %v2624 = vadd.f32 %v2350, %v2510
      %v2625 = vadd.f32 %v2351, %v2515
      %v2626 = vadd.f32 %v2352, %v2520
      %v2627 = vadd.f32 %v2353, %v2525
      %v2628 = vadd.f32 %v2354, %v2530
      %v2629 = vadd.f32 %v2355, %v2535
      %v2630 = vadd.f32 %v2356, %v2540
      %v2631 = vadd.f32 %v2357, %v2545
      %v2632 = vadd.f32 %v2358, %v2550
      %v2633 = vadd.f32 %v2359, %v2555
      %v2634 = vadd.f32 %v2360, %v2560
      %v2635 = vadd.f32 %v2361, %v2565
      %v2636 = vadd.f32 %v2362, %v2570
      %v2637 = vadd.f32 %v2363, %v2575
      %v2638 = vadd.f32 %v2364, %v2580
      %v2639 = vadd.f32 %v2365, %v2585
      %v2640 = vadd.f32 %v2366, %v2590
      %v2641 = vadd.f32 %v2367, %v2595
      %v2642 = vadd.f32 %v2368, %v2600
      %v2643 = vadd.f32 %v2369, %v2605
      %v2644 = vadd.f32 %v2370, %v2610
      %s2645 = scalar_lea.vmem %s184, 1024
      %v2646 = vld [vmem:[%s2645] sm:$0xff]
      %v2647 = vld [vmem:[%s2645 + $0x8] sm:$0xff]
      %v2648 = vld [vmem:[%s2645 + $0x10] sm:$0xff]
      %v2649 = vld [vmem:[%s2645 + $0x18] sm:$0xff]
      %v2650 = vld [vmem:[%s2645 + $0x20] sm:$0xff]
      %v2651 = vld [vmem:[%s2645 + $0x28] sm:$0xff]
      %v2652 = vld [vmem:[%s2645 + $0x30] sm:$0xff]
      %v2653 = vld [vmem:[%s2645 + $0x38] sm:$0xff]
      %v2654 = vld [vmem:[%s2645 + $0x40] sm:$0xff]
      %v2655 = vld [vmem:[%s2645 + $0x48] sm:$0xff]
      %v2656 = vld [vmem:[%s2645 + $0x50] sm:$0xff]
      %v2657 = vld [vmem:[%s2645 + $0x58] sm:$0xff]
      %v2658 = vld [vmem:[%s2645 + $0x60] sm:$0xff]
      %v2659 = vld [vmem:[%s2645 + $0x68] sm:$0xff]
      %v2660 = vld [vmem:[%s2645 + $0x70] sm:$0xff]
      %v2661 = vld [vmem:[%s2645 + $0x78] sm:$0xff]
      %2662 = vmatprep.subr.mxu0 0.0
      %2663 = vmatpush1.msra.mxu0 %v2646
      %2664 = vmatprep.subr.mxu0 0.0
      %2665 = vmatpush1.msra.mxu0 %v2647
      %2666 = vmatprep.subr.mxu0 0.0
      %2667 = vmatpush1.msra.mxu0 %v2648
      %2668 = vmatprep.subr.mxu0 0.0
      %2669 = vmatpush1.msra.mxu0 %v2649
      %2670 = vmatprep.subr.mxu0 0.0
      %2671 = vmatpush1.msra.mxu0 %v2650
      %2672 = vmatprep.subr.mxu0 0.0
      %2673 = vmatpush1.msra.mxu0 %v2651
      %2674 = vmatprep.subr.mxu0 0.0
      %2675 = vmatpush1.msra.mxu0 %v2652
      %2676 = vmatprep.subr.mxu0 0.0
      %2677 = vmatpush1.msra.mxu0 %v2653
      %2678 = vmatprep.subr.mxu0 0.0
      %2679 = vmatpush1.msra.mxu0 %v2654
      %2680 = vmatprep.subr.mxu0 0.0
      %2681 = vmatpush1.msra.mxu0 %v2655
      %2682 = vmatprep.subr.mxu0 0.0
      %2683 = vmatpush1.msra.mxu0 %v2656
      %2684 = vmatprep.subr.mxu0 0.0
      %2685 = vmatpush1.msra.mxu0 %v2657
      %2686 = vmatprep.subr.mxu0 0.0
      %2687 = vmatpush1.msra.mxu0 %v2658
      %2688 = vmatprep.subr.mxu0 0.0
      %2689 = vmatpush1.msra.mxu0 %v2659
      %2690 = vmatprep.subr.mxu0 0.0
      %2691 = vmatpush1.msra.mxu0 %v2660
      %2692 = vmatprep.subr.mxu0 0.0
      %2693 = vmatpush1.msra.mxu0 %v2661
      %2694 = vmatprep.subr.mxu0 0.0
      %2695 = vmatpush1.msra.mxu0 0.0
      %2696 = vmatprep.subr.mxu0 0.0
      %2697 = vmatpush1.msra.mxu0 0.0
      %2698 = vmatprep.subr.mxu0 0.0
      %2699 = vmatpush1.msra.mxu0 0.0
      %2700 = vmatprep.subr.mxu0 0.0
      %2701 = vmatpush1.msra.mxu0 0.0
      %2702 = vmatprep.subr.mxu0 0.0
      %2703 = vmatpush1.msra.mxu0 0.0
      %2704 = vmatprep.subr.mxu0 0.0
      %2705 = vmatpush1.msra.mxu0 0.0
      %2706 = vmatprep.subr.mxu0 0.0
      %2707 = vmatpush1.msra.mxu0 0.0
      %2708 = vmatprep.subr.mxu0 0.0
      %2709 = vmatpush1.msra.mxu0 0.0
      %2710 = vmatprep.subr.mxu0 0.0
      %2711 = vmatpush1.msra.mxu0 0.0
      %2712 = vmatprep.subr.mxu0 0.0
      %2713 = vmatpush1.msra.mxu0 0.0
      %2714 = vmatprep.subr.mxu0 0.0
      %2715 = vmatpush1.msra.mxu0 0.0
      %2716 = vmatprep.subr.mxu0 0.0
      %2717 = vmatpush1.msra.mxu0 0.0
      %2718 = vmatprep.subr.mxu0 0.0
      %2719 = vmatpush1.msra.mxu0 0.0
      %2720 = vmatprep.subr.mxu0 0.0
      %2721 = vmatpush1.msra.mxu0 0.0
      %2722 = vmatprep.subr.mxu0 0.0
      %2723 = vmatpush1.msra.mxu0 0.0
      %2724 = vmatprep.subr.mxu0 0.0
      %2725 = vmatpush1.msra.mxu0 0.0
      %2726 = vmatprep.mubr.f32.mxu0 0.0
      %2727 = vmatmul.mubr.f32.gmra.mrb[0].mxu0 %v2065
      %v2728 = vpop.f32.mrb[0].mxu0
      %v2729 = vadd.f32 0.0, %v2728
      %v2730 = vpop.f32.mrb[0].mxu0
      %2731 = vmatprep.mubr.f32.mxu0 0.0
      %2732 = vmatmul.mubr.f32.gmra.mrb[0].mxu0 %v2066
      %v2733 = vpop.f32.mrb[0].mxu0
      %v2734 = vadd.f32 0.0, %v2733
      %v2735 = vpop.f32.mrb[0].mxu0
      %2736 = vmatprep.mubr.f32.mxu0 0.0
      %2737 = vmatmul.mubr.f32.gmra.mrb[0].mxu0 %v2067
      %v2738 = vpop.f32.mrb[0].mxu0
      %v2739 = vadd.f32 0.0, %v2738
      %v2740 = vpop.f32.mrb[0].mxu0
      %2741 = vmatprep.mubr.f32.mxu0 0.0
      %2742 = vmatmul.mubr.f32.gmra.mrb[0].mxu0 %v2068
      %v2743 = vpop.f32.mrb[0].mxu0
      %v2744 = vadd.f32 0.0, %v2743
      %v2745 = vpop.f32.mrb[0].mxu0
      %2746 = vmatprep.mubr.f32.mxu0 0.0
      %2747 = vmatmul.mubr.f32.gmra.mrb[0].mxu0 %v2069
      %v2748 = vpop.f32.mrb[0].mxu0
      %v2749 = vadd.f32 0.0, %v2748
      %v2750 = vpop.f32.mrb[0].mxu0
      %2751 = vmatprep.mubr.f32.mxu0 0.0
      %2752 = vmatmul.mubr.f32.gmra.mrb[0].mxu0 %v2070
      %v2753 = vpop.f32.mrb[0].mxu0
      %v2754 = vadd.f32 0.0, %v2753
      %v2755 = vpop.f32.mrb[0].mxu0
      %2756 = vmatprep.mubr.f32.mxu0 0.0
      %2757 = vmatmul.mubr.f32.gmra.mrb[0].mxu0 %v2071
      %v2758 = vpop.f32.mrb[0].mxu0
      %v2759 = vadd.f32 0.0, %v2758
      %v2760 = vpop.f32.mrb[0].mxu0
      %2761 = vmatprep.mubr.f32.mxu0 0.0
      %2762 = vmatmul.mubr.f32.gmra.mrb[0].mxu0 %v2072
      %v2763 = vpop.f32.mrb[0].mxu0
      %v2764 = vadd.f32 0.0, %v2763
      %v2765 = vpop.f32.mrb[0].mxu0
      %2766 = vmatprep.mubr.f32.mxu0 0.0
      %2767 = vmatmul.mubr.f32.gmra.mrb[0].mxu0 %v2073
      %v2768 = vpop.f32.mrb[0].mxu0
      %v2769 = vadd.f32 0.0, %v2768
      %v2770 = vpop.f32.mrb[0].mxu0
      %2771 = vmatprep.mubr.f32.mxu0 0.0
      %2772 = vmatmul.mubr.f32.gmra.mrb[0].mxu0 %v2074
      %v2773 = vpop.f32.mrb[0].mxu0
      %v2774 = vadd.f32 0.0, %v2773
      %v2775 = vpop.f32.mrb[0].mxu0
      %2776 = vmatprep.mubr.f32.mxu0 0.0
      %2777 = vmatmul.mubr.f32.gmra.mrb[0].mxu0 %v2075
      %v2778 = vpop.f32.mrb[0].mxu0
      %v2779 = vadd.f32 0.0, %v2778
      %v2780 = vpop.f32.mrb[0].mxu0
      %2781 = vmatprep.mubr.f32.mxu0 0.0
      %2782 = vmatmul.mubr.f32.gmra.mrb[0].mxu0 %v2076
      %v2783 = vpop.f32.mrb[0].mxu0
      %v2784 = vadd.f32 0.0, %v2783
      %v2785 = vpop.f32.mrb[0].mxu0
      %2786 = vmatprep.mubr.f32.mxu0 0.0
      %2787 = vmatmul.mubr.f32.gmra.mrb[0].mxu0 %v2077
      %v2788 = vpop.f32.mrb[0].mxu0
      %v2789 = vadd.f32 0.0, %v2788
      %v2790 = vpop.f32.mrb[0].mxu0
      %2791 = vmatprep.mubr.f32.mxu0 0.0
      %2792 = vmatmul.mubr.f32.gmra.mrb[0].mxu0 %v2078
      %v2793 = vpop.f32.mrb[0].mxu0
      %v2794 = vadd.f32 0.0, %v2793
      %v2795 = vpop.f32.mrb[0].mxu0
      %2796 = vmatprep.mubr.f32.mxu0 0.0
      %2797 = vmatmul.mubr.f32.gmra.mrb[0].mxu0 %v2079
      %v2798 = vpop.f32.mrb[0].mxu0
      %v2799 = vadd.f32 0.0, %v2798
      %v2800 = vpop.f32.mrb[0].mxu0
      %2801 = vmatprep.mubr.f32.mxu0 0.0
      %2802 = vmatmul.mubr.f32.gmra.mrb[0].mxu0 %v2080
      %v2803 = vpop.f32.mrb[0].mxu0
      %v2804 = vadd.f32 0.0, %v2803
      %v2805 = vpop.f32.mrb[0].mxu0
      %2806 = vmatprep.mubr.f32.mxu0 0.0
      %2807 = vmatmul.mubr.f32.gmra.mrb[0].mxu0 %v2081
      %v2808 = vpop.f32.mrb[0].mxu0
      %v2809 = vadd.f32 0.0, %v2808
      %v2810 = vpop.f32.mrb[0].mxu0
      %2811 = vmatprep.mubr.f32.mxu0 0.0
      %2812 = vmatmul.mubr.f32.gmra.mrb[0].mxu0 %v2082
      %v2813 = vpop.f32.mrb[0].mxu0
      %v2814 = vadd.f32 0.0, %v2813
      %v2815 = vpop.f32.mrb[0].mxu0
      %2816 = vmatprep.mubr.f32.mxu0 0.0
      %2817 = vmatmul.mubr.f32.gmra.mrb[0].mxu0 %v2083
      %v2818 = vpop.f32.mrb[0].mxu0
      %v2819 = vadd.f32 0.0, %v2818
      %v2820 = vpop.f32.mrb[0].mxu0
      %2821 = vmatprep.mubr.f32.mxu0 0.0
      %2822 = vmatmul.mubr.f32.gmra.mrb[0].mxu0 %v2084
      %v2823 = vpop.f32.mrb[0].mxu0
      %v2824 = vadd.f32 0.0, %v2823
      %v2825 = vpop.f32.mrb[0].mxu0
      %2826 = vmatprep.mubr.f32.mxu0 0.0
      %2827 = vmatmul.mubr.f32.gmra.mrb[0].mxu0 %v2085
      %v2828 = vpop.f32.mrb[0].mxu0
      %v2829 = vadd.f32 0.0, %v2828
      %v2830 = vpop.f32.mrb[0].mxu0
      %2831 = vmatprep.mubr.f32.mxu0 0.0
      %2832 = vmatmul.mubr.f32.gmra.mrb[0].mxu0 %v2086
      %v2833 = vpop.f32.mrb[0].mxu0
      %v2834 = vadd.f32 0.0, %v2833
      %v2835 = vpop.f32.mrb[0].mxu0
      %2836 = vmatprep.mubr.f32.mxu0 0.0
      %2837 = vmatmul.mubr.f32.gmra.mrb[0].mxu0 %v2087
      %v2838 = vpop.f32.mrb[0].mxu0
      %v2839 = vadd.f32 0.0, %v2838
      %v2840 = vpop.f32.mrb[0].mxu0
      %2841 = vmatprep.mubr.f32.mxu0 0.0
      %2842 = vmatmul.mubr.f32.gmra.mrb[0].mxu0 %v2088
      %v2843 = vpop.f32.mrb[0].mxu0
      %v2844 = vadd.f32 0.0, %v2843
      %v2845 = vpop.f32.mrb[0].mxu0
      %2846 = vmatprep.mubr.f32.mxu0 0.0
      %2847 = vmatmul.mubr.f32.gmra.mrb[0].mxu0 %v2089
      %v2848 = vpop.f32.mrb[0].mxu0
      %v2849 = vadd.f32 0.0, %v2848
      %v2850 = vpop.f32.mrb[0].mxu0
      %2851 = vmatprep.mubr.f32.mxu0 0.0
      %2852 = vmatmul.mubr.f32.gmra.mrb[0].mxu0 %v2090
      %v2853 = vpop.f32.mrb[0].mxu0
      %v2854 = vadd.f32 0.0, %v2853
      %v2855 = vpop.f32.mrb[0].mxu0
      %2856 = vmatprep.mubr.f32.mxu0 0.0
      %2857 = vmatmul.mubr.f32.gmra.mrb[0].mxu0 %v2091
      %v2858 = vpop.f32.mrb[0].mxu0
      %v2859 = vadd.f32 0.0, %v2858
      %v2860 = vpop.f32.mrb[0].mxu0
      %2861 = vmatprep.mubr.f32.mxu0 0.0
      %2862 = vmatmul.mubr.f32.gmra.mrb[0].mxu0 %v2092
      %v2863 = vpop.f32.mrb[0].mxu0
      %v2864 = vadd.f32 0.0, %v2863
      %v2865 = vpop.f32.mrb[0].mxu0
      %2866 = vmatprep.mubr.f32.mxu0 0.0
      %2867 = vmatmul.mubr.f32.gmra.mrb[0].mxu0 %v2093
      %v2868 = vpop.f32.mrb[0].mxu0
      %v2869 = vadd.f32 0.0, %v2868
      %v2870 = vpop.f32.mrb[0].mxu0
      %2871 = vmatprep.mubr.f32.mxu0 0.0
      %2872 = vmatmul.mubr.f32.gmra.mrb[0].mxu0 %v2094
      %v2873 = vpop.f32.mrb[0].mxu0
      %v2874 = vadd.f32 0.0, %v2873
      %v2875 = vpop.f32.mrb[0].mxu0
      %2876 = vmatprep.mubr.f32.mxu0 0.0
      %2877 = vmatmul.mubr.f32.gmra.mrb[0].mxu0 %v2095
      %v2878 = vpop.f32.mrb[0].mxu0
      %v2879 = vadd.f32 0.0, %v2878
      %v2880 = vpop.f32.mrb[0].mxu0
      %2881 = vmatprep.mubr.f32.mxu0 0.0
      %2882 = vmatmul.mubr.f32.gmra.mrb[0].mxu0 %v2096
      %v2883 = vpop.f32.mrb[0].mxu0
      %v2884 = vadd.f32 0.0, %v2883
      %v2885 = vpop.f32.mrb[0].mxu0
      %2886 = vdwg.mxu0
      %v2887 = vadd.f32 %v2613, %v2729
      %v2888 = vadd.f32 %v2614, %v2734
      %v2889 = vadd.f32 %v2615, %v2739
      %v2890 = vadd.f32 %v2616, %v2744
      %v2891 = vadd.f32 %v2617, %v2749
      %v2892 = vadd.f32 %v2618, %v2754
      %v2893 = vadd.f32 %v2619, %v2759
      %v2894 = vadd.f32 %v2620, %v2764
      %v2895 = vadd.f32 %v2621, %v2769
      %v2896 = vadd.f32 %v2622, %v2774
      %v2897 = vadd.f32 %v2623, %v2779
      %v2898 = vadd.f32 %v2624, %v2784
      %v2899 = vadd.f32 %v2625, %v2789
      %v2900 = vadd.f32 %v2626, %v2794
      %v2901 = vadd.f32 %v2627, %v2799
      %v2902 = vadd.f32 %v2628, %v2804
      %v2903 = vadd.f32 %v2629, %v2809
      %v2904 = vadd.f32 %v2630, %v2814
      %v2905 = vadd.f32 %v2631, %v2819
      %v2906 = vadd.f32 %v2632, %v2824
      %v2907 = vadd.f32 %v2633, %v2829
      %v2908 = vadd.f32 %v2634, %v2834
      %v2909 = vadd.f32 %v2635, %v2839
      %v2910 = vadd.f32 %v2636, %v2844
      %v2911 = vadd.f32 %v2637, %v2849
      %v2912 = vadd.f32 %v2638, %v2854
      %v2913 = vadd.f32 %v2639, %v2859
      %v2914 = vadd.f32 %v2640, %v2864
      %v2915 = vadd.f32 %v2641, %v2869
      %v2916 = vadd.f32 %v2642, %v2874
      %v2917 = vadd.f32 %v2643, %v2879
      %v2918 = vadd.f32 %v2644, %v2884
      %2919 = vst [vmem:[%s197] sm:$0xff] %v2887
      %2920 = vst [vmem:[%s197 + $0x8] sm:$0xff] %v2888
      %2921 = vst [vmem:[%s197 + $0x10] sm:$0xff] %v2889
      %2922 = vst [vmem:[%s197 + $0x18] sm:$0xff] %v2890
      %2923 = vst [vmem:[%s197 + $0x20] sm:$0xff] %v2891
      %2924 = vst [vmem:[%s197 + $0x28] sm:$0xff] %v2892
      %2925 = vst [vmem:[%s197 + $0x30] sm:$0xff] %v2893
      %2926 = vst [vmem:[%s197 + $0x38] sm:$0xff] %v2894
      %2927 = vst [vmem:[%s197 + $0x40] sm:$0xff] %v2895
      %2928 = vst [vmem:[%s197 + $0x48] sm:$0xff] %v2896
      %2929 = vst [vmem:[%s197 + $0x50] sm:$0xff] %v2897
      %2930 = vst [vmem:[%s197 + $0x58] sm:$0xff] %v2898
      %2931 = vst [vmem:[%s197 + $0x60] sm:$0xff] %v2899
      %2932 = vst [vmem:[%s197 + $0x68] sm:$0xff] %v2900
      %2933 = vst [vmem:[%s197 + $0x70] sm:$0xff] %v2901
      %2934 = vst [vmem:[%s197 + $0x78] sm:$0xff] %v2902
      %2935 = vst [vmem:[%s197 + $0x80] sm:$0xff] %v2903
      %2936 = vst [vmem:[%s197 + $0x88] sm:$0xff] %v2904
      %2937 = vst [vmem:[%s197 + $0x90] sm:$0xff] %v2905
      %2938 = vst [vmem:[%s197 + $0x98] sm:$0xff] %v2906
      %2939 = vst [vmem:[%s197 + $0xa0] sm:$0xff] %v2907
      %2940 = vst [vmem:[%s197 + $0xa8] sm:$0xff] %v2908
      %2941 = vst [vmem:[%s197 + $0xb0] sm:$0xff] %v2909
      %2942 = vst [vmem:[%s197 + $0xb8] sm:$0xff] %v2910
      %2943 = vst [vmem:[%s197 + $0xc0] sm:$0xff] %v2911
      %2944 = vst [vmem:[%s197 + $0xc8] sm:$0xff] %v2912
      %2945 = vst [vmem:[%s197 + $0xd0] sm:$0xff] %v2913
      %2946 = vst [vmem:[%s197 + $0xd8] sm:$0xff] %v2914
      %2947 = vst [vmem:[%s197 + $0xe0] sm:$0xff] %v2915
      %2948 = vst [vmem:[%s197 + $0xe8] sm:$0xff] %v2916
      %2949 = vst [vmem:[%s197 + $0xf0] sm:$0xff] %v2917
      %2950 = vst [vmem:[%s197 + $0xf8] sm:$0xff] %v2918
      %v2951 = vadd.f32 %v2887, %v2888
      %v2952 = vadd.f32 %v2951, %v2889
      %v2953 = vadd.f32 %v2952, %v2890
      %v2954 = vadd.f32 %v2953, %v2891
      %v2955 = vadd.f32 %v2954, %v2892
      %v2956 = vadd.f32 %v2955, %v2893
      %v2957 = vadd.f32 %v2956, %v2894
      %v2958 = vadd.f32 %v2957, %v2895
      %v2959 = vadd.f32 %v2958, %v2896
      %v2960 = vadd.f32 %v2959, %v2897
      %v2961 = vadd.f32 %v2960, %v2898
      %v2962 = vadd.f32 %v2961, %v2899
      %v2963 = vadd.f32 %v2962, %v2900
      %v2964 = vadd.f32 %v2963, %v2901
      %v2965 = vadd.f32 %v2964, %v2902
      %v2966 = vadd.f32 %v2965, %v2903
      %v2967 = vadd.f32 %v2966, %v2904
      %v2968 = vadd.f32 %v2967, %v2905
      %v2969 = vadd.f32 %v2968, %v2906
      %v2970 = vadd.f32 %v2969, %v2907
      %v2971 = vadd.f32 %v2970, %v2908
      %v2972 = vadd.f32 %v2971, %v2909
      %v2973 = vadd.f32 %v2972, %v2910
      %v2974 = vadd.f32 %v2973, %v2911
      %v2975 = vadd.f32 %v2974, %v2912
      %v2976 = vadd.f32 %v2975, %v2913
      %v2977 = vadd.f32 %v2976, %v2914
      %v2978 = vadd.f32 %v2977, %v2915
      %v2979 = vadd.f32 %v2978, %v2916
      %v2980 = vadd.f32 %v2979, %v2917
      %v2981 = vadd.f32 %v2980, %v2918
      %v2982 = vrot.slane %v2981, 4
      %v2983 = vadd.f32 %v2981, %v2982
      %v2984 = vrot.slane %v2983, 2
      %v2985 = vadd.f32 %v2983, %v2984
      %v2986 = vrot.slane %v2985, 1
      %v2987 = vadd.f32 %v2985, %v2986
      %v2988 = vmul.f32 %v2987, 0.00390625
      %v2989 = vsub.f32 %v2887, %v2988
      %v2990 = vsub.f32 %v2888, %v2988
      %v2991 = vsub.f32 %v2889, %v2988
      %v2992 = vsub.f32 %v2890, %v2988
      %v2993 = vsub.f32 %v2891, %v2988
      %v2994 = vsub.f32 %v2892, %v2988
      %v2995 = vsub.f32 %v2893, %v2988
      %v2996 = vsub.f32 %v2894, %v2988
      %v2997 = vsub.f32 %v2895, %v2988
      %v2998 = vsub.f32 %v2896, %v2988
      %v2999 = vsub.f32 %v2897, %v2988
      %v3000 = vsub.f32 %v2898, %v2988
      %v3001 = vsub.f32 %v2899, %v2988
      %v3002 = vsub.f32 %v2900, %v2988
      %v3003 = vsub.f32 %v2901, %v2988
      %v3004 = vsub.f32 %v2902, %v2988
      %v3005 = vsub.f32 %v2903, %v2988
      %v3006 = vsub.f32 %v2904, %v2988
      %v3007 = vsub.f32 %v2905, %v2988
      %v3008 = vsub.f32 %v2906, %v2988
      %v3009 = vsub.f32 %v2907, %v2988
      %v3010 = vsub.f32 %v2908, %v2988
      %v3011 = vsub.f32 %v2909, %v2988
      %v3012 = vsub.f32 %v2910, %v2988
      %v3013 = vsub.f32 %v2911, %v2988
      %v3014 = vsub.f32 %v2912, %v2988
      %v3015 = vsub.f32 %v2913, %v2988
      %v3016 = vsub.f32 %v2914, %v2988
      %v3017 = vsub.f32 %v2915, %v2988
      %v3018 = vsub.f32 %v2916, %v2988
      %v3019 = vsub.f32 %v2917, %v2988
      %v3020 = vsub.f32 %v2918, %v2988
      %v3021 = vmul.f32 %v2989, %v2989
      %v3022 = vmul.f32 %v2990, %v2990
      %v3023 = vmul.f32 %v2991, %v2991
      %v3024 = vmul.f32 %v2992, %v2992
      %v3025 = vmul.f32 %v2993, %v2993
      %v3026 = vmul.f32 %v2994, %v2994
      %v3027 = vmul.f32 %v2995, %v2995
      %v3028 = vmul.f32 %v2996, %v2996
      %v3029 = vmul.f32 %v2997, %v2997
      %v3030 = vmul.f32 %v2998, %v2998
      %v3031 = vmul.f32 %v2999, %v2999
      %v3032 = vmul.f32 %v3000, %v3000
      %v3033 = vmul.f32 %v3001, %v3001
      %v3034 = vmul.f32 %v3002, %v3002
      %v3035 = vmul.f32 %v3003, %v3003
      %v3036 = vmul.f32 %v3004, %v3004
      %v3037 = vmul.f32 %v3005, %v3005
      %v3038 = vmul.f32 %v3006, %v3006
      %v3039 = vmul.f32 %v3007, %v3007
      %v3040 = vmul.f32 %v3008, %v3008
      %v3041 = vmul.f32 %v3009, %v3009
      %v3042 = vmul.f32 %v3010, %v3010
      %v3043 = vmul.f32 %v3011, %v3011
      %v3044 = vmul.f32 %v3012, %v3012
      %v3045 = vmul.f32 %v3013, %v3013
      %v3046 = vmul.f32 %v3014, %v3014
      %v3047 = vmul.f32 %v3015, %v3015
      %v3048 = vmul.f32 %v3016, %v3016
      %v3049 = vmul.f32 %v3017, %v3017
      %v3050 = vmul.f32 %v3018, %v3018
      %v3051 = vmul.f32 %v3019, %v3019
      %v3052 = vmul.f32 %v3020, %v3020
      %v3053 = vadd.f32 %v3021, %v3022
      %v3054 = vadd.f32 %v3053, %v3023
      %v3055 = vadd.f32 %v3054, %v3024
      %v3056 = vadd.f32 %v3055, %v3025
      %v3057 = vadd.f32 %v3056, %v3026
      %v3058 = vadd.f32 %v3057, %v3027
      %v3059 = vadd.f32 %v3058, %v3028
      %v3060 = vadd.f32 %v3059, %v3029
      %v3061 = vadd.f32 %v3060, %v3030
      %v3062 = vadd.f32 %v3061, %v3031
      %v3063 = vadd.f32 %v3062, %v3032
      %v3064 = vadd.f32 %v3063, %v3033
      %v3065 = vadd.f32 %v3064, %v3034
      %v3066 = vadd.f32 %v3065, %v3035
      %v3067 = vadd.f32 %v3066, %v3036
      %v3068 = vadd.f32 %v3067, %v3037
      %v3069 = vadd.f32 %v3068, %v3038
      %v3070 = vadd.f32 %v3069, %v3039
      %v3071 = vadd.f32 %v3070, %v3040
      %v3072 = vadd.f32 %v3071, %v3041
      %v3073 = vadd.f32 %v3072, %v3042
      %v3074 = vadd.f32 %v3073, %v3043
      %v3075 = vadd.f32 %v3074, %v3044
      %v3076 = vadd.f32 %v3075, %v3045
      %v3077 = vadd.f32 %v3076, %v3046
      %v3078 = vadd.f32 %v3077, %v3047
      %v3079 = vadd.f32 %v3078, %v3048
      %v3080 = vadd.f32 %v3079, %v3049
      %v3081 = vadd.f32 %v3080, %v3050
      %v3082 = vadd.f32 %v3081, %v3051
      %v3083 = vadd.f32 %v3082, %v3052
      %v3084 = vrot.slane %v3083, 4
      %v3085 = vadd.f32 %v3083, %v3084
      %v3086 = vrot.slane %v3085, 2
      %v3087 = vadd.f32 %v3085, %v3086
      %v3088 = vrot.slane %v3087, 1
      %v3089 = vadd.f32 %v3087, %v3088
      %3090 = vst [vmem:[%s208] sm:$0x1] %v2987
      %3091 = vst [vmem:[%s208 + $0x1] sm:$0x1] %v3089
      %s3092 = smul.u32 16, %s22
      %p3093 = scmp.lt.s32.totalorder %s21, 1
      %s3094 = scalar_select %p3093, %s21, 1
      %p3095 = scmp.lt.s32.totalorder %s3092, 15
      %s3096 = scalar_select %p3095, %s3092, 15
      %p3097 = scmp.lt.s32.totalorder %s20, 0
      %s3098 = scalar_select %p3097, %s20, 0
      %s3099 = smul.addr %s3096, 2
      %s3100 = sadd.s32 %s3098, %s3099
      %s3101 = smul.addr %s3094, 32
      %s3102 = sadd.s32 %s3100, %s3101
      %s3103 = smul.addr %s3102, 8
      %s3104 = scalar_lea.vmem %s2, %s3103
      %p3105 = scmp.lt.s32.totalorder %s21, 1
      %s3106 = scalar_select %p3105, %s21, 1
      %p3107 = scmp.lt.s32.totalorder %s22, 0
      %s3108 = scalar_select %p3107, %s22, 0
      %p3109 = scmp.lt.s32.totalorder %s20, 0
      %s3110 = scalar_select %p3109, %s20, 0
      %s3111 = sadd.s32 %s3110, %s3108
      %s3112 = sadd.s32 %s3111, %s3106
      %s3113 = smul.addr %s3112, 2
      %s3114 = scalar_lea.vmem %s3, %s3113
      // Predicated region
      $region62: #{conv_bn_2d.2} parent=23 // pred_check
        %p3115 = pneg %p82
      $region63: #{conv_bn_2d.2} parent=23 // pred_check_branch
        %3117 = sbr.rel (%p3115) target = $region65
      $region64: #{conv_bn_2d.2} parent=23 // pred_region
        %s3118 = smul.u32 16, %s22
      $region65: #{conv_bn_2d.2} parent=23 // pred_fallthru
        _
      // Predicated region
      $region66: #{conv_bn_2d.2} parent=23 // pred_check
        %p3119 = pneg %p112
      $region67: #{conv_bn_2d.2} parent=23 // pred_check_branch
        %3121 = sbr.rel (%p3119) target = $region69
      $region68: #{conv_bn_2d.2} parent=23 // pred_region
        _
      $region69: #{conv_bn_2d.2} parent=23 // pred_fallthru
        _
    $region24: #{conv_bn_2d.2} parent=5 // pred_fallthru
      _
    %p3122 = scmp.le.s32.totalorder 2, %s10
    // Predicated region
    $region70: #{conv_bn_2d.2} parent=5 // pred_check
      %p3123 = pneg %p3122
    $region71: #{conv_bn_2d.2} parent=5 // pred_check_branch
      %3125 = sbr.rel (%p3123) target = $region73
    $region72: #{conv_bn_2d.2} parent=5 // pred_region
      %s3126 = ssub.s32 %s10, 2
      // Predicated region
      $region74: #{conv_bn_2d.2} parent=72 // pred_check
        %p3127 = pneg %p88
      $region75: #{conv_bn_2d.2} parent=72 // pred_check_branch
        %3129 = sbr.rel (%p3127) target = $region77
      $region76: #{conv_bn_2d.2} parent=72 // pred_region
        %s3130 = smul.u32 16, %s25
        %p3131 = scmp.lt.s32.totalorder %s24, 1
        %s3132 = scalar_select %p3131, %s24, 1
        %p3133 = scmp.lt.s32.totalorder %s3130, 15
        %s3134 = scalar_select %p3133, %s3130, 15
        %p3135 = scmp.lt.s32.totalorder %s23, 0
        %s3136 = scalar_select %p3135, %s23, 0
        %s3137 = smul.addr %s3134, 2
        %s3138 = sadd.s32 %s3136, %s3137
        %s3139 = smul.addr %s3132, 32
        %s3140 = sadd.s32 %s3138, %s3139
        %s3141 = smul.addr %s3140, 8
        %s3142 = scalar_lea.vmem %s2, %s3141
      $region77: #{conv_bn_2d.2} parent=72 // pred_fallthru
        _
      // Predicated region
      $region78: #{conv_bn_2d.2} parent=72 // pred_check
        %p3143 = pneg %p118
      $region79: #{conv_bn_2d.2} parent=72 // pred_check_branch
        %3145 = sbr.rel (%p3143) target = $region81
      $region80: #{conv_bn_2d.2} parent=72 // pred_region
        %p3146 = scmp.lt.s32.totalorder %s24, 1
        %s3147 = scalar_select %p3146, %s24, 1
        %p3148 = scmp.lt.s32.totalorder %s25, 0
        %s3149 = scalar_select %p3148, %s25, 0
        %p3150 = scmp.lt.s32.totalorder %s23, 0
        %s3151 = scalar_select %p3150, %s23, 0
        %s3152 = sadd.s32 %s3151, %s3149
        %s3153 = sadd.s32 %s3152, %s3147
        %s3154 = smul.addr %s3153, 2
        %s3155 = scalar_lea.vmem %s3, %s3154
      $region81: #{conv_bn_2d.2} parent=72 // pred_fallthru
        _
    $region73: #{conv_bn_2d.2} parent=5 // pred_fallthru
      _
  $region6: #{conv_bn_2d.2} parent=0 // loop_footer
    %s14 = sadd.s32 1, %s10
  $region7: #{conv_bn_2d.2} parent=0 // loop_footer_branch
    %9 = sbr.rel target = $region3
  $region8: #{conv_bn_2d.2} parent=0 // loop_exit
    _
  %3156 = vsyncmov [#allocation3]
  %s3157 = vpop.sfrf %3156
  %p3158 = scmp.eq.s32.totalorder %s3157, 0
  %p3159 = pneg %p3158
  %3161 = shalt.err (%p3159)

</llo_original>
